<compile_context>
chip_gen: v6e
topology: v6e:2x2x1
jax: 0.10.0
libtpu: 0.0.40
codegen_flags: <defaults>
</compile_context>

<pallas_src>
import functools

import jax
import jax.numpy as jnp
from jax.experimental import pallas as pl
from jax.experimental.pallas import tpu as pltpu

H1, H2, H3 = 512, 512, 256
LN_EPS = 1e-5


def _round_up(n, m):
    return ((n + m - 1) // m) * m


def _default_ln_dtype():
    """bf16 affine/ReLU on bf16-VPU generations (v6e/v7x), f32 on v5e."""
    try:
        kind = jax.devices()[0].device_kind.lower()
    except Exception:
        return jnp.bfloat16
    if "v5 lite" in kind or "v5e" in kind or "v5lite" in kind:
        return jnp.float32
    return jnp.bfloat16


def _ln_relu(h, gamma, beta, affine_dtype, out_dtype):
    """LayerNorm over the last axis followed by ReLU.

    Statistics and the normalize are f32 (single pass: var = E[x^2] - mu^2,
    clamped at 0); the gamma/beta affine and ReLU run in `affine_dtype`
    (bf16 on v6e/v7x) and the result is emitted in `out_dtype` so it can feed
    the next MXU matmul without an extra cast.
    """
    mu = jnp.mean(h, axis=-1, keepdims=True)
    msq = jnp.mean(h * h, axis=-1, keepdims=True)
    var = jnp.maximum(msq - mu * mu, 0.0)
    hn = (h - mu) * jax.lax.rsqrt(var + LN_EPS)          # f32 normalize
    hn = hn.astype(affine_dtype)
    y = jnp.maximum(hn * gamma.astype(affine_dtype) + beta.astype(affine_dtype), 0)
    return y.astype(out_dtype)


def critic_kernel(x_ref,
                  w1_ref, b1_ref, g1_ref, be1_ref,
                  w2_ref, b2_ref, g2_ref, be2_ref,
                  w3_ref, b3_ref, g3_ref, be3_ref,
                  w4_ref, b4_ref,
                  out_ref, *, ln_dtype):
    # Layer 1: fused concat already done in wrapper -> single (tile_b,S+A)@(S+A,512)
    h = (jnp.dot(x_ref[...], w1_ref[...], preferred_element_type=jnp.float32)
         + b1_ref[...])
    h = _ln_relu(h, g1_ref[...], be1_ref[...], ln_dtype, w2_ref.dtype)

    # Layer 2: 512 -> 512 (bf16 MXU, f32 acc)
    h = jnp.dot(h, w2_ref[...], preferred_element_type=jnp.float32) + b2_ref[...]
    h = _ln_relu(h, g2_ref[...], be2_ref[...], ln_dtype, w3_ref.dtype)

    # Layer 3: 512 -> 256 (bf16 MXU, f32 acc); final LN kept fully f32.
    h = jnp.dot(h, w3_ref[...], preferred_element_type=jnp.float32) + b3_ref[...]
    h = _ln_relu(h, g3_ref[...], be3_ref[...], jnp.float32, jnp.float32)

    # Output layer 256 -> 1 as a VPU multiply + lane reduce (no N=1 MXU matmul).
    out = jnp.sum(h * w4_ref[...], axis=-1, keepdims=True) + b4_ref[...]
    out_ref[...] = out.astype(out_ref.dtype)


def prepare_params(params, matmul_dtype=jnp.bfloat16):
    """One-time (outside the hot jit) weight preparation: bf16 matmul weights,
    f32 biases / LN params, and w4 as a (1, 256) f32 row for the lane reduce."""
    (w1, b1, g1, be1, w2, b2, g2, be2, w3, b3, g3, be3, w4, b4) = params
    return (w1.astype(matmul_dtype), b1, g1, be1,
            w2.astype(matmul_dtype), b2, g2, be2,
            w3.astype(matmul_dtype), b3, g3, be3,
            w4.reshape(1, H3).astype(jnp.float32), b4)


def _choose_tile_b(B, tile_target):
    """Aim for >=2 grid steps (two v7x TensorCores) with minimal padding."""
    grid_b = pl.cdiv(B, tile_target)
    if B > 8:
        grid_b = max(grid_b, 2)
    return max(8, _round_up(pl.cdiv(B, grid_b), 8))


def critic_forward(state, action, kparams, *, tile_b=512, ln_dtype=None):
    """Fused Critic MLP. state: [B, S], action: [B, A] -> q: [B, 1] (f32)."""
    (w1, b1, g1, be1, w2, b2, g2, be2, w3, b3, g3, be3, w4r, b4) = kparams
    B = state.shape[0]
    d_in = w1.shape[0]
    matmul_dtype = w1.dtype
    if ln_dtype is None:
        ln_dtype = _default_ln_dtype()

    # Fuse torch.cat([state, action]) in the wrapper; (B, S+A) is tiny traffic.
    x = jnp.concatenate([state, action], axis=1).astype(matmul_dtype)
    assert x.shape[1] == d_in

    tile_b = _choose_tile_b(B, tile_b)
    grid_b = pl.cdiv(B, tile_b)
    b_pad = grid_b * tile_b
    if b_pad != B:
        x = jnp.pad(x, ((0, b_pad - B), (0, 0)))

    row = lambda i: (i, 0)    # x / out: tile over batch
    full = lambda i: (0, 0)   # weights / LN params: same block every step

    in_specs = [
        pl.BlockSpec((tile_b, d_in), row),
        pl.BlockSpec((d_in, H1), full),
        pl.BlockSpec((1, H1), full), pl.BlockSpec((1, H1), full),
        pl.BlockSpec((1, H1), full),
        pl.BlockSpec((H1, H2), full),
        pl.BlockSpec((1, H2), full), pl.BlockSpec((1, H2), full),
        pl.BlockSpec((1, H2), full),
        pl.BlockSpec((H2, H3), full),
        pl.BlockSpec((1, H3), full), pl.BlockSpec((1, H3), full),
        pl.BlockSpec((1, H3), full),
        pl.BlockSpec((1, H3), full),
        pl.BlockSpec((1, 1), full),
    ]

    compiler_kwargs = dict(dimension_semantics=("parallel",))
    if tile_b >= 512:
        # Large activation tiles: request 32 MiB scoped VMEM (helps v5e's 16 MiB
        # default; well under v7x's 64 MiB physical per-TC VMEM).
        compiler_kwargs["vmem_limit_bytes"] = 32 * 1024 * 1024

    out = pl.pallas_call(
        functools.partial(critic_kernel, ln_dtype=ln_dtype),
        out_shape=jax.ShapeDtypeStruct((b_pad, 1), jnp.float32),
        grid_spec=pltpu.PrefetchScalarGridSpec(
            num_scalar_prefetch=0,
            grid=(grid_b,),
            in_specs=in_specs,
            out_specs=pl.BlockSpec((tile_b, 1), row),
        ),
        compiler_params=pltpu.CompilerParams(**compiler_kwargs),
    )(x, w1, b1, g1, be1, w2, b2, g2, be2, w3, b3, g3, be3, w4r, b4)
    return out[:B]


def init_params(key, state_dim, action_dim):
    """xavier_uniform weights, zero biases, LN gamma=1 / beta=0 (matches the
    PyTorch module's init)."""
    d_in = state_dim + action_dim

    def xavier(k, fan_in, fan_out):
        bound = (6.0 / (fan_in + fan_out)) ** 0.5
        return jax.random.uniform(k, (fan_in, fan_out), jnp.float32,
                                  -bound, bound)

    k1, k2, k3, k4 = jax.random.split(key, 4)
    w1 = xavier(k1, d_in, H1); b1 = jnp.zeros((1, H1), jnp.float32)
    g1 = jnp.ones((1, H1), jnp.float32); be1 = jnp.zeros((1, H1), jnp.float32)
    w2 = xavier(k2, H1, H2);  b2 = jnp.zeros((1, H2), jnp.float32)
    g2 = jnp.ones((1, H2), jnp.float32); be2 = jnp.zeros((1, H2), jnp.float32)
    w3 = xavier(k3, H2, H3);  b3 = jnp.zeros((1, H3), jnp.float32)
    g3 = jnp.ones((1, H3), jnp.float32); be3 = jnp.zeros((1, H3), jnp.float32)
    w4 = xavier(k4, H3, 1);   b4 = jnp.zeros((1, 1), jnp.float32)
    return (w1, b1, g1, be1, w2, b2, g2, be2, w3, b3, g3, be3, w4, b4)


def critic_ref(state, action, params, matmul_dtype=jnp.float32):
    """Pure-JAX reference (direct transcription of the PyTorch forward).
    `matmul_dtype` emulates the kernel's matmul-input rounding for the check."""
    (w1, b1, g1, be1, w2, b2, g2, be2, w3, b3, g3, be3, w4, b4) = params
    cast = lambda t: t.astype(matmul_dtype).astype(jnp.float32)
    dot = lambda a, b: jnp.dot(a, b, precision=jax.lax.Precision.HIGHEST)
    x = jnp.concatenate([state, action], axis=1)

    def ln(h, g, b):
        mu = jnp.mean(h, axis=-1, keepdims=True)
        var = jnp.mean((h - mu) ** 2, axis=-1, keepdims=True)
        return (h - mu) / jnp.sqrt(var + LN_EPS) * g + b

    h = jnp.maximum(ln(dot(cast(x), cast(w1)) + b1, g1, be1), 0.0)
    h = jnp.maximum(ln(dot(cast(h), cast(w2)) + b2, g2, be2), 0.0)
    h = jnp.maximum(ln(dot(cast(h), cast(w3)) + b3, g3, be3), 0.0)
    return dot(h, w4) + b4


if __name__ == "__main__":
    key = jax.random.PRNGKey(0)
    k_params, k_state, k_action = jax.random.split(key, 3)

    # Small demo shapes; batch deliberately not a tile multiple to exercise the
    # padding path and produce a balanced 2-step (2x152) grid.
    batch, state_dim, action_dim = 300, 12, 4
    params = init_params(k_params, state_dim, action_dim)
    state = jax.random.normal(k_state, (batch, state_dim), jnp.float32)
    action = jax.random.normal(k_action, (batch, action_dim), jnp.float32)

    # One-time weight preparation (bf16 casts hoisted out of the hot path).
    kparams = prepare_params(params)
    fwd = jax.jit(lambda s, a: critic_forward(s, a, kparams, tile_b=512))

    q = jax.block_until_ready(fwd(state, action))

    # Reference with the same bf16 rounding on the matmul inputs (LN/accum f32).
    q_ref = critic_ref(state, action, params, matmul_dtype=jnp.bfloat16)
    assert q.shape == (batch, 1)
    assert bool(jnp.all(jnp.isfinite(q)))
    assert jnp.allclose(q, q_ref, atol=1e-2, rtol=1e-2)

    print("KERNEL_OK")
</pallas_src>

<mosaic_0001>
module attributes {stable_mosaic.version = 11 : i64} {
  func.func @critic_kernel(%arg0: i32, %arg1: memref<152x16xbf16, #tpu.memory_space<vmem>>, %arg2: memref<16x512xbf16, #tpu.memory_space<vmem>>, %arg3: memref<1x512xf32, #tpu.memory_space<vmem>>, %arg4: memref<1x512xf32, #tpu.memory_space<vmem>>, %arg5: memref<1x512xf32, #tpu.memory_space<vmem>>, %arg6: memref<512x512xbf16, #tpu.memory_space<vmem>>, %arg7: memref<1x512xf32, #tpu.memory_space<vmem>>, %arg8: memref<1x512xf32, #tpu.memory_space<vmem>>, %arg9: memref<1x512xf32, #tpu.memory_space<vmem>>, %arg10: memref<512x256xbf16, #tpu.memory_space<vmem>>, %arg11: memref<1x256xf32, #tpu.memory_space<vmem>>, %arg12: memref<1x256xf32, #tpu.memory_space<vmem>>, %arg13: memref<1x256xf32, #tpu.memory_space<vmem>>, %arg14: memref<1x256xf32, #tpu.memory_space<vmem>>, %arg15: memref<1x1xf32, #tpu.memory_space<vmem>>, %arg16: memref<152x1xf32, #tpu.memory_space<vmem>>) attributes {dimension_semantics = [#tpu.dimension_semantics<parallel>], iteration_bounds = array<i64: 2>, scalar_prefetch = 0 : i64, scratch_operands = 0 : i64, tpu.core_type = #tpu.core_type<tc>, window_params = [{transform_indices = @transform_0, window_bounds = array<i64: 152, 16>}, {pipeline_mode = #tpu.pipeline_mode<synchronous>, transform_indices = @transform_1, window_bounds = array<i64: 16, 512>}, {pipeline_mode = #tpu.pipeline_mode<synchronous>, transform_indices = @transform_2, window_bounds = array<i64: 1, 512>}, {pipeline_mode = #tpu.pipeline_mode<synchronous>, transform_indices = @transform_3, window_bounds = array<i64: 1, 512>}, {pipeline_mode = #tpu.pipeline_mode<synchronous>, transform_indices = @transform_4, window_bounds = array<i64: 1, 512>}, {pipeline_mode = #tpu.pipeline_mode<synchronous>, transform_indices = @transform_5, window_bounds = array<i64: 512, 512>}, {pipeline_mode = #tpu.pipeline_mode<synchronous>, transform_indices = @transform_6, window_bounds = array<i64: 1, 512>}, {pipeline_mode = #tpu.pipeline_mode<synchronous>, transform_indices = @transform_7, window_bounds = array<i64: 1, 512>}, {pipeline_mode = #tpu.pipeline_mode<synchronous>, transform_indices = @transform_8, window_bounds = array<i64: 1, 512>}, {pipeline_mode = #tpu.pipeline_mode<synchronous>, transform_indices = @transform_9, window_bounds = array<i64: 512, 256>}, {pipeline_mode = #tpu.pipeline_mode<synchronous>, transform_indices = @transform_10, window_bounds = array<i64: 1, 256>}, {pipeline_mode = #tpu.pipeline_mode<synchronous>, transform_indices = @transform_11, window_bounds = array<i64: 1, 256>}, {pipeline_mode = #tpu.pipeline_mode<synchronous>, transform_indices = @transform_12, window_bounds = array<i64: 1, 256>}, {pipeline_mode = #tpu.pipeline_mode<synchronous>, transform_indices = @transform_13, window_bounds = array<i64: 1, 256>}, {pipeline_mode = #tpu.pipeline_mode<synchronous>, transform_indices = @transform_14, window_bounds = array<i64: 1, 1>}, {transform_indices = @transform_15, window_bounds = array<i64: 152, 1>}]} {
    %c0 = arith.constant 0 : index
    %c0_0 = arith.constant 0 : index
    %0 = vector.load %arg1[%c0, %c0_0] : memref<152x16xbf16, #tpu.memory_space<vmem>>, vector<152x16xbf16>
    %c0_1 = arith.constant 0 : index
    %c0_2 = arith.constant 0 : index
    %1 = vector.load %arg2[%c0_1, %c0_2] : memref<16x512xbf16, #tpu.memory_space<vmem>>, vector<16x512xbf16>
    %cst = arith.constant dense<0.000000e+00> : vector<152x512xf32>
    %2 = tpu.matmul %0, %1, %cst {dimension_numbers = #tpu.dot_dimension_numbers<[1], [0], [0], [1], [0, 0, 1, 1], [], []>} : vector<152x16xbf16>, vector<16x512xbf16>, vector<152x512xf32> -> vector<152x512xf32>
    %c0_3 = arith.constant 0 : index
    %c0_4 = arith.constant 0 : index
    %3 = vector.load %arg3[%c0_3, %c0_4] : memref<1x512xf32, #tpu.memory_space<vmem>>, vector<1x512xf32>
    %4 = vector.broadcast %3 : vector<1x512xf32> to vector<152x512xf32>
    %5 = arith.addf %2, %4 : vector<152x512xf32>
    %c0_5 = arith.constant 0 : index
    %c0_6 = arith.constant 0 : index
    %6 = vector.load %arg4[%c0_5, %c0_6] : memref<1x512xf32, #tpu.memory_space<vmem>>, vector<1x512xf32>
    %c0_7 = arith.constant 0 : index
    %c0_8 = arith.constant 0 : index
    %7 = vector.load %arg5[%c0_7, %c0_8] : memref<1x512xf32, #tpu.memory_space<vmem>>, vector<1x512xf32>
    %cst_9 = arith.constant dense<0.000000e+00> : vector<152xf32>
    %8 = vector.multi_reduction <add>, %5, %cst_9 [1] : vector<152x512xf32> to vector<152xf32>
    %9 = vector.shape_cast %8 : vector<152xf32> to vector<152x1xf32>
    %cst_10 = arith.constant 5.120000e+02 : f32
    %10 = vector.broadcast %cst_10 : f32 to vector<152x1xf32>
    %11 = arith.divf %9, %10 : vector<152x1xf32>
    %12 = arith.mulf %5, %5 : vector<152x512xf32>
    %cst_11 = arith.constant dense<0.000000e+00> : vector<152xf32>
    %13 = vector.multi_reduction <add>, %12, %cst_11 [1] : vector<152x512xf32> to vector<152xf32>
    %14 = vector.shape_cast %13 : vector<152xf32> to vector<152x1xf32>
    %cst_12 = arith.constant 5.120000e+02 : f32
    %15 = vector.broadcast %cst_12 : f32 to vector<152x1xf32>
    %16 = arith.divf %14, %15 : vector<152x1xf32>
    %17 = arith.mulf %11, %11 : vector<152x1xf32>
    %18 = arith.subf %16, %17 : vector<152x1xf32>
    %cst_13 = arith.constant 0.000000e+00 : f32
    %19 = vector.broadcast %cst_13 : f32 to vector<152x1xf32>
    %20 = arith.maximumf %18, %19 : vector<152x1xf32>
    %21 = vector.broadcast %11 : vector<152x1xf32> to vector<152x512xf32>
    %22 = arith.subf %5, %21 : vector<152x512xf32>
    %cst_14 = arith.constant 9.99999974E-6 : f32
    %23 = vector.broadcast %cst_14 : f32 to vector<152x1xf32>
    %24 = arith.addf %20, %23 : vector<152x1xf32>
    %25 = math.rsqrt %24 : vector<152x1xf32>
    %26 = vector.broadcast %25 : vector<152x1xf32> to vector<152x512xf32>
    %27 = arith.mulf %22, %26 : vector<152x512xf32>
    %28 = arith.truncf %27 : vector<152x512xf32> to vector<152x512xbf16>
    %29 = arith.truncf %6 : vector<1x512xf32> to vector<1x512xbf16>
    %30 = vector.broadcast %29 : vector<1x512xbf16> to vector<152x512xbf16>
    %31 = arith.mulf %28, %30 : vector<152x512xbf16>
    %32 = arith.truncf %7 : vector<1x512xf32> to vector<1x512xbf16>
    %33 = vector.broadcast %32 : vector<1x512xbf16> to vector<152x512xbf16>
    %34 = arith.addf %31, %33 : vector<152x512xbf16>
    %cst_15 = arith.constant 0.000000e+00 : bf16
    %35 = vector.broadcast %cst_15 : bf16 to vector<152x512xbf16>
    %36 = arith.maximumf %34, %35 : vector<152x512xbf16>
    %c0_16 = arith.constant 0 : index
    %c0_17 = arith.constant 0 : index
    %37 = vector.load %arg6[%c0_16, %c0_17] : memref<512x512xbf16, #tpu.memory_space<vmem>>, vector<512x512xbf16>
    %cst_18 = arith.constant dense<0.000000e+00> : vector<152x512xf32>
    %38 = tpu.matmul %36, %37, %cst_18 {dimension_numbers = #tpu.dot_dimension_numbers<[1], [0], [0], [1], [0, 0, 1, 1], [], []>} : vector<152x512xbf16>, vector<512x512xbf16>, vector<152x512xf32> -> vector<152x512xf32>
    %c0_19 = arith.constant 0 : index
    %c0_20 = arith.constant 0 : index
    %39 = vector.load %arg7[%c0_19, %c0_20] : memref<1x512xf32, #tpu.memory_space<vmem>>, vector<1x512xf32>
    %40 = vector.broadcast %39 : vector<1x512xf32> to vector<152x512xf32>
    %41 = arith.addf %38, %40 : vector<152x512xf32>
    %c0_21 = arith.constant 0 : index
    %c0_22 = arith.constant 0 : index
    %42 = vector.load %arg8[%c0_21, %c0_22] : memref<1x512xf32, #tpu.memory_space<vmem>>, vector<1x512xf32>
    %c0_23 = arith.constant 0 : index
    %c0_24 = arith.constant 0 : index
    %43 = vector.load %arg9[%c0_23, %c0_24] : memref<1x512xf32, #tpu.memory_space<vmem>>, vector<1x512xf32>
    %cst_25 = arith.constant dense<0.000000e+00> : vector<152xf32>
    %44 = vector.multi_reduction <add>, %41, %cst_25 [1] : vector<152x512xf32> to vector<152xf32>
    %45 = vector.shape_cast %44 : vector<152xf32> to vector<152x1xf32>
    %cst_26 = arith.constant 5.120000e+02 : f32
    %46 = vector.broadcast %cst_26 : f32 to vector<152x1xf32>
    %47 = arith.divf %45, %46 : vector<152x1xf32>
    %48 = arith.mulf %41, %41 : vector<152x512xf32>
    %cst_27 = arith.constant dense<0.000000e+00> : vector<152xf32>
    %49 = vector.multi_reduction <add>, %48, %cst_27 [1] : vector<152x512xf32> to vector<152xf32>
    %50 = vector.shape_cast %49 : vector<152xf32> to vector<152x1xf32>
    %cst_28 = arith.constant 5.120000e+02 : f32
    %51 = vector.broadcast %cst_28 : f32 to vector<152x1xf32>
    %52 = arith.divf %50, %51 : vector<152x1xf32>
    %53 = arith.mulf %47, %47 : vector<152x1xf32>
    %54 = arith.subf %52, %53 : vector<152x1xf32>
    %cst_29 = arith.constant 0.000000e+00 : f32
    %55 = vector.broadcast %cst_29 : f32 to vector<152x1xf32>
    %56 = arith.maximumf %54, %55 : vector<152x1xf32>
    %57 = vector.broadcast %47 : vector<152x1xf32> to vector<152x512xf32>
    %58 = arith.subf %41, %57 : vector<152x512xf32>
    %cst_30 = arith.constant 9.99999974E-6 : f32
    %59 = vector.broadcast %cst_30 : f32 to vector<152x1xf32>
    %60 = arith.addf %56, %59 : vector<152x1xf32>
    %61 = math.rsqrt %60 : vector<152x1xf32>
    %62 = vector.broadcast %61 : vector<152x1xf32> to vector<152x512xf32>
    %63 = arith.mulf %58, %62 : vector<152x512xf32>
    %64 = arith.truncf %63 : vector<152x512xf32> to vector<152x512xbf16>
    %65 = arith.truncf %42 : vector<1x512xf32> to vector<1x512xbf16>
    %66 = vector.broadcast %65 : vector<1x512xbf16> to vector<152x512xbf16>
    %67 = arith.mulf %64, %66 : vector<152x512xbf16>
    %68 = arith.truncf %43 : vector<1x512xf32> to vector<1x512xbf16>
    %69 = vector.broadcast %68 : vector<1x512xbf16> to vector<152x512xbf16>
    %70 = arith.addf %67, %69 : vector<152x512xbf16>
    %cst_31 = arith.constant 0.000000e+00 : bf16
    %71 = vector.broadcast %cst_31 : bf16 to vector<152x512xbf16>
    %72 = arith.maximumf %70, %71 : vector<152x512xbf16>
    %c0_32 = arith.constant 0 : index
    %c0_33 = arith.constant 0 : index
    %73 = vector.load %arg10[%c0_32, %c0_33] : memref<512x256xbf16, #tpu.memory_space<vmem>>, vector<512x256xbf16>
    %cst_34 = arith.constant dense<0.000000e+00> : vector<152x256xf32>
    %74 = tpu.matmul %72, %73, %cst_34 {dimension_numbers = #tpu.dot_dimension_numbers<[1], [0], [0], [1], [0, 0, 1, 1], [], []>} : vector<152x512xbf16>, vector<512x256xbf16>, vector<152x256xf32> -> vector<152x256xf32>
    %c0_35 = arith.constant 0 : index
    %c0_36 = arith.constant 0 : index
    %75 = vector.load %arg11[%c0_35, %c0_36] : memref<1x256xf32, #tpu.memory_space<vmem>>, vector<1x256xf32>
    %76 = vector.broadcast %75 : vector<1x256xf32> to vector<152x256xf32>
    %77 = arith.addf %74, %76 : vector<152x256xf32>
    %c0_37 = arith.constant 0 : index
    %c0_38 = arith.constant 0 : index
    %78 = vector.load %arg12[%c0_37, %c0_38] : memref<1x256xf32, #tpu.memory_space<vmem>>, vector<1x256xf32>
    %c0_39 = arith.constant 0 : index
    %c0_40 = arith.constant 0 : index
    %79 = vector.load %arg13[%c0_39, %c0_40] : memref<1x256xf32, #tpu.memory_space<vmem>>, vector<1x256xf32>
    %cst_41 = arith.constant dense<0.000000e+00> : vector<152xf32>
    %80 = vector.multi_reduction <add>, %77, %cst_41 [1] : vector<152x256xf32> to vector<152xf32>
    %81 = vector.shape_cast %80 : vector<152xf32> to vector<152x1xf32>
    %cst_42 = arith.constant 2.560000e+02 : f32
    %82 = vector.broadcast %cst_42 : f32 to vector<152x1xf32>
    %83 = arith.divf %81, %82 : vector<152x1xf32>
    %84 = arith.mulf %77, %77 : vector<152x256xf32>
    %cst_43 = arith.constant dense<0.000000e+00> : vector<152xf32>
    %85 = vector.multi_reduction <add>, %84, %cst_43 [1] : vector<152x256xf32> to vector<152xf32>
    %86 = vector.shape_cast %85 : vector<152xf32> to vector<152x1xf32>
    %cst_44 = arith.constant 2.560000e+02 : f32
    %87 = vector.broadcast %cst_44 : f32 to vector<152x1xf32>
    %88 = arith.divf %86, %87 : vector<152x1xf32>
    %89 = arith.mulf %83, %83 : vector<152x1xf32>
    %90 = arith.subf %88, %89 : vector<152x1xf32>
    %cst_45 = arith.constant 0.000000e+00 : f32
    %91 = vector.broadcast %cst_45 : f32 to vector<152x1xf32>
    %92 = arith.maximumf %90, %91 : vector<152x1xf32>
    %93 = vector.broadcast %83 : vector<152x1xf32> to vector<152x256xf32>
    %94 = arith.subf %77, %93 : vector<152x256xf32>
    %cst_46 = arith.constant 9.99999974E-6 : f32
    %95 = vector.broadcast %cst_46 : f32 to vector<152x1xf32>
    %96 = arith.addf %92, %95 : vector<152x1xf32>
    %97 = math.rsqrt %96 : vector<152x1xf32>
    %98 = vector.broadcast %97 : vector<152x1xf32> to vector<152x256xf32>
    %99 = arith.mulf %94, %98 : vector<152x256xf32>
    %100 = vector.broadcast %78 : vector<1x256xf32> to vector<152x256xf32>
    %101 = arith.mulf %99, %100 : vector<152x256xf32>
    %102 = vector.broadcast %79 : vector<1x256xf32> to vector<152x256xf32>
    %103 = arith.addf %101, %102 : vector<152x256xf32>
    %cst_47 = arith.constant 0.000000e+00 : f32
    %104 = vector.broadcast %cst_47 : f32 to vector<152x256xf32>
    %105 = arith.maximumf %103, %104 : vector<152x256xf32>
    %c0_48 = arith.constant 0 : index
    %c0_49 = arith.constant 0 : index
    %106 = vector.load %arg14[%c0_48, %c0_49] : memref<1x256xf32, #tpu.memory_space<vmem>>, vector<1x256xf32>
    %107 = vector.broadcast %106 : vector<1x256xf32> to vector<152x256xf32>
    %108 = arith.mulf %105, %107 : vector<152x256xf32>
    %cst_50 = arith.constant dense<0.000000e+00> : vector<152xf32>
    %109 = vector.multi_reduction <add>, %108, %cst_50 [1] : vector<152x256xf32> to vector<152xf32>
    %110 = vector.shape_cast %109 : vector<152xf32> to vector<152x1xf32>
    %c0_51 = arith.constant 0 : index
    %c0_52 = arith.constant 0 : index
    %111 = vector.load %arg15[%c0_51, %c0_52] : memref<1x1xf32, #tpu.memory_space<vmem>>, vector<1x1xf32>
    %112 = vector.broadcast %111 : vector<1x1xf32> to vector<152x1xf32>
    %113 = arith.addf %110, %112 : vector<152x1xf32>
    %c0_53 = arith.constant 0 : index
    %c0_54 = arith.constant 0 : index
    %114 = vector.load %arg16[%c0_53, %c0_54] : memref<152x1xf32, #tpu.memory_space<vmem>>, vector<152x1xf32>
    tpu.vector_store %arg16[%c0_53, %c0_54], %113 {strides = array<i32>} : memref<152x1xf32, #tpu.memory_space<vmem>>, vector<152x1xf32>,
    return
  }
  func.func @transform_0(%arg0: i32) -> (i32, i32) {
    %c0_i32 = arith.constant 0 : i32
    %c0_i32_0 = arith.constant 0 : i32
    return %arg0, %c0_i32 : i32, i32
  }
  func.func @transform_1(%arg0: i32) -> (i32, i32) {
    %c0_i32 = arith.constant 0 : i32
    %c0_i32_0 = arith.constant 0 : i32
    %c0_i32_1 = arith.constant 0 : i32
    return %c0_i32, %c0_i32_0 : i32, i32
  }
  func.func @transform_2(%arg0: i32) -> (i32, i32) {
    %c0_i32 = arith.constant 0 : i32
    %c0_i32_0 = arith.constant 0 : i32
    %c0_i32_1 = arith.constant 0 : i32
    return %c0_i32, %c0_i32_0 : i32, i32
  }
  func.func @transform_3(%arg0: i32) -> (i32, i32) {
    %c0_i32 = arith.constant 0 : i32
    %c0_i32_0 = arith.constant 0 : i32
    %c0_i32_1 = arith.constant 0 : i32
    return %c0_i32, %c0_i32_0 : i32, i32
  }
  func.func @transform_4(%arg0: i32) -> (i32, i32) {
    %c0_i32 = arith.constant 0 : i32
    %c0_i32_0 = arith.constant 0 : i32
    %c0_i32_1 = arith.constant 0 : i32
    return %c0_i32, %c0_i32_0 : i32, i32
  }
  func.func @transform_5(%arg0: i32) -> (i32, i32) {
    %c0_i32 = arith.constant 0 : i32
    %c0_i32_0 = arith.constant 0 : i32
    %c0_i32_1 = arith.constant 0 : i32
    return %c0_i32, %c0_i32_0 : i32, i32
  }
  func.func @transform_6(%arg0: i32) -> (i32, i32) {
    %c0_i32 = arith.constant 0 : i32
    %c0_i32_0 = arith.constant 0 : i32
    %c0_i32_1 = arith.constant 0 : i32
    return %c0_i32, %c0_i32_0 : i32, i32
  }
  func.func @transform_7(%arg0: i32) -> (i32, i32) {
    %c0_i32 = arith.constant 0 : i32
    %c0_i32_0 = arith.constant 0 : i32
    %c0_i32_1 = arith.constant 0 : i32
    return %c0_i32, %c0_i32_0 : i32, i32
  }
  func.func @transform_8(%arg0: i32) -> (i32, i32) {
    %c0_i32 = arith.constant 0 : i32
    %c0_i32_0 = arith.constant 0 : i32
    %c0_i32_1 = arith.constant 0 : i32
    return %c0_i32, %c0_i32_0 : i32, i32
  }
  func.func @transform_9(%arg0: i32) -> (i32, i32) {
    %c0_i32 = arith.constant 0 : i32
    %c0_i32_0 = arith.constant 0 : i32
    %c0_i32_1 = arith.constant 0 : i32
    return %c0_i32, %c0_i32_0 : i32, i32
  }
  func.func @transform_10(%arg0: i32) -> (i32, i32) {
    %c0_i32 = arith.constant 0 : i32
    %c0_i32_0 = arith.constant 0 : i32
    %c0_i32_1 = arith.constant 0 : i32
    return %c0_i32, %c0_i32_0 : i32, i32
  }
  func.func @transform_11(%arg0: i32) -> (i32, i32) {
    %c0_i32 = arith.constant 0 : i32
    %c0_i32_0 = arith.constant 0 : i32
    %c0_i32_1 = arith.constant 0 : i32
    return %c0_i32, %c0_i32_0 : i32, i32
  }
  func.func @transform_12(%arg0: i32) -> (i32, i32) {
    %c0_i32 = arith.constant 0 : i32
    %c0_i32_0 = arith.constant 0 : i32
    %c0_i32_1 = arith.constant 0 : i32
    return %c0_i32, %c0_i32_0 : i32, i32
  }
  func.func @transform_13(%arg0: i32) -> (i32, i32) {
    %c0_i32 = arith.constant 0 : i32
    %c0_i32_0 = arith.constant 0 : i32
    %c0_i32_1 = arith.constant 0 : i32
    return %c0_i32, %c0_i32_0 : i32, i32
  }
  func.func @transform_14(%arg0: i32) -> (i32, i32) {
    %c0_i32 = arith.constant 0 : i32
    %c0_i32_0 = arith.constant 0 : i32
    %c0_i32_1 = arith.constant 0 : i32
    return %c0_i32, %c0_i32_0 : i32, i32
  }
  func.func @transform_15(%arg0: i32) -> (i32, i32) {
    %c0_i32 = arith.constant 0 : i32
    %c0_i32_0 = arith.constant 0 : i32
    return %arg0, %c0_i32 : i32, i32
  }
}

</mosaic_0001>

<llo_original>
// kernel: _lambda_.1
$region0: #{_lambda_.1}
  #allocation0 [shape = 'u32[]', space=smem, size = 0x4, offset = 0x4, fixed_abs, tag = 'smem constant byte address 0x4 - core index']
  #allocation1 [shape = 'u32[144,128]{1,0:T(1,128)}', space=vmem, size = 0x12000, scoped, tag = 'internal scratch']
  #allocation2 [shape = 'f32[1,1]{1,0:T(1,128)S(1)}', space=vmem, size = 0x200, scoped, tag = 'scoped memory for _lambda_.1']
  %s0 = inlined_call_operand.vmem [shape: bf16[304,16], index: 0, kind: input, shape index: {}]
  %s1 = inlined_call_operand.vmem [shape: bf16[16,512], index: 1, kind: input, shape index: {}]
  %s2 = inlined_call_operand.vmem [shape: f32[1,512], index: 2, kind: input, shape index: {}, may-alias: {2,4,6,8}]
  %s3 = inlined_call_operand.vmem [shape: f32[1,512], index: 3, kind: input, shape index: {}, may-alias: {3,7}]
  %s4 = inlined_call_operand.vmem [shape: f32[1,512], index: 4, kind: input, shape index: {}, may-alias: {2,4,6,8}]
  %s5 = inlined_call_operand.hbm [shape: bf16[512,512], index: 5, kind: input, shape index: {}]
  %s6 = inlined_call_operand.vmem [shape: f32[1,512], index: 6, kind: input, shape index: {}, may-alias: {2,4,6,8}]
  %s7 = inlined_call_operand.vmem [shape: f32[1,512], index: 7, kind: input, shape index: {}, may-alias: {3,7}]
  %s8 = inlined_call_operand.vmem [shape: f32[1,512], index: 8, kind: input, shape index: {}, may-alias: {2,4,6,8}]
  %s9 = inlined_call_operand.vmem [shape: bf16[512,256], index: 9, kind: input, shape index: {}]
  %s10 = inlined_call_operand.vmem [shape: f32[1,256], index: 10, kind: input, shape index: {}, may-alias: {10,12}]
  %s11 = inlined_call_operand.vmem [shape: f32[1,256], index: 11, kind: input, shape index: {}]
  %s12 = inlined_call_operand.vmem [shape: f32[1,256], index: 12, kind: input, shape index: {}, may-alias: {10,12}]
  %s13 = inlined_call_operand.vmem [shape: f32[1,256], index: 13, kind: input, shape index: {}]
  %s14 = inlined_call_operand.<no memory space> [shape: f32[1,1], index: 14, kind: input, shape index: {}]
  %s15 = inlined_call_operand.vmem [shape: f32[304,1], index: 15, kind: output, shape index: {}]
  %s16 = sld [smem:[#allocation0]]
  $region97: #{_lambda_.1} parent=0
    _
  %s18 = ssub.s32 1, %s16
  %s19 = scalar_select 0, %s18, %s16
  %v20 = vstv %s14
  %21 = vst [vmem:[#allocation2] sm:$0x1] %v20
  $region1: #{_lambda_.1} parent=0
    #allocation3 [shape = 'u8[524288]{0}', space=vmem, size = 0x80000, scoped, tag = 'input window, operand 5, single buffered']
    #allocation4 [shape = 's32[2]{0}', space=sflag, size = 0x8, scoped, tag = 'scoped memory for _lambda_.1']
    %22 = vsyncpa [#allocation4], 0
    loop: start=0, step=1, limit=4
    $region2: #{_lambda_.1} parent=1 // loop_pre_header
      _
    $region3: #{_lambda_.1} parent=1 // loop_header
      %s24 = sphi 0, %s28
      %p25 = scmp.ge.s32.totalorder %s24, 4
      %s34 = sphi 0, %s36
      %s37 = sphi 0, %s34
      %s38 = sphi 0, %s37
      %s54 = sphi 0, %s38
      %s58 = sphi 0, %s58
      %s60 = sphi 0, %s58
      %s61 = sphi 0, %s60
      %s75 = sphi 0, %s61
      %s79 = sphi 0, %s79
      %s81 = sphi 0, %s79
      %s82 = sphi 0, %s81
      %s96 = sphi 0, %s82
      %s100 = sphi 0, %s100
      %s102 = sphi 0, %s100
      %s103 = sphi 0, %s102
      %s117 = sphi 0, %s103
      %s121 = sphi 0, %s121
      %s123 = sphi 0, %s121
      %s124 = sphi 0, %s123
      %s138 = sphi 0, %s124
      %s142 = sphi 0, %s142
      %s144 = sphi 0, %s142
      %s145 = sphi 0, %s144
      %s159 = sphi 0, %s145
      %s163 = sphi 0, %s163
      %s165 = sphi 0, %s163
      %s166 = sphi 0, %s165
      %s180 = sphi 0, %s166
      %s184 = sphi 0, %s184
      %s186 = sphi 0, %s184
      %s187 = sphi 0, %s186
      %s201 = sphi 0, %s187
      %s205 = sphi 0, %s205
      %s207 = sphi 0, %s205
      %s208 = sphi 0, %s207
      %s222 = sphi 0, %s208
      %s226 = sphi 0, %s226
      %s228 = sphi 0, %s226
      %s229 = sphi 0, %s228
      %s243 = sphi 0, %s229
      %s247 = sphi 0, %s247
      %s249 = sphi 0, %s247
      %s250 = sphi 0, %s249
      %s264 = sphi 0, %s250
      %s268 = sphi 0, %s268
      %s270 = sphi 0, %s268
      %s271 = sphi 0, %s270
      %s285 = sphi 0, %s271
      %s289 = sphi 0, %s289
      %s291 = sphi 0, %s289
      %s292 = sphi 0, %s291
      %s306 = sphi 0, %s292
      %s310 = sphi 0, %s310
      %s312 = sphi 0, %s310
      %s313 = sphi 0, %s312
      %s327 = sphi 0, %s313
      %s331 = sphi 0, %s331
      %s333 = sphi 0, %s331
      %s334 = sphi 0, %s333
      %s348 = sphi 0, %s334
      %s354 = sphi 0, %s356
      %s357 = sphi 0, %s354
      %s358 = sphi 0, %s357
      %s374 = sphi 0, %s358
    $region4: #{_lambda_.1} parent=1 // loop_header_branch
      %27 = sbr.rel (%p25) target = $region8
    $region5: #{_lambda_.1} parent=1 // loop_body
      %s29 = ssub.s32 %s24, 1
      %s30 = ssub.s32 %s24, 2
      %s31 = sadd.s32 %s24, 1
      %s32 = ssub.s32 %s24, %s31
      %p33 = scmp.eq.s32.totalorder %s32, 0
      %s35 = sadd.s32 %s34, 1
      %s36 = scalar_select %p33, %s34, %s35
      %p39 = pneg %p33
      %p40 = scmp.eq.s32.totalorder %s24, 1
      %p41 = por %p39, %p40
      %p42 = scmp.ne.s32.totalorder %s34, %s37
      %p43 = scmp.eq.s32.totalorder %s24, 0
      %p44 = por %p42, %p43
      %p45 = scmp.ne.s32.totalorder %s34, %s37
      %p46 = scmp.eq.s32.totalorder %s29, 1
      %p47 = por %p45, %p46
      %p48 = scmp.ne.s32.totalorder %s37, %s38
      %p49 = scmp.eq.s32.totalorder %s29, 0
      %p50 = por %p48, %p49
      %p51 = scmp.ne.s32.totalorder %s37, %s38
      %p52 = scmp.eq.s32.totalorder %s30, 1
      %p53 = por %p51, %p52
      %p55 = scmp.ne.s32.totalorder %s38, %s54
      %p56 = scmp.eq.s32.totalorder %s30, 0
      %p57 = por %p55, %p56
      %s59 = sadd.s32 %s58, 1
      %p62 = scmp.eq.s32.totalorder %s24, 1
      %p63 = scmp.ne.s32.totalorder %s58, %s60
      %p64 = scmp.eq.s32.totalorder %s24, 0
      %p65 = por %p63, %p64
      %p66 = scmp.ne.s32.totalorder %s58, %s60
      %p67 = scmp.eq.s32.totalorder %s29, 1
      %p68 = por %p66, %p67
      %p69 = scmp.ne.s32.totalorder %s60, %s61
      %p70 = scmp.eq.s32.totalorder %s29, 0
      %p71 = por %p69, %p70
      %p72 = scmp.ne.s32.totalorder %s60, %s61
      %p73 = scmp.eq.s32.totalorder %s30, 1
      %p74 = por %p72, %p73
      %p76 = scmp.ne.s32.totalorder %s61, %s75
      %p77 = scmp.eq.s32.totalorder %s30, 0
      %p78 = por %p76, %p77
      %s80 = sadd.s32 %s79, 1
      %p83 = scmp.eq.s32.totalorder %s24, 1
      %p84 = scmp.ne.s32.totalorder %s79, %s81
      %p85 = scmp.eq.s32.totalorder %s24, 0
      %p86 = por %p84, %p85
      %p87 = scmp.ne.s32.totalorder %s79, %s81
      %p88 = scmp.eq.s32.totalorder %s29, 1
      %p89 = por %p87, %p88
      %p90 = scmp.ne.s32.totalorder %s81, %s82
      %p91 = scmp.eq.s32.totalorder %s29, 0
      %p92 = por %p90, %p91
      %p93 = scmp.ne.s32.totalorder %s81, %s82
      %p94 = scmp.eq.s32.totalorder %s30, 1
      %p95 = por %p93, %p94
      %p97 = scmp.ne.s32.totalorder %s82, %s96
      %p98 = scmp.eq.s32.totalorder %s30, 0
      %p99 = por %p97, %p98
      %s101 = sadd.s32 %s100, 1
      %p104 = scmp.eq.s32.totalorder %s24, 1
      %p105 = scmp.ne.s32.totalorder %s100, %s102
      %p106 = scmp.eq.s32.totalorder %s24, 0
      %p107 = por %p105, %p106
      %p108 = scmp.ne.s32.totalorder %s100, %s102
      %p109 = scmp.eq.s32.totalorder %s29, 1
      %p110 = por %p108, %p109
      %p111 = scmp.ne.s32.totalorder %s102, %s103
      %p112 = scmp.eq.s32.totalorder %s29, 0
      %p113 = por %p111, %p112
      %p114 = scmp.ne.s32.totalorder %s102, %s103
      %p115 = scmp.eq.s32.totalorder %s30, 1
      %p116 = por %p114, %p115
      %p118 = scmp.ne.s32.totalorder %s103, %s117
      %p119 = scmp.eq.s32.totalorder %s30, 0
      %p120 = por %p118, %p119
      %s122 = sadd.s32 %s121, 1
      %p125 = scmp.eq.s32.totalorder %s24, 1
      %p126 = scmp.ne.s32.totalorder %s121, %s123
      %p127 = scmp.eq.s32.totalorder %s24, 0
      %p128 = por %p126, %p127
      %p129 = scmp.ne.s32.totalorder %s121, %s123
      %p130 = scmp.eq.s32.totalorder %s29, 1
      %p131 = por %p129, %p130
      %p132 = scmp.ne.s32.totalorder %s123, %s124
      %p133 = scmp.eq.s32.totalorder %s29, 0
      %p134 = por %p132, %p133
      %p135 = scmp.ne.s32.totalorder %s123, %s124
      %p136 = scmp.eq.s32.totalorder %s30, 1
      %p137 = por %p135, %p136
      %p139 = scmp.ne.s32.totalorder %s124, %s138
      %p140 = scmp.eq.s32.totalorder %s30, 0
      %p141 = por %p139, %p140
      %s143 = sadd.s32 %s142, 1
      %p146 = scmp.eq.s32.totalorder %s24, 1
      %p147 = scmp.ne.s32.totalorder %s142, %s144
      %p148 = scmp.eq.s32.totalorder %s24, 0
      %p149 = por %p147, %p148
      %p150 = scmp.ne.s32.totalorder %s142, %s144
      %p151 = scmp.eq.s32.totalorder %s29, 1
      %p152 = por %p150, %p151
      %p153 = scmp.ne.s32.totalorder %s144, %s145
      %p154 = scmp.eq.s32.totalorder %s29, 0
      %p155 = por %p153, %p154
      %p156 = scmp.ne.s32.totalorder %s144, %s145
      %p157 = scmp.eq.s32.totalorder %s30, 1
      %p158 = por %p156, %p157
      %p160 = scmp.ne.s32.totalorder %s145, %s159
      %p161 = scmp.eq.s32.totalorder %s30, 0
      %p162 = por %p160, %p161
      %s164 = sadd.s32 %s163, 1
      %p167 = scmp.eq.s32.totalorder %s24, 1
      %p168 = scmp.ne.s32.totalorder %s163, %s165
      %p169 = scmp.eq.s32.totalorder %s24, 0
      %p170 = por %p168, %p169
      %p171 = scmp.ne.s32.totalorder %s163, %s165
      %p172 = scmp.eq.s32.totalorder %s29, 1
      %p173 = por %p171, %p172
      %p174 = scmp.ne.s32.totalorder %s165, %s166
      %p175 = scmp.eq.s32.totalorder %s29, 0
      %p176 = por %p174, %p175
      %p177 = scmp.ne.s32.totalorder %s165, %s166
      %p178 = scmp.eq.s32.totalorder %s30, 1
      %p179 = por %p177, %p178
      %p181 = scmp.ne.s32.totalorder %s166, %s180
      %p182 = scmp.eq.s32.totalorder %s30, 0
      %p183 = por %p181, %p182
      %s185 = sadd.s32 %s184, 1
      %p188 = scmp.eq.s32.totalorder %s24, 1
      %p189 = scmp.ne.s32.totalorder %s184, %s186
      %p190 = scmp.eq.s32.totalorder %s24, 0
      %p191 = por %p189, %p190
      %p192 = scmp.ne.s32.totalorder %s184, %s186
      %p193 = scmp.eq.s32.totalorder %s29, 1
      %p194 = por %p192, %p193
      %p195 = scmp.ne.s32.totalorder %s186, %s187
      %p196 = scmp.eq.s32.totalorder %s29, 0
      %p197 = por %p195, %p196
      %p198 = scmp.ne.s32.totalorder %s186, %s187
      %p199 = scmp.eq.s32.totalorder %s30, 1
      %p200 = por %p198, %p199
      %p202 = scmp.ne.s32.totalorder %s187, %s201
      %p203 = scmp.eq.s32.totalorder %s30, 0
      %p204 = por %p202, %p203
      %s206 = sadd.s32 %s205, 1
      %p209 = scmp.eq.s32.totalorder %s24, 1
      %p210 = scmp.ne.s32.totalorder %s205, %s207
      %p211 = scmp.eq.s32.totalorder %s24, 0
      %p212 = por %p210, %p211
      %p213 = scmp.ne.s32.totalorder %s205, %s207
      %p214 = scmp.eq.s32.totalorder %s29, 1
      %p215 = por %p213, %p214
      %p216 = scmp.ne.s32.totalorder %s207, %s208
      %p217 = scmp.eq.s32.totalorder %s29, 0
      %p218 = por %p216, %p217
      %p219 = scmp.ne.s32.totalorder %s207, %s208
      %p220 = scmp.eq.s32.totalorder %s30, 1
      %p221 = por %p219, %p220
      %p223 = scmp.ne.s32.totalorder %s208, %s222
      %p224 = scmp.eq.s32.totalorder %s30, 0
      %p225 = por %p223, %p224
      %s227 = sadd.s32 %s226, 1
      %p230 = scmp.eq.s32.totalorder %s24, 1
      %p231 = scmp.ne.s32.totalorder %s226, %s228
      %p232 = scmp.eq.s32.totalorder %s24, 0
      %p233 = por %p231, %p232
      %p234 = scmp.ne.s32.totalorder %s226, %s228
      %p235 = scmp.eq.s32.totalorder %s29, 1
      %p236 = por %p234, %p235
      %p237 = scmp.ne.s32.totalorder %s228, %s229
      %p238 = scmp.eq.s32.totalorder %s29, 0
      %p239 = por %p237, %p238
      %p240 = scmp.ne.s32.totalorder %s228, %s229
      %p241 = scmp.eq.s32.totalorder %s30, 1
      %p242 = por %p240, %p241
      %p244 = scmp.ne.s32.totalorder %s229, %s243
      %p245 = scmp.eq.s32.totalorder %s30, 0
      %p246 = por %p244, %p245
      %s248 = sadd.s32 %s247, 1
      %p251 = scmp.eq.s32.totalorder %s24, 1
      %p252 = scmp.ne.s32.totalorder %s247, %s249
      %p253 = scmp.eq.s32.totalorder %s24, 0
      %p254 = por %p252, %p253
      %p255 = scmp.ne.s32.totalorder %s247, %s249
      %p256 = scmp.eq.s32.totalorder %s29, 1
      %p257 = por %p255, %p256
      %p258 = scmp.ne.s32.totalorder %s249, %s250
      %p259 = scmp.eq.s32.totalorder %s29, 0
      %p260 = por %p258, %p259
      %p261 = scmp.ne.s32.totalorder %s249, %s250
      %p262 = scmp.eq.s32.totalorder %s30, 1
      %p263 = por %p261, %p262
      %p265 = scmp.ne.s32.totalorder %s250, %s264
      %p266 = scmp.eq.s32.totalorder %s30, 0
      %p267 = por %p265, %p266
      %s269 = sadd.s32 %s268, 1
      %p272 = scmp.eq.s32.totalorder %s24, 1
      %p273 = scmp.ne.s32.totalorder %s268, %s270
      %p274 = scmp.eq.s32.totalorder %s24, 0
      %p275 = por %p273, %p274
      %p276 = scmp.ne.s32.totalorder %s268, %s270
      %p277 = scmp.eq.s32.totalorder %s29, 1
      %p278 = por %p276, %p277
      %p279 = scmp.ne.s32.totalorder %s270, %s271
      %p280 = scmp.eq.s32.totalorder %s29, 0
      %p281 = por %p279, %p280
      %p282 = scmp.ne.s32.totalorder %s270, %s271
      %p283 = scmp.eq.s32.totalorder %s30, 1
      %p284 = por %p282, %p283
      %p286 = scmp.ne.s32.totalorder %s271, %s285
      %p287 = scmp.eq.s32.totalorder %s30, 0
      %p288 = por %p286, %p287
      %s290 = sadd.s32 %s289, 1
      %p293 = scmp.eq.s32.totalorder %s24, 1
      %p294 = scmp.ne.s32.totalorder %s289, %s291
      %p295 = scmp.eq.s32.totalorder %s24, 0
      %p296 = por %p294, %p295
      %p297 = scmp.ne.s32.totalorder %s289, %s291
      %p298 = scmp.eq.s32.totalorder %s29, 1
      %p299 = por %p297, %p298
      %p300 = scmp.ne.s32.totalorder %s291, %s292
      %p301 = scmp.eq.s32.totalorder %s29, 0
      %p302 = por %p300, %p301
      %p303 = scmp.ne.s32.totalorder %s291, %s292
      %p304 = scmp.eq.s32.totalorder %s30, 1
      %p305 = por %p303, %p304
      %p307 = scmp.ne.s32.totalorder %s292, %s306
      %p308 = scmp.eq.s32.totalorder %s30, 0
      %p309 = por %p307, %p308
      %s311 = sadd.s32 %s310, 1
      %p314 = scmp.eq.s32.totalorder %s24, 1
      %p315 = scmp.ne.s32.totalorder %s310, %s312
      %p316 = scmp.eq.s32.totalorder %s24, 0
      %p317 = por %p315, %p316
      %p318 = scmp.ne.s32.totalorder %s310, %s312
      %p319 = scmp.eq.s32.totalorder %s29, 1
      %p320 = por %p318, %p319
      %p321 = scmp.ne.s32.totalorder %s312, %s313
      %p322 = scmp.eq.s32.totalorder %s29, 0
      %p323 = por %p321, %p322
      %p324 = scmp.ne.s32.totalorder %s312, %s313
      %p325 = scmp.eq.s32.totalorder %s30, 1
      %p326 = por %p324, %p325
      %p328 = scmp.ne.s32.totalorder %s313, %s327
      %p329 = scmp.eq.s32.totalorder %s30, 0
      %p330 = por %p328, %p329
      %s332 = sadd.s32 %s331, 1
      %p335 = scmp.eq.s32.totalorder %s24, 1
      %p336 = scmp.ne.s32.totalorder %s331, %s333
      %p337 = scmp.eq.s32.totalorder %s24, 0
      %p338 = por %p336, %p337
      %p339 = scmp.ne.s32.totalorder %s331, %s333
      %p340 = scmp.eq.s32.totalorder %s29, 1
      %p341 = por %p339, %p340
      %p342 = scmp.ne.s32.totalorder %s333, %s334
      %p343 = scmp.eq.s32.totalorder %s29, 0
      %p344 = por %p342, %p343
      %p345 = scmp.ne.s32.totalorder %s333, %s334
      %p346 = scmp.eq.s32.totalorder %s30, 1
      %p347 = por %p345, %p346
      %p349 = scmp.ne.s32.totalorder %s334, %s348
      %p350 = scmp.eq.s32.totalorder %s30, 0
      %p351 = por %p349, %p350
      %s352 = ssub.s32 %s24, %s31
      %p353 = scmp.eq.s32.totalorder %s352, 0
      %s355 = sadd.s32 %s354, 1
      %s356 = scalar_select %p353, %s354, %s355
      %p359 = pneg %p353
      %p360 = scmp.eq.s32.totalorder %s24, 1
      %p361 = por %p359, %p360
      %p362 = scmp.ne.s32.totalorder %s354, %s357
      %p363 = scmp.eq.s32.totalorder %s24, 0
      %p364 = por %p362, %p363
      %p365 = scmp.ne.s32.totalorder %s354, %s357
      %p366 = scmp.eq.s32.totalorder %s29, 1
      %p367 = por %p365, %p366
      %p368 = scmp.ne.s32.totalorder %s357, %s358
      %p369 = scmp.eq.s32.totalorder %s29, 0
      %p370 = por %p368, %p369
      %p371 = scmp.ne.s32.totalorder %s357, %s358
      %p372 = scmp.eq.s32.totalorder %s30, 1
      %p373 = por %p371, %p372
      %p375 = scmp.ne.s32.totalorder %s358, %s374
      %p376 = scmp.eq.s32.totalorder %s30, 0
      %p377 = por %p375, %p376
      %p378 = scmp.le.s32.totalorder 1, %s24
      %p379 = scmp.lt.s32.totalorder %s24, 3
      %p380 = pnand %p378, %p379
      %p381 = pneg %p380
      // Predicated region
      $region9: #{_lambda_.1} parent=5 // pred_check
        _
      $region10: #{_lambda_.1} parent=5 // pred_check_branch
        %383 = sbr.rel (%p380) target = $region12
      $region11: #{_lambda_.1} parent=5 // pred_region
        %s384 = ssub.s32 %s24, 1
        // Predicated region
        $region13: #{_lambda_.1} parent=11 // pred_check
          %p385 = pneg %p71
        $region14: #{_lambda_.1} parent=11 // pred_check_branch
          %387 = sbr.rel (%p385) target = $region16
        $region15: #{_lambda_.1} parent=11 // pred_region
          _
        $region16: #{_lambda_.1} parent=11 // pred_fallthru
          _
        // Predicated region
        $region17: #{_lambda_.1} parent=11 // pred_check
          %p388 = pneg %p92
        $region18: #{_lambda_.1} parent=11 // pred_check_branch
          %390 = sbr.rel (%p388) target = $region20
        $region19: #{_lambda_.1} parent=11 // pred_region
          _
        $region20: #{_lambda_.1} parent=11 // pred_fallthru
          _
        // Predicated region
        $region21: #{_lambda_.1} parent=11 // pred_check
          %p391 = pneg %p113
        $region22: #{_lambda_.1} parent=11 // pred_check_branch
          %393 = sbr.rel (%p391) target = $region24
        $region23: #{_lambda_.1} parent=11 // pred_region
          _
        $region24: #{_lambda_.1} parent=11 // pred_fallthru
          _
        // Predicated region
        $region25: #{_lambda_.1} parent=11 // pred_check
          %p394 = pneg %p134
        $region26: #{_lambda_.1} parent=11 // pred_check_branch
          %396 = sbr.rel (%p394) target = $region28
        $region27: #{_lambda_.1} parent=11 // pred_region
          _
        $region28: #{_lambda_.1} parent=11 // pred_fallthru
          _
        // Predicated region
        $region29: #{_lambda_.1} parent=11 // pred_check
          %p397 = pneg %p155
        $region30: #{_lambda_.1} parent=11 // pred_check_branch
          %399 = sbr.rel (%p397) target = $region32
        $region31: #{_lambda_.1} parent=11 // pred_region
          %s401 = ssub.s32 16384, 16384
          %402 = vsyncadd [#allocation4], %s401
          %s403 = sshll.u32 [#allocation3], 4
          %s404 = int_to_ptr.vmem [resolvable:$true] %s403
          %409 = dma.hbm_to_vmem [thread:$0]  %s5, 16384, %s404, [#allocation4], 256, 256, 16
        $region32: #{_lambda_.1} parent=11 // pred_fallthru
          _
        // Predicated region
        $region33: #{_lambda_.1} parent=11 // pred_check
          %p410 = pneg %p176
        $region34: #{_lambda_.1} parent=11 // pred_check_branch
          %412 = sbr.rel (%p410) target = $region36
        $region35: #{_lambda_.1} parent=11 // pred_region
          _
        $region36: #{_lambda_.1} parent=11 // pred_fallthru
          _
        // Predicated region
        $region37: #{_lambda_.1} parent=11 // pred_check
          %p413 = pneg %p197
        $region38: #{_lambda_.1} parent=11 // pred_check_branch
          %415 = sbr.rel (%p413) target = $region40
        $region39: #{_lambda_.1} parent=11 // pred_region
          _
        $region40: #{_lambda_.1} parent=11 // pred_fallthru
          _
        // Predicated region
        $region41: #{_lambda_.1} parent=11 // pred_check
          %p416 = pneg %p218
        $region42: #{_lambda_.1} parent=11 // pred_check_branch
          %418 = sbr.rel (%p416) target = $region44
        $region43: #{_lambda_.1} parent=11 // pred_region
          _
        $region44: #{_lambda_.1} parent=11 // pred_fallthru
          _
        // Predicated region
        $region45: #{_lambda_.1} parent=11 // pred_check
          %p419 = pneg %p239
        $region46: #{_lambda_.1} parent=11 // pred_check_branch
          %421 = sbr.rel (%p419) target = $region48
        $region47: #{_lambda_.1} parent=11 // pred_region
          _
        $region48: #{_lambda_.1} parent=11 // pred_fallthru
          _
        // Predicated region
        $region49: #{_lambda_.1} parent=11 // pred_check
          %p422 = pneg %p260
        $region50: #{_lambda_.1} parent=11 // pred_check_branch
          %424 = sbr.rel (%p422) target = $region52
        $region51: #{_lambda_.1} parent=11 // pred_region
          _
        $region52: #{_lambda_.1} parent=11 // pred_fallthru
          _
        // Predicated region
        $region53: #{_lambda_.1} parent=11 // pred_check
          %p425 = pneg %p281
        $region54: #{_lambda_.1} parent=11 // pred_check_branch
          %427 = sbr.rel (%p425) target = $region56
        $region55: #{_lambda_.1} parent=11 // pred_region
          _
        $region56: #{_lambda_.1} parent=11 // pred_fallthru
          _
        // Predicated region
        $region57: #{_lambda_.1} parent=11 // pred_check
          %p428 = pneg %p302
        $region58: #{_lambda_.1} parent=11 // pred_check_branch
          %430 = sbr.rel (%p428) target = $region60
        $region59: #{_lambda_.1} parent=11 // pred_region
          _
        $region60: #{_lambda_.1} parent=11 // pred_fallthru
          _
        // Predicated region
        $region61: #{_lambda_.1} parent=11 // pred_check
          %p431 = pneg %p323
        $region62: #{_lambda_.1} parent=11 // pred_check_branch
          %433 = sbr.rel (%p431) target = $region64
        $region63: #{_lambda_.1} parent=11 // pred_region
          _
        $region64: #{_lambda_.1} parent=11 // pred_fallthru
          _
        // Predicated region
        $region65: #{_lambda_.1} parent=11 // pred_check
          %p434 = pneg %p344
        $region66: #{_lambda_.1} parent=11 // pred_check_branch
          %436 = sbr.rel (%p434) target = $region68
        $region67: #{_lambda_.1} parent=11 // pred_region
          _
        $region68: #{_lambda_.1} parent=11 // pred_fallthru
          _
      $region12: #{_lambda_.1} parent=5 // pred_fallthru
        _
      %p437 = scmp.lt.s32.totalorder %s24, 2
      // Predicated region
      $region69: #{_lambda_.1} parent=5 // pred_check
        %p438 = pneg %p437
      $region70: #{_lambda_.1} parent=5 // pred_check_branch
        %440 = sbr.rel (%p438) target = $region72
      $region71: #{_lambda_.1} parent=5 // pred_region
        // Predicated region
        $region73: #{_lambda_.1} parent=71 // pred_check
          %p441 = pneg %p44
        $region74: #{_lambda_.1} parent=71 // pred_check_branch
          %443 = sbr.rel (%p441) target = $region76
        $region75: #{_lambda_.1} parent=71 // pred_region
          %s444 = smul.u32 19, %s24
          %p445 = scmp.lt.s32.totalorder %s444, 37
          %s446 = scalar_select %p445, %s444, 37
          %s447 = smul.addr %s446, 4
          %s448 = scalar_lea.vmem %s0, %s447
          %s449 = smul.u32 19, %s24
        $region76: #{_lambda_.1} parent=71 // pred_fallthru
          _
      $region72: #{_lambda_.1} parent=5 // pred_fallthru
        _
      %p450 = scmp.le.s32.totalorder 1, %s24
      %p451 = scmp.lt.s32.totalorder %s24, 3
      %p452 = pnand %p450, %p451
      %p453 = pneg %p452
      // Predicated region
      $region77: #{_lambda_.1} parent=5 // pred_check
        _
      $region78: #{_lambda_.1} parent=5 // pred_check_branch
        %455 = sbr.rel (%p452) target = $region80
      $region79: #{_lambda_.1} parent=5 // pred_region
        %s456 = ssub.s32 %s24, 1
        // Predicated region
        $region81: #{_lambda_.1} parent=79 // pred_check
          %p457 = pneg %p155
        $region82: #{_lambda_.1} parent=79 // pred_check_branch
          %459 = sbr.rel (%p457) target = $region84
        $region83: #{_lambda_.1} parent=79 // pred_region
          %460 = dma.done [#allocation4], 16384
        $region84: #{_lambda_.1} parent=79 // pred_fallthru
          _
        %s461 = smul.u32 19, %s29
        %p462 = scmp.lt.s32.totalorder %s461, 37
        %s463 = scalar_select %p462, %s461, 37
        %s464 = smul.addr %s463, 4
        %s465 = scalar_lea.vmem %s0, %s464
        %p466 = pneg %p50
        %p467 = pneg %p47
        %p468 = pneg %p71
        %p469 = pneg %p68
        %p470 = pneg %p92
        %p471 = pneg %p89
        %p472 = pneg %p113
        %p473 = pneg %p110
        %p474 = pneg %p134
        %p475 = pneg %p131
        %p476 = pneg %p155
        %p477 = pneg %p152
        %p478 = pneg %p176
        %p479 = pneg %p173
        %p480 = pneg %p197
        %p481 = pneg %p194
        %p482 = pneg %p218
        %p483 = pneg %p215
        %p484 = pneg %p239
        %p485 = pneg %p236
        %p486 = pneg %p260
        %p487 = pneg %p257
        %p488 = pneg %p281
        %p489 = pneg %p278
        %p490 = pneg %p302
        %p491 = pneg %p299
        %p492 = pneg %p323
        %p493 = pneg %p320
        %p494 = pneg %p344
        %p495 = pneg %p341
        %p496 = pneg %p370
        %p497 = pneg %p367
        %s498 = smul.u32 19, %s29
        %p499 = scmp.lt.s32.totalorder %s498, 37
        %s500 = scalar_select %p499, %s498, 37
        %s501 = smul.addr %s500, 8
        %s502 = scalar_lea.vmem %s15, %s501
        %s503 = smul.u32 19, %s29
        %p504 = scmp.lt.s32.totalorder %s503, 37
        %s505 = scalar_select %p504, %s503, 37
        %s506 = smul.addr %s505, 4
        %s507 = scalar_lea.vmem %s0, %s506
        %s508 = smul.u32 19, %s29
        %s509 = smul.u32 19, %s29
        %p510 = scmp.lt.s32.totalorder %s509, 37
        %s511 = scalar_select %p510, %s509, 37
        %s512 = smul.addr %s511, 8
        %s513 = scalar_lea.vmem %s15, %s512
        %s514 = smul.u32 19, %s29
        %v516 = vld [vmem:[%s507] sm:$0xf]
        %v517 = vld [vmem:[%s507 + $0x4] sm:$0xf]
        %v518 = vld [vmem:[%s507 + $0x8] sm:$0xf]
        %v519 = vld [vmem:[%s507 + $0xc] sm:$0xf]
        %v520 = vld [vmem:[%s507 + $0x10] sm:$0xf]
        %v521 = vld [vmem:[%s507 + $0x14] sm:$0xf]
        %v522 = vld [vmem:[%s507 + $0x18] sm:$0xf]
        %v523 = vld [vmem:[%s507 + $0x1c] sm:$0xf]
        %v524 = vld [vmem:[%s507 + $0x20] sm:$0xf]
        %v525 = vld [vmem:[%s507 + $0x24] sm:$0xf]
        %v526 = vld [vmem:[%s507 + $0x28] sm:$0xf]
        %v527 = vld [vmem:[%s507 + $0x2c] sm:$0xf]
        %v528 = vld [vmem:[%s507 + $0x30] sm:$0xf]
        %v529 = vld [vmem:[%s507 + $0x34] sm:$0xf]
        %v530 = vld [vmem:[%s507 + $0x38] sm:$0xf]
        %v531 = vld [vmem:[%s507 + $0x3c] sm:$0xf]
        %v532 = vld [vmem:[%s507 + $0x40] sm:$0xf]
        %v533 = vld [vmem:[%s507 + $0x44] sm:$0xf]
        %v534 = vld [vmem:[%s507 + $0x48] sm:$0xf]
        %v535 = vld [vmem:[%s1] sm:$0xff]
        %v536 = vld [vmem:[%s1 + $0x8] sm:$0xff]
        %v537 = vld [vmem:[%s1 + $0x10] sm:$0xff]
        %v538 = vld [vmem:[%s1 + $0x18] sm:$0xff]
        %v539 = vld [vmem:[%s2] sm:$0xf]
        %v541 = vlaneseq
        %v542 = vshrl.u32 %v541, 7
        %v543 = vsub.s32 0, %v542
        %v544 = vrot.slane %v539, %v543
        %v545 = vlaneseq
        %v546 = vshrl.u32 %v545, 7
        %v547 = vsub.s32 1, %v546
        %v548 = vrot.slane %v539, %v547
        %v549 = vlaneseq
        %v550 = vshrl.u32 %v549, 7
        %v551 = vsub.s32 2, %v550
        %v552 = vrot.slane %v539, %v551
        %v553 = vlaneseq
        %v554 = vshrl.u32 %v553, 7
        %v555 = vsub.s32 3, %v554
        %v556 = vrot.slane %v539, %v555
        %v580 = vunpack.c.l.b16 %v516
        %v581 = vunpack.c.l.b16 %v517
        %v582 = vunpack.c.l.b16 %v518
        %v583 = vunpack.c.l.b16 %v519
        %v584 = vunpack.c.l.b16 %v520
        %v585 = vunpack.c.l.b16 %v521
        %v586 = vunpack.c.l.b16 %v522
        %v587 = vunpack.c.l.b16 %v523
        %v588 = vunpack.c.l.b16 %v524
        %v589 = vunpack.c.l.b16 %v525
        %v590 = vunpack.c.l.b16 %v526
        %v591 = vunpack.c.l.b16 %v527
        %v592 = vunpack.c.l.b16 %v528
        %v593 = vunpack.c.l.b16 %v529
        %v594 = vunpack.c.l.b16 %v530
        %v595 = vunpack.c.l.b16 %v531
        %v596 = vunpack.c.l.b16 %v532
        %v597 = vunpack.c.l.b16 %v533
        %v598 = vunpack.c.l.b16 %v534
        %v599 = vpack.c.b16 %v581, %v580
        %v600 = vpack.c.b16 %v583, %v582
        %v601 = vpack.c.b16 %v585, %v584
        %v602 = vpack.c.b16 %v587, %v586
        %v603 = vpack.c.b16 %v589, %v588
        %v604 = vpack.c.b16 %v591, %v590
        %v605 = vpack.c.b16 %v593, %v592
        %v606 = vpack.c.b16 %v595, %v594
        %v607 = vpack.c.b16 %v597, %v596
        %v608 = vpack.c.b16 %v598, %v598
        %v613 = vunpack.c.l.b16 %v535
        %v614 = vunpack.c.h.b16 %v535
        %v615 = vunpack.c.l.b16 %v536
        %v616 = vunpack.c.h.b16 %v536
        %v617 = vunpack.c.l.b16 %v537
        %v618 = vunpack.c.h.b16 %v537
        %v619 = vunpack.c.l.b16 %v538
        %v620 = vunpack.c.h.b16 %v538
        %v621 = vpack.c.b16 %v617, %v613
        %v622 = vpack.c.b16 %v618, %v614
        %v623 = vpack.c.b16 %v619, %v615
        %v624 = vpack.c.b16 %v620, %v616
        %vm629 = vcmask 130048
        %v631 = vsel %vm629, %v599, 0
        %v634 = vsel %vm629, %v600, 0
        %v637 = vsel %vm629, %v601, 0
        %v640 = vsel %vm629, %v602, 0
        %v643 = vsel %vm629, %v603, 0
        %v646 = vsel %vm629, %v604, 0
        %v649 = vsel %vm629, %v605, 0
        %v652 = vsel %vm629, %v606, 0
        %v655 = vsel %vm629, %v607, 0
        %v658 = vsel %vm629, %v608, 0
        %660 = vmatprep.subr.bf16.mxu0 0
        %661 = vmatpush1.bf16.msra.mxu0 0
        %662 = vmatprep.subr.bf16.mxu0 0
        %663 = vmatpush1.bf16.msra.mxu0 0
        %664 = vmatprep.subr.bf16.mxu0 0
        %665 = vmatpush1.bf16.msra.mxu0 0
        %666 = vmatprep.subr.bf16.mxu0 0
        %667 = vmatpush1.bf16.msra.mxu0 0
        %668 = vmatprep.subr.bf16.mxu0 0
        %669 = vmatpush1.bf16.msra.mxu0 0
        %670 = vmatprep.subr.bf16.mxu0 0
        %671 = vmatpush1.bf16.msra.mxu0 0
        %672 = vmatprep.subr.bf16.mxu0 0
        %673 = vmatpush1.bf16.msra.mxu0 0
        %674 = vmatprep.subr.bf16.mxu0 %v622
        %675 = vmatpush1.bf16.msra.mxu0 %v621
        %676 = vmatprep.subr.bf16.mxu0 0
        %677 = vmatpush2.bf16.msra.mxu0 0
        %678 = vmatprep.subr.bf16.mxu0 0
        %679 = vmatpush2.bf16.msra.mxu0 0
        %680 = vmatprep.subr.bf16.mxu0 0
        %681 = vmatpush2.bf16.msra.mxu0 0
        %682 = vmatprep.subr.bf16.mxu0 0
        %683 = vmatpush2.bf16.msra.mxu0 0
        %684 = vmatprep.subr.bf16.mxu0 0
        %685 = vmatpush2.bf16.msra.mxu0 0
        %686 = vmatprep.subr.bf16.mxu0 0
        %687 = vmatpush2.bf16.msra.mxu0 0
        %688 = vmatprep.subr.bf16.mxu0 0
        %689 = vmatpush2.bf16.msra.mxu0 0
        %690 = vmatprep.subr.bf16.mxu0 0
        %691 = vmatpush2.bf16.msra.mxu0 0
        %692 = vmatprep.mubr.bf16.mxu0 0
        %693 = vmatmul.mubr.bf16.gmra.mxu0 %v631
        %v694 = vpop.f32.mrf.mxu0
        %v695 = vadd.f32 %v544, %v694
        %v696 = vpop.f32.mrf.mxu0
        %v697 = vadd.f32 %v548, %v696
        %v698 = vpop.f32.mrf.mxu0
        %v699 = vadd.f32 %v544, %v698
        %v700 = vpop.f32.mrf.mxu0
        %v701 = vadd.f32 %v548, %v700
        %702 = vmatprep.mubr.bf16.mxu0 0
        %703 = vmatmul.mubr.bf16.gmra.mxu0 %v634
        %v704 = vpop.f32.mrf.mxu0
        %v705 = vadd.f32 %v544, %v704
        %v706 = vpop.f32.mrf.mxu0
        %v707 = vadd.f32 %v548, %v706
        %v708 = vpop.f32.mrf.mxu0
        %v709 = vadd.f32 %v544, %v708
        %v710 = vpop.f32.mrf.mxu0
        %v711 = vadd.f32 %v548, %v710
        %712 = vmatprep.mubr.bf16.mxu0 0
        %713 = vmatmul.mubr.bf16.gmra.mxu0 %v637
        %v714 = vpop.f32.mrf.mxu0
        %v715 = vadd.f32 %v544, %v714
        %v716 = vpop.f32.mrf.mxu0
        %v717 = vadd.f32 %v548, %v716
        %v718 = vpop.f32.mrf.mxu0
        %v719 = vadd.f32 %v544, %v718
        %v720 = vpop.f32.mrf.mxu0
        %v721 = vadd.f32 %v548, %v720
        %722 = vmatprep.mubr.bf16.mxu0 0
        %723 = vmatmul.mubr.bf16.gmra.mxu0 %v640
        %v724 = vpop.f32.mrf.mxu0
        %v725 = vadd.f32 %v544, %v724
        %v726 = vpop.f32.mrf.mxu0
        %v727 = vadd.f32 %v548, %v726
        %v728 = vpop.f32.mrf.mxu0
        %v729 = vadd.f32 %v544, %v728
        %v730 = vpop.f32.mrf.mxu0
        %v731 = vadd.f32 %v548, %v730
        %732 = vmatprep.mubr.bf16.mxu0 0
        %733 = vmatmul.mubr.bf16.gmra.mxu0 %v643
        %v734 = vpop.f32.mrf.mxu0
        %v735 = vadd.f32 %v544, %v734
        %v736 = vpop.f32.mrf.mxu0
        %v737 = vadd.f32 %v548, %v736
        %v738 = vpop.f32.mrf.mxu0
        %v739 = vadd.f32 %v544, %v738
        %v740 = vpop.f32.mrf.mxu0
        %v741 = vadd.f32 %v548, %v740
        %742 = vmatprep.mubr.bf16.mxu0 0
        %743 = vmatmul.mubr.bf16.gmra.mxu0 %v646
        %v744 = vpop.f32.mrf.mxu0
        %v745 = vadd.f32 %v544, %v744
        %v746 = vpop.f32.mrf.mxu0
        %v747 = vadd.f32 %v548, %v746
        %v748 = vpop.f32.mrf.mxu0
        %v749 = vadd.f32 %v544, %v748
        %v750 = vpop.f32.mrf.mxu0
        %v751 = vadd.f32 %v548, %v750
        %752 = vmatprep.mubr.bf16.mxu0 0
        %753 = vmatmul.mubr.bf16.gmra.mxu0 %v649
        %v754 = vpop.f32.mrf.mxu0
        %v755 = vadd.f32 %v544, %v754
        %v756 = vpop.f32.mrf.mxu0
        %v757 = vadd.f32 %v548, %v756
        %v758 = vpop.f32.mrf.mxu0
        %v759 = vadd.f32 %v544, %v758
        %v760 = vpop.f32.mrf.mxu0
        %v761 = vadd.f32 %v548, %v760
        %762 = vmatprep.mubr.bf16.mxu0 0
        %763 = vmatmul.mubr.bf16.gmra.mxu0 %v652
        %v764 = vpop.f32.mrf.mxu0
        %v765 = vadd.f32 %v544, %v764
        %v766 = vpop.f32.mrf.mxu0
        %v767 = vadd.f32 %v548, %v766
        %v768 = vpop.f32.mrf.mxu0
        %v769 = vadd.f32 %v544, %v768
        %v770 = vpop.f32.mrf.mxu0
        %v771 = vadd.f32 %v548, %v770
        %772 = vmatprep.mubr.bf16.mxu0 0
        %773 = vmatmul.mubr.bf16.gmra.mxu0 %v655
        %v774 = vpop.f32.mrf.mxu0
        %v775 = vadd.f32 %v544, %v774
        %v776 = vpop.f32.mrf.mxu0
        %v777 = vadd.f32 %v548, %v776
        %v778 = vpop.f32.mrf.mxu0
        %v779 = vadd.f32 %v544, %v778
        %v780 = vpop.f32.mrf.mxu0
        %v781 = vadd.f32 %v548, %v780
        %782 = vmatprep.mubr.bf16.mxu0 0
        %783 = vmatmul.mubr.bf16.gmra.mxu0 %v658
        %v784 = vpop.f32.mrf.mxu0
        %v785 = vadd.f32 %v544, %v784
        %v786 = vpop.f32.mrf.mxu0
        %v787 = vadd.f32 %v548, %v786
        %v788 = vpop.f32.mrf.mxu0
        %v789 = vpop.f32.mrf.mxu0
        %790 = vdwg.mxu0
        %791 = vmatprep.subr.bf16.mxu0 0
        %792 = vmatpush1.bf16.msra.mxu0 0
        %793 = vmatprep.subr.bf16.mxu0 0
        %794 = vmatpush1.bf16.msra.mxu0 0
        %795 = vmatprep.subr.bf16.mxu0 0
        %796 = vmatpush1.bf16.msra.mxu0 0
        %797 = vmatprep.subr.bf16.mxu0 0
        %798 = vmatpush1.bf16.msra.mxu0 0
        %799 = vmatprep.subr.bf16.mxu0 0
        %800 = vmatpush1.bf16.msra.mxu0 0
        %801 = vmatprep.subr.bf16.mxu0 0
        %802 = vmatpush1.bf16.msra.mxu0 0
        %803 = vmatprep.subr.bf16.mxu0 0
        %804 = vmatpush1.bf16.msra.mxu0 0
        %805 = vmatprep.subr.bf16.mxu0 %v624
        %806 = vmatpush1.bf16.msra.mxu0 %v623
        %807 = vmatprep.subr.bf16.mxu0 0
        %808 = vmatpush2.bf16.msra.mxu0 0
        %809 = vmatprep.subr.bf16.mxu0 0
        %810 = vmatpush2.bf16.msra.mxu0 0
        %811 = vmatprep.subr.bf16.mxu0 0
        %812 = vmatpush2.bf16.msra.mxu0 0
        %813 = vmatprep.subr.bf16.mxu0 0
        %814 = vmatpush2.bf16.msra.mxu0 0
        %815 = vmatprep.subr.bf16.mxu0 0
        %816 = vmatpush2.bf16.msra.mxu0 0
        %817 = vmatprep.subr.bf16.mxu0 0
        %818 = vmatpush2.bf16.msra.mxu0 0
        %819 = vmatprep.subr.bf16.mxu0 0
        %820 = vmatpush2.bf16.msra.mxu0 0
        %821 = vmatprep.subr.bf16.mxu0 0
        %822 = vmatpush2.bf16.msra.mxu0 0
        %823 = vmatprep.mubr.bf16.mxu0 0
        %824 = vmatmul.mubr.bf16.gmra.mxu0 %v631
        %v825 = vpop.f32.mrf.mxu0
        %v826 = vadd.f32 %v552, %v825
        %v827 = vpop.f32.mrf.mxu0
        %v828 = vadd.f32 %v556, %v827
        %v829 = vpop.f32.mrf.mxu0
        %v830 = vadd.f32 %v552, %v829
        %v831 = vpop.f32.mrf.mxu0
        %v832 = vadd.f32 %v556, %v831
        %833 = vmatprep.mubr.bf16.mxu0 0
        %834 = vmatmul.mubr.bf16.gmra.mxu0 %v634
        %v835 = vpop.f32.mrf.mxu0
        %v836 = vadd.f32 %v552, %v835
        %v837 = vpop.f32.mrf.mxu0
        %v838 = vadd.f32 %v556, %v837
        %v839 = vpop.f32.mrf.mxu0
        %v840 = vadd.f32 %v552, %v839
        %v841 = vpop.f32.mrf.mxu0
        %v842 = vadd.f32 %v556, %v841
        %843 = vmatprep.mubr.bf16.mxu0 0
        %844 = vmatmul.mubr.bf16.gmra.mxu0 %v637
        %v845 = vpop.f32.mrf.mxu0
        %v846 = vadd.f32 %v552, %v845
        %v847 = vpop.f32.mrf.mxu0
        %v848 = vadd.f32 %v556, %v847
        %v849 = vpop.f32.mrf.mxu0
        %v850 = vadd.f32 %v552, %v849
        %v851 = vpop.f32.mrf.mxu0
        %v852 = vadd.f32 %v556, %v851
        %853 = vmatprep.mubr.bf16.mxu0 0
        %854 = vmatmul.mubr.bf16.gmra.mxu0 %v640
        %v855 = vpop.f32.mrf.mxu0
        %v856 = vadd.f32 %v552, %v855
        %v857 = vpop.f32.mrf.mxu0
        %v858 = vadd.f32 %v556, %v857
        %v859 = vpop.f32.mrf.mxu0
        %v860 = vadd.f32 %v552, %v859
        %v861 = vpop.f32.mrf.mxu0
        %v862 = vadd.f32 %v556, %v861
        %863 = vmatprep.mubr.bf16.mxu0 0
        %864 = vmatmul.mubr.bf16.gmra.mxu0 %v643
        %v865 = vpop.f32.mrf.mxu0
        %v866 = vadd.f32 %v552, %v865
        %v867 = vpop.f32.mrf.mxu0
        %v868 = vadd.f32 %v556, %v867
        %v869 = vpop.f32.mrf.mxu0
        %v870 = vadd.f32 %v552, %v869
        %v871 = vpop.f32.mrf.mxu0
        %v872 = vadd.f32 %v556, %v871
        %873 = vmatprep.mubr.bf16.mxu0 0
        %874 = vmatmul.mubr.bf16.gmra.mxu0 %v646
        %v875 = vpop.f32.mrf.mxu0
        %v876 = vadd.f32 %v552, %v875
        %v877 = vpop.f32.mrf.mxu0
        %v878 = vadd.f32 %v556, %v877
        %v879 = vpop.f32.mrf.mxu0
        %v880 = vadd.f32 %v552, %v879
        %v881 = vpop.f32.mrf.mxu0
        %v882 = vadd.f32 %v556, %v881
        %883 = vmatprep.mubr.bf16.mxu0 0
        %884 = vmatmul.mubr.bf16.gmra.mxu0 %v649
        %v885 = vpop.f32.mrf.mxu0
        %v886 = vadd.f32 %v552, %v885
        %v887 = vpop.f32.mrf.mxu0
        %v888 = vadd.f32 %v556, %v887
        %v889 = vpop.f32.mrf.mxu0
        %v890 = vadd.f32 %v552, %v889
        %v891 = vpop.f32.mrf.mxu0
        %v892 = vadd.f32 %v556, %v891
        %893 = vmatprep.mubr.bf16.mxu0 0
        %894 = vmatmul.mubr.bf16.gmra.mxu0 %v652
        %v895 = vpop.f32.mrf.mxu0
        %v896 = vadd.f32 %v552, %v895
        %v897 = vpop.f32.mrf.mxu0
        %v898 = vadd.f32 %v556, %v897
        %v899 = vpop.f32.mrf.mxu0
        %v900 = vadd.f32 %v552, %v899
        %v901 = vpop.f32.mrf.mxu0
        %v902 = vadd.f32 %v556, %v901
        %903 = vmatprep.mubr.bf16.mxu0 0
        %904 = vmatmul.mubr.bf16.gmra.mxu0 %v655
        %v905 = vpop.f32.mrf.mxu0
        %v906 = vadd.f32 %v552, %v905
        %v907 = vpop.f32.mrf.mxu0
        %v908 = vadd.f32 %v556, %v907
        %v909 = vpop.f32.mrf.mxu0
        %v910 = vadd.f32 %v552, %v909
        %v911 = vpop.f32.mrf.mxu0
        %v912 = vadd.f32 %v556, %v911
        %913 = vmatprep.mubr.bf16.mxu0 0
        %914 = vmatmul.mubr.bf16.gmra.mxu0 %v658
        %v915 = vpop.f32.mrf.mxu0
        %v916 = vadd.f32 %v552, %v915
        %v917 = vpop.f32.mrf.mxu0
        %v918 = vadd.f32 %v556, %v917
        %v919 = vpop.f32.mrf.mxu0
        %v920 = vpop.f32.mrf.mxu0
        %921 = vdwg.mxu0
        %v922 = vld [vmem:[%s3] sm:$0xf]
        %v923 = vld [vmem:[%s4] sm:$0xf]
        %v924 = vadd.f32 %v695, %v697
        %v925 = vadd.f32 %v924, %v826
        %v926 = vadd.f32 %v925, %v828
        %927 = vadd.xlane.f32.xlu0 %v926
        %v928 = vpop.xlane.xlu0 %927
        %v929 = vadd.f32 %v699, %v701
        %v930 = vadd.f32 %v929, %v830
        %v931 = vadd.f32 %v930, %v832
        %932 = vadd.xlane.f32.xlu0 %v931
        %v933 = vpop.xlane.xlu0 %932
        %v934 = vadd.f32 %v705, %v707
        %v935 = vadd.f32 %v934, %v836
        %v936 = vadd.f32 %v935, %v838
        %937 = vadd.xlane.f32.xlu0 %v936
        %v938 = vpop.xlane.xlu0 %937
        %v939 = vadd.f32 %v709, %v711
        %v940 = vadd.f32 %v939, %v840
        %v941 = vadd.f32 %v940, %v842
        %942 = vadd.xlane.f32.xlu0 %v941
        %v943 = vpop.xlane.xlu0 %942
        %v944 = vadd.f32 %v715, %v717
        %v945 = vadd.f32 %v944, %v846
        %v946 = vadd.f32 %v945, %v848
        %947 = vadd.xlane.f32.xlu0 %v946
        %v948 = vpop.xlane.xlu0 %947
        %v949 = vadd.f32 %v719, %v721
        %v950 = vadd.f32 %v949, %v850
        %v951 = vadd.f32 %v950, %v852
        %952 = vadd.xlane.f32.xlu0 %v951
        %v953 = vpop.xlane.xlu0 %952
        %v954 = vadd.f32 %v725, %v727
        %v955 = vadd.f32 %v954, %v856
        %v956 = vadd.f32 %v955, %v858
        %957 = vadd.xlane.f32.xlu0 %v956
        %v958 = vpop.xlane.xlu0 %957
        %v959 = vadd.f32 %v729, %v731
        %v960 = vadd.f32 %v959, %v860
        %v961 = vadd.f32 %v960, %v862
        %962 = vadd.xlane.f32.xlu0 %v961
        %v963 = vpop.xlane.xlu0 %962
        %v964 = vadd.f32 %v735, %v737
        %v965 = vadd.f32 %v964, %v866
        %v966 = vadd.f32 %v965, %v868
        %967 = vadd.xlane.f32.xlu0 %v966
        %v968 = vpop.xlane.xlu0 %967
        %v969 = vadd.f32 %v739, %v741
        %v970 = vadd.f32 %v969, %v870
        %v971 = vadd.f32 %v970, %v872
        %972 = vadd.xlane.f32.xlu0 %v971
        %v973 = vpop.xlane.xlu0 %972
        %v974 = vadd.f32 %v745, %v747
        %v975 = vadd.f32 %v974, %v876
        %v976 = vadd.f32 %v975, %v878
        %977 = vadd.xlane.f32.xlu0 %v976
        %v978 = vpop.xlane.xlu0 %977
        %v979 = vadd.f32 %v749, %v751
        %v980 = vadd.f32 %v979, %v880
        %v981 = vadd.f32 %v980, %v882
        %982 = vadd.xlane.f32.xlu0 %v981
        %v983 = vpop.xlane.xlu0 %982
        %v984 = vadd.f32 %v755, %v757
        %v985 = vadd.f32 %v984, %v886
        %v986 = vadd.f32 %v985, %v888
        %987 = vadd.xlane.f32.xlu0 %v986
        %v988 = vpop.xlane.xlu0 %987
        %v989 = vadd.f32 %v759, %v761
        %v990 = vadd.f32 %v989, %v890
        %v991 = vadd.f32 %v990, %v892
        %992 = vadd.xlane.f32.xlu0 %v991
        %v993 = vpop.xlane.xlu0 %992
        %v994 = vadd.f32 %v765, %v767
        %v995 = vadd.f32 %v994, %v896
        %v996 = vadd.f32 %v995, %v898
        %997 = vadd.xlane.f32.xlu0 %v996
        %v998 = vpop.xlane.xlu0 %997
        %v999 = vadd.f32 %v769, %v771
        %v1000 = vadd.f32 %v999, %v900
        %v1001 = vadd.f32 %v1000, %v902
        %1002 = vadd.xlane.f32.xlu0 %v1001
        %v1003 = vpop.xlane.xlu0 %1002
        %v1004 = vadd.f32 %v775, %v777
        %v1005 = vadd.f32 %v1004, %v906
        %v1006 = vadd.f32 %v1005, %v908
        %1007 = vadd.xlane.f32.xlu0 %v1006
        %v1008 = vpop.xlane.xlu0 %1007
        %v1009 = vadd.f32 %v779, %v781
        %v1010 = vadd.f32 %v1009, %v910
        %v1011 = vadd.f32 %v1010, %v912
        %1012 = vadd.xlane.f32.xlu0 %v1011
        %v1013 = vpop.xlane.xlu0 %1012
        %v1014 = vadd.f32 %v785, %v787
        %v1015 = vadd.f32 %v1014, %v916
        %v1016 = vadd.f32 %v1015, %v918
        %1017 = vadd.xlane.f32.xlu0 %v1016
        %v1018 = vpop.xlane.xlu0 %1017
        %v1019 = vrcp.pop 512.0
        %v1020 = vmul.f32 %v928, %v1019
        %v1021 = vmul.f32 %v933, %v1019
        %v1022 = vmul.f32 %v938, %v1019
        %v1023 = vmul.f32 %v943, %v1019
        %v1024 = vmul.f32 %v948, %v1019
        %v1025 = vmul.f32 %v953, %v1019
        %v1026 = vmul.f32 %v958, %v1019
        %v1027 = vmul.f32 %v963, %v1019
        %v1028 = vmul.f32 %v968, %v1019
        %v1029 = vmul.f32 %v973, %v1019
        %v1030 = vmul.f32 %v978, %v1019
        %v1031 = vmul.f32 %v983, %v1019
        %v1032 = vmul.f32 %v988, %v1019
        %v1033 = vmul.f32 %v993, %v1019
        %v1034 = vmul.f32 %v998, %v1019
        %v1035 = vmul.f32 %v1003, %v1019
        %v1036 = vmul.f32 %v1008, %v1019
        %v1037 = vmul.f32 %v1013, %v1019
        %v1038 = vmul.f32 %v1018, %v1019
        %v1039 = vmul.f32 %v695, %v695
        %v1040 = vmul.f32 %v697, %v697
        %v1041 = vmul.f32 %v826, %v826
        %v1042 = vmul.f32 %v828, %v828
        %v1043 = vmul.f32 %v699, %v699
        %v1044 = vmul.f32 %v701, %v701
        %v1045 = vmul.f32 %v830, %v830
        %v1046 = vmul.f32 %v832, %v832
        %v1047 = vmul.f32 %v705, %v705
        %v1048 = vmul.f32 %v707, %v707
        %v1049 = vmul.f32 %v836, %v836
        %v1050 = vmul.f32 %v838, %v838
        %v1051 = vmul.f32 %v709, %v709
        %v1052 = vmul.f32 %v711, %v711
        %v1053 = vmul.f32 %v840, %v840
        %v1054 = vmul.f32 %v842, %v842
        %v1055 = vmul.f32 %v715, %v715
        %v1056 = vmul.f32 %v717, %v717
        %v1057 = vmul.f32 %v846, %v846
        %v1058 = vmul.f32 %v848, %v848
        %v1059 = vmul.f32 %v719, %v719
        %v1060 = vmul.f32 %v721, %v721
        %v1061 = vmul.f32 %v850, %v850
        %v1062 = vmul.f32 %v852, %v852
        %v1063 = vmul.f32 %v725, %v725
        %v1064 = vmul.f32 %v727, %v727
        %v1065 = vmul.f32 %v856, %v856
        %v1066 = vmul.f32 %v858, %v858
        %v1067 = vmul.f32 %v729, %v729
        %v1068 = vmul.f32 %v731, %v731
        %v1069 = vmul.f32 %v860, %v860
        %v1070 = vmul.f32 %v862, %v862
        %v1071 = vmul.f32 %v735, %v735
        %v1072 = vmul.f32 %v737, %v737
        %v1073 = vmul.f32 %v866, %v866
        %v1074 = vmul.f32 %v868, %v868
        %v1075 = vmul.f32 %v739, %v739
        %v1076 = vmul.f32 %v741, %v741
        %v1077 = vmul.f32 %v870, %v870
        %v1078 = vmul.f32 %v872, %v872
        %v1079 = vmul.f32 %v745, %v745
        %v1080 = vmul.f32 %v747, %v747
        %v1081 = vmul.f32 %v876, %v876
        %v1082 = vmul.f32 %v878, %v878
        %v1083 = vmul.f32 %v749, %v749
        %v1084 = vmul.f32 %v751, %v751
        %v1085 = vmul.f32 %v880, %v880
        %v1086 = vmul.f32 %v882, %v882
        %v1087 = vmul.f32 %v755, %v755
        %v1088 = vmul.f32 %v757, %v757
        %v1089 = vmul.f32 %v886, %v886
        %v1090 = vmul.f32 %v888, %v888
        %v1091 = vmul.f32 %v759, %v759
        %v1092 = vmul.f32 %v761, %v761
        %v1093 = vmul.f32 %v890, %v890
        %v1094 = vmul.f32 %v892, %v892
        %v1095 = vmul.f32 %v765, %v765
        %v1096 = vmul.f32 %v767, %v767
        %v1097 = vmul.f32 %v896, %v896
        %v1098 = vmul.f32 %v898, %v898
        %v1099 = vmul.f32 %v769, %v769
        %v1100 = vmul.f32 %v771, %v771
        %v1101 = vmul.f32 %v900, %v900
        %v1102 = vmul.f32 %v902, %v902
        %v1103 = vmul.f32 %v775, %v775
        %v1104 = vmul.f32 %v777, %v777
        %v1105 = vmul.f32 %v906, %v906
        %v1106 = vmul.f32 %v908, %v908
        %v1107 = vmul.f32 %v779, %v779
        %v1108 = vmul.f32 %v781, %v781
        %v1109 = vmul.f32 %v910, %v910
        %v1110 = vmul.f32 %v912, %v912
        %v1111 = vmul.f32 %v785, %v785
        %v1112 = vmul.f32 %v787, %v787
        %v1113 = vmul.f32 %v916, %v916
        %v1114 = vmul.f32 %v918, %v918
        %v1115 = vadd.f32 %v1039, %v1040
        %v1116 = vadd.f32 %v1115, %v1041
        %v1117 = vadd.f32 %v1116, %v1042
        %1118 = vadd.xlane.f32.xlu0 %v1117
        %v1119 = vpop.xlane.xlu0 %1118
        %v1120 = vadd.f32 %v1043, %v1044
        %v1121 = vadd.f32 %v1120, %v1045
        %v1122 = vadd.f32 %v1121, %v1046
        %1123 = vadd.xlane.f32.xlu0 %v1122
        %v1124 = vpop.xlane.xlu0 %1123
        %v1125 = vadd.f32 %v1047, %v1048
        %v1126 = vadd.f32 %v1125, %v1049
        %v1127 = vadd.f32 %v1126, %v1050
        %1128 = vadd.xlane.f32.xlu0 %v1127
        %v1129 = vpop.xlane.xlu0 %1128
        %v1130 = vadd.f32 %v1051, %v1052
        %v1131 = vadd.f32 %v1130, %v1053
        %v1132 = vadd.f32 %v1131, %v1054
        %1133 = vadd.xlane.f32.xlu0 %v1132
        %v1134 = vpop.xlane.xlu0 %1133
        %v1135 = vadd.f32 %v1055, %v1056
        %v1136 = vadd.f32 %v1135, %v1057
        %v1137 = vadd.f32 %v1136, %v1058
        %1138 = vadd.xlane.f32.xlu0 %v1137
        %v1139 = vpop.xlane.xlu0 %1138
        %v1140 = vadd.f32 %v1059, %v1060
        %v1141 = vadd.f32 %v1140, %v1061
        %v1142 = vadd.f32 %v1141, %v1062
        %1143 = vadd.xlane.f32.xlu0 %v1142
        %v1144 = vpop.xlane.xlu0 %1143
        %v1145 = vadd.f32 %v1063, %v1064
        %v1146 = vadd.f32 %v1145, %v1065
        %v1147 = vadd.f32 %v1146, %v1066
        %1148 = vadd.xlane.f32.xlu0 %v1147
        %v1149 = vpop.xlane.xlu0 %1148
        %v1150 = vadd.f32 %v1067, %v1068
        %v1151 = vadd.f32 %v1150, %v1069
        %v1152 = vadd.f32 %v1151, %v1070
        %1153 = vadd.xlane.f32.xlu0 %v1152
        %v1154 = vpop.xlane.xlu0 %1153
        %v1155 = vadd.f32 %v1071, %v1072
        %v1156 = vadd.f32 %v1155, %v1073
        %v1157 = vadd.f32 %v1156, %v1074
        %1158 = vadd.xlane.f32.xlu0 %v1157
        %v1159 = vpop.xlane.xlu0 %1158
        %v1160 = vadd.f32 %v1075, %v1076
        %v1161 = vadd.f32 %v1160, %v1077
        %v1162 = vadd.f32 %v1161, %v1078
        %1163 = vadd.xlane.f32.xlu0 %v1162
        %v1164 = vpop.xlane.xlu0 %1163
        %v1165 = vadd.f32 %v1079, %v1080
        %v1166 = vadd.f32 %v1165, %v1081
        %v1167 = vadd.f32 %v1166, %v1082
        %1168 = vadd.xlane.f32.xlu0 %v1167
        %v1169 = vpop.xlane.xlu0 %1168
        %v1170 = vadd.f32 %v1083, %v1084
        %v1171 = vadd.f32 %v1170, %v1085
        %v1172 = vadd.f32 %v1171, %v1086
        %1173 = vadd.xlane.f32.xlu0 %v1172
        %v1174 = vpop.xlane.xlu0 %1173
        %v1175 = vadd.f32 %v1087, %v1088
        %v1176 = vadd.f32 %v1175, %v1089
        %v1177 = vadd.f32 %v1176, %v1090
        %1178 = vadd.xlane.f32.xlu0 %v1177
        %v1179 = vpop.xlane.xlu0 %1178
        %v1180 = vadd.f32 %v1091, %v1092
        %v1181 = vadd.f32 %v1180, %v1093
        %v1182 = vadd.f32 %v1181, %v1094
        %1183 = vadd.xlane.f32.xlu0 %v1182
        %v1184 = vpop.xlane.xlu0 %1183
        %v1185 = vadd.f32 %v1095, %v1096
        %v1186 = vadd.f32 %v1185, %v1097
        %v1187 = vadd.f32 %v1186, %v1098
        %1188 = vadd.xlane.f32.xlu0 %v1187
        %v1189 = vpop.xlane.xlu0 %1188
        %v1190 = vadd.f32 %v1099, %v1100
        %v1191 = vadd.f32 %v1190, %v1101
        %v1192 = vadd.f32 %v1191, %v1102
        %1193 = vadd.xlane.f32.xlu0 %v1192
        %v1194 = vpop.xlane.xlu0 %1193
        %v1195 = vadd.f32 %v1103, %v1104
        %v1196 = vadd.f32 %v1195, %v1105
        %v1197 = vadd.f32 %v1196, %v1106
        %1198 = vadd.xlane.f32.xlu0 %v1197
        %v1199 = vpop.xlane.xlu0 %1198
        %v1200 = vadd.f32 %v1107, %v1108
        %v1201 = vadd.f32 %v1200, %v1109
        %v1202 = vadd.f32 %v1201, %v1110
        %1203 = vadd.xlane.f32.xlu0 %v1202
        %v1204 = vpop.xlane.xlu0 %1203
        %v1205 = vadd.f32 %v1111, %v1112
        %v1206 = vadd.f32 %v1205, %v1113
        %v1207 = vadd.f32 %v1206, %v1114
        %1208 = vadd.xlane.f32.xlu0 %v1207
        %v1209 = vpop.xlane.xlu0 %1208
        %v1210 = vmul.f32 %v1119, %v1019
        %v1211 = vmul.f32 %v1124, %v1019
        %v1212 = vmul.f32 %v1129, %v1019
        %v1213 = vmul.f32 %v1134, %v1019
        %v1214 = vmul.f32 %v1139, %v1019
        %v1215 = vmul.f32 %v1144, %v1019
        %v1216 = vmul.f32 %v1149, %v1019
        %v1217 = vmul.f32 %v1154, %v1019
        %v1218 = vmul.f32 %v1159, %v1019
        %v1219 = vmul.f32 %v1164, %v1019
        %v1220 = vmul.f32 %v1169, %v1019
        %v1221 = vmul.f32 %v1174, %v1019
        %v1222 = vmul.f32 %v1179, %v1019
        %v1223 = vmul.f32 %v1184, %v1019
        %v1224 = vmul.f32 %v1189, %v1019
        %v1225 = vmul.f32 %v1194, %v1019
        %v1226 = vmul.f32 %v1199, %v1019
        %v1227 = vmul.f32 %v1204, %v1019
        %v1228 = vmul.f32 %v1209, %v1019
        %v1229 = vmul.f32 %v1020, %v1020
        %v1230 = vmul.f32 %v1021, %v1021
        %v1231 = vmul.f32 %v1022, %v1022
        %v1232 = vmul.f32 %v1023, %v1023
        %v1233 = vmul.f32 %v1024, %v1024
        %v1234 = vmul.f32 %v1025, %v1025
        %v1235 = vmul.f32 %v1026, %v1026
        %v1236 = vmul.f32 %v1027, %v1027
        %v1237 = vmul.f32 %v1028, %v1028
        %v1238 = vmul.f32 %v1029, %v1029
        %v1239 = vmul.f32 %v1030, %v1030
        %v1240 = vmul.f32 %v1031, %v1031
        %v1241 = vmul.f32 %v1032, %v1032
        %v1242 = vmul.f32 %v1033, %v1033
        %v1243 = vmul.f32 %v1034, %v1034
        %v1244 = vmul.f32 %v1035, %v1035
        %v1245 = vmul.f32 %v1036, %v1036
        %v1246 = vmul.f32 %v1037, %v1037
        %v1247 = vmul.f32 %v1038, %v1038
        %v1248 = vsub.f32 %v1210, %v1229
        %v1249 = vsub.f32 %v1211, %v1230
        %v1250 = vsub.f32 %v1212, %v1231
        %v1251 = vsub.f32 %v1213, %v1232
        %v1252 = vsub.f32 %v1214, %v1233
        %v1253 = vsub.f32 %v1215, %v1234
        %v1254 = vsub.f32 %v1216, %v1235
        %v1255 = vsub.f32 %v1217, %v1236
        %v1256 = vsub.f32 %v1218, %v1237
        %v1257 = vsub.f32 %v1219, %v1238
        %v1258 = vsub.f32 %v1220, %v1239
        %v1259 = vsub.f32 %v1221, %v1240
        %v1260 = vsub.f32 %v1222, %v1241
        %v1261 = vsub.f32 %v1223, %v1242
        %v1262 = vsub.f32 %v1224, %v1243
        %v1263 = vsub.f32 %v1225, %v1244
        %v1264 = vsub.f32 %v1226, %v1245
        %v1265 = vsub.f32 %v1227, %v1246
        %v1266 = vsub.f32 %v1228, %v1247
        %v1267 = vmax.f32 %v1248, 0.0
        %v1268 = vmax.f32 %v1249, 0.0
        %v1269 = vmax.f32 %v1250, 0.0
        %v1270 = vmax.f32 %v1251, 0.0
        %v1271 = vmax.f32 %v1252, 0.0
        %v1272 = vmax.f32 %v1253, 0.0
        %v1273 = vmax.f32 %v1254, 0.0
        %v1274 = vmax.f32 %v1255, 0.0
        %v1275 = vmax.f32 %v1256, 0.0
        %v1276 = vmax.f32 %v1257, 0.0
        %v1277 = vmax.f32 %v1258, 0.0
        %v1278 = vmax.f32 %v1259, 0.0
        %v1279 = vmax.f32 %v1260, 0.0
        %v1280 = vmax.f32 %v1261, 0.0
        %v1281 = vmax.f32 %v1262, 0.0
        %v1282 = vmax.f32 %v1263, 0.0
        %v1283 = vmax.f32 %v1264, 0.0
        %v1284 = vmax.f32 %v1265, 0.0
        %v1285 = vmax.f32 %v1266, 0.0
        %v1286 = vsub.f32 %v695, %v1020
        %v1287 = vsub.f32 %v697, %v1020
        %v1288 = vsub.f32 %v826, %v1020
        %v1289 = vsub.f32 %v828, %v1020
        %v1290 = vsub.f32 %v699, %v1021
        %v1291 = vsub.f32 %v701, %v1021
        %v1292 = vsub.f32 %v830, %v1021
        %v1293 = vsub.f32 %v832, %v1021
        %v1294 = vsub.f32 %v705, %v1022
        %v1295 = vsub.f32 %v707, %v1022
        %v1296 = vsub.f32 %v836, %v1022
        %v1297 = vsub.f32 %v838, %v1022
        %v1298 = vsub.f32 %v709, %v1023
        %v1299 = vsub.f32 %v711, %v1023
        %v1300 = vsub.f32 %v840, %v1023
        %v1301 = vsub.f32 %v842, %v1023
        %v1302 = vsub.f32 %v715, %v1024
        %v1303 = vsub.f32 %v717, %v1024
        %v1304 = vsub.f32 %v846, %v1024
        %v1305 = vsub.f32 %v848, %v1024
        %v1306 = vsub.f32 %v719, %v1025
        %v1307 = vsub.f32 %v721, %v1025
        %v1308 = vsub.f32 %v850, %v1025
        %v1309 = vsub.f32 %v852, %v1025
        %v1310 = vsub.f32 %v725, %v1026
        %v1311 = vsub.f32 %v727, %v1026
        %v1312 = vsub.f32 %v856, %v1026
        %v1313 = vsub.f32 %v858, %v1026
        %v1314 = vsub.f32 %v729, %v1027
        %v1315 = vsub.f32 %v731, %v1027
        %v1316 = vsub.f32 %v860, %v1027
        %v1317 = vsub.f32 %v862, %v1027
        %v1318 = vsub.f32 %v735, %v1028
        %v1319 = vsub.f32 %v737, %v1028
        %v1320 = vsub.f32 %v866, %v1028
        %v1321 = vsub.f32 %v868, %v1028
        %v1322 = vsub.f32 %v739, %v1029
        %v1323 = vsub.f32 %v741, %v1029
        %v1324 = vsub.f32 %v870, %v1029
        %v1325 = vsub.f32 %v872, %v1029
        %v1326 = vsub.f32 %v745, %v1030
        %v1327 = vsub.f32 %v747, %v1030
        %v1328 = vsub.f32 %v876, %v1030
        %v1329 = vsub.f32 %v878, %v1030
        %v1330 = vsub.f32 %v749, %v1031
        %v1331 = vsub.f32 %v751, %v1031
        %v1332 = vsub.f32 %v880, %v1031
        %v1333 = vsub.f32 %v882, %v1031
        %v1334 = vsub.f32 %v755, %v1032
        %v1335 = vsub.f32 %v757, %v1032
        %v1336 = vsub.f32 %v886, %v1032
        %v1337 = vsub.f32 %v888, %v1032
        %v1338 = vsub.f32 %v759, %v1033
        %v1339 = vsub.f32 %v761, %v1033
        %v1340 = vsub.f32 %v890, %v1033
        %v1341 = vsub.f32 %v892, %v1033
        %v1342 = vsub.f32 %v765, %v1034
        %v1343 = vsub.f32 %v767, %v1034
        %v1344 = vsub.f32 %v896, %v1034
        %v1345 = vsub.f32 %v898, %v1034
        %v1346 = vsub.f32 %v769, %v1035
        %v1347 = vsub.f32 %v771, %v1035
        %v1348 = vsub.f32 %v900, %v1035
        %v1349 = vsub.f32 %v902, %v1035
        %v1350 = vsub.f32 %v775, %v1036
        %v1351 = vsub.f32 %v777, %v1036
        %v1352 = vsub.f32 %v906, %v1036
        %v1353 = vsub.f32 %v908, %v1036
        %v1354 = vsub.f32 %v779, %v1037
        %v1355 = vsub.f32 %v781, %v1037
        %v1356 = vsub.f32 %v910, %v1037
        %v1357 = vsub.f32 %v912, %v1037
        %v1358 = vsub.f32 %v785, %v1038
        %v1359 = vsub.f32 %v787, %v1038
        %v1360 = vsub.f32 %v916, %v1038
        %v1361 = vsub.f32 %v918, %v1038
        %v1362 = vadd.f32 %v1267, 1e-05
        %v1363 = vadd.f32 %v1268, 1e-05
        %v1364 = vadd.f32 %v1269, 1e-05
        %v1365 = vadd.f32 %v1270, 1e-05
        %v1366 = vadd.f32 %v1271, 1e-05
        %v1367 = vadd.f32 %v1272, 1e-05
        %v1368 = vadd.f32 %v1273, 1e-05
        %v1369 = vadd.f32 %v1274, 1e-05
        %v1370 = vadd.f32 %v1275, 1e-05
        %v1371 = vadd.f32 %v1276, 1e-05
        %v1372 = vadd.f32 %v1277, 1e-05
        %v1373 = vadd.f32 %v1278, 1e-05
        %v1374 = vadd.f32 %v1279, 1e-05
        %v1375 = vadd.f32 %v1280, 1e-05
        %v1376 = vadd.f32 %v1281, 1e-05
        %v1377 = vadd.f32 %v1282, 1e-05
        %v1378 = vadd.f32 %v1283, 1e-05
        %v1379 = vadd.f32 %v1284, 1e-05
        %v1380 = vadd.f32 %v1285, 1e-05
        %v1381 = vrsqrt.pop %v1362
        %v1382 = vrsqrt.pop %v1363
        %v1383 = vrsqrt.pop %v1364
        %v1384 = vrsqrt.pop %v1365
        %v1385 = vrsqrt.pop %v1366
        %v1386 = vrsqrt.pop %v1367
        %v1387 = vrsqrt.pop %v1368
        %v1388 = vrsqrt.pop %v1369
        %v1389 = vrsqrt.pop %v1370
        %v1390 = vrsqrt.pop %v1371
        %v1391 = vrsqrt.pop %v1372
        %v1392 = vrsqrt.pop %v1373
        %v1393 = vrsqrt.pop %v1374
        %v1394 = vrsqrt.pop %v1375
        %v1395 = vrsqrt.pop %v1376
        %v1396 = vrsqrt.pop %v1377
        %v1397 = vrsqrt.pop %v1378
        %v1398 = vrsqrt.pop %v1379
        %v1399 = vrsqrt.pop %v1380
        %v1400 = vmul.f32 %v1286, %v1381
        %v1401 = vmul.f32 %v1287, %v1381
        %v1402 = vmul.f32 %v1288, %v1381
        %v1403 = vmul.f32 %v1289, %v1381
        %v1404 = vmul.f32 %v1290, %v1382
        %v1405 = vmul.f32 %v1291, %v1382
        %v1406 = vmul.f32 %v1292, %v1382
        %v1407 = vmul.f32 %v1293, %v1382
        %v1408 = vmul.f32 %v1294, %v1383
        %v1409 = vmul.f32 %v1295, %v1383
        %v1410 = vmul.f32 %v1296, %v1383
        %v1411 = vmul.f32 %v1297, %v1383
        %v1412 = vmul.f32 %v1298, %v1384
        %v1413 = vmul.f32 %v1299, %v1384
        %v1414 = vmul.f32 %v1300, %v1384
        %v1415 = vmul.f32 %v1301, %v1384
        %v1416 = vmul.f32 %v1302, %v1385
        %v1417 = vmul.f32 %v1303, %v1385
        %v1418 = vmul.f32 %v1304, %v1385
        %v1419 = vmul.f32 %v1305, %v1385
        %v1420 = vmul.f32 %v1306, %v1386
        %v1421 = vmul.f32 %v1307, %v1386
        %v1422 = vmul.f32 %v1308, %v1386
        %v1423 = vmul.f32 %v1309, %v1386
        %v1424 = vmul.f32 %v1310, %v1387
        %v1425 = vmul.f32 %v1311, %v1387
        %v1426 = vmul.f32 %v1312, %v1387
        %v1427 = vmul.f32 %v1313, %v1387
        %v1428 = vmul.f32 %v1314, %v1388
        %v1429 = vmul.f32 %v1315, %v1388
        %v1430 = vmul.f32 %v1316, %v1388
        %v1431 = vmul.f32 %v1317, %v1388
        %v1432 = vmul.f32 %v1318, %v1389
        %v1433 = vmul.f32 %v1319, %v1389
        %v1434 = vmul.f32 %v1320, %v1389
        %v1435 = vmul.f32 %v1321, %v1389
        %v1436 = vmul.f32 %v1322, %v1390
        %v1437 = vmul.f32 %v1323, %v1390
        %v1438 = vmul.f32 %v1324, %v1390
        %v1439 = vmul.f32 %v1325, %v1390
        %v1440 = vmul.f32 %v1326, %v1391
        %v1441 = vmul.f32 %v1327, %v1391
        %v1442 = vmul.f32 %v1328, %v1391
        %v1443 = vmul.f32 %v1329, %v1391
        %v1444 = vmul.f32 %v1330, %v1392
        %v1445 = vmul.f32 %v1331, %v1392
        %v1446 = vmul.f32 %v1332, %v1392
        %v1447 = vmul.f32 %v1333, %v1392
        %v1448 = vmul.f32 %v1334, %v1393
        %v1449 = vmul.f32 %v1335, %v1393
        %v1450 = vmul.f32 %v1336, %v1393
        %v1451 = vmul.f32 %v1337, %v1393
        %v1452 = vmul.f32 %v1338, %v1394
        %v1453 = vmul.f32 %v1339, %v1394
        %v1454 = vmul.f32 %v1340, %v1394
        %v1455 = vmul.f32 %v1341, %v1394
        %v1456 = vmul.f32 %v1342, %v1395
        %v1457 = vmul.f32 %v1343, %v1395
        %v1458 = vmul.f32 %v1344, %v1395
        %v1459 = vmul.f32 %v1345, %v1395
        %v1460 = vmul.f32 %v1346, %v1396
        %v1461 = vmul.f32 %v1347, %v1396
        %v1462 = vmul.f32 %v1348, %v1396
        %v1463 = vmul.f32 %v1349, %v1396
        %v1464 = vmul.f32 %v1350, %v1397
        %v1465 = vmul.f32 %v1351, %v1397
        %v1466 = vmul.f32 %v1352, %v1397
        %v1467 = vmul.f32 %v1353, %v1397
        %v1468 = vmul.f32 %v1354, %v1398
        %v1469 = vmul.f32 %v1355, %v1398
        %v1470 = vmul.f32 %v1356, %v1398
        %v1471 = vmul.f32 %v1357, %v1398
        %v1472 = vmul.f32 %v1358, %v1399
        %v1473 = vmul.f32 %v1359, %v1399
        %v1474 = vmul.f32 %v1360, %v1399
        %v1475 = vmul.f32 %v1361, %v1399
        %v1476 = vpack.c.bf16 %v1404, %v1400
        %v1477 = vpack.c.bf16 %v1405, %v1401
        %v1478 = vpack.c.bf16 %v1406, %v1402
        %v1479 = vpack.c.bf16 %v1407, %v1403
        %v1480 = vpack.c.bf16 %v1412, %v1408
        %v1481 = vpack.c.bf16 %v1413, %v1409
        %v1482 = vpack.c.bf16 %v1414, %v1410
        %v1483 = vpack.c.bf16 %v1415, %v1411
        %v1484 = vpack.c.bf16 %v1420, %v1416
        %v1485 = vpack.c.bf16 %v1421, %v1417
        %v1486 = vpack.c.bf16 %v1422, %v1418
        %v1487 = vpack.c.bf16 %v1423, %v1419
        %v1488 = vpack.c.bf16 %v1428, %v1424
        %v1489 = vpack.c.bf16 %v1429, %v1425
        %v1490 = vpack.c.bf16 %v1430, %v1426
        %v1491 = vpack.c.bf16 %v1431, %v1427
        %v1492 = vpack.c.bf16 %v1436, %v1432
        %v1493 = vpack.c.bf16 %v1437, %v1433
        %v1494 = vpack.c.bf16 %v1438, %v1434
        %v1495 = vpack.c.bf16 %v1439, %v1435
        %v1496 = vpack.c.bf16 %v1444, %v1440
        %v1497 = vpack.c.bf16 %v1445, %v1441
        %v1498 = vpack.c.bf16 %v1446, %v1442
        %v1499 = vpack.c.bf16 %v1447, %v1443
        %v1500 = vpack.c.bf16 %v1452, %v1448
        %v1501 = vpack.c.bf16 %v1453, %v1449
        %v1502 = vpack.c.bf16 %v1454, %v1450
        %v1503 = vpack.c.bf16 %v1455, %v1451
        %v1504 = vpack.c.bf16 %v1460, %v1456
        %v1505 = vpack.c.bf16 %v1461, %v1457
        %v1506 = vpack.c.bf16 %v1462, %v1458
        %v1507 = vpack.c.bf16 %v1463, %v1459
        %v1508 = vpack.c.bf16 %v1468, %v1464
        %v1509 = vpack.c.bf16 %v1469, %v1465
        %v1510 = vpack.c.bf16 %v1470, %v1466
        %v1511 = vpack.c.bf16 %v1471, %v1467
        %v1512 = vpack.c.bf16 %v1472, %v1472
        %v1513 = vpack.c.bf16 %v1473, %v1473
        %v1514 = vpack.c.bf16 %v1474, %v1474
        %v1515 = vpack.c.bf16 %v1475, %v1475
        %v1517 = vlaneseq
        %v1518 = vshrl.u32 %v1517, 7
        %v1519 = vsub.s32 0, %v1518
        %v1520 = vrot.slane %v922, %v1519
        %v1521 = vlaneseq
        %v1522 = vshrl.u32 %v1521, 7
        %v1523 = vsub.s32 1, %v1522
        %v1524 = vrot.slane %v922, %v1523
        %v1525 = vlaneseq
        %v1526 = vshrl.u32 %v1525, 7
        %v1527 = vsub.s32 2, %v1526
        %v1528 = vrot.slane %v922, %v1527
        %v1529 = vlaneseq
        %v1530 = vshrl.u32 %v1529, 7
        %v1531 = vsub.s32 3, %v1530
        %v1532 = vrot.slane %v922, %v1531
        %v1537 = vpack.c.bf16 %v1520, %v1520
        %v1538 = vpack.c.bf16 %v1524, %v1524
        %v1539 = vpack.c.bf16 %v1528, %v1528
        %v1540 = vpack.c.bf16 %v1532, %v1532
        %v1542 = vpack.i.b16 %v1537, %v1537
        %v1544 = vlaneseq
        %v1545 = vshrl.u32 %v1544, 7
        %v1546 = vsub.s32 0, %v1545
        %v1547 = vrot.slane %v1542, %v1546
        %v1549 = vpack.i.b16 %v1538, %v1538
        %v1551 = vlaneseq
        %v1552 = vshrl.u32 %v1551, 7
        %v1553 = vsub.s32 0, %v1552
        %v1554 = vrot.slane %v1549, %v1553
        %v1556 = vpack.i.b16 %v1539, %v1539
        %v1558 = vlaneseq
        %v1559 = vshrl.u32 %v1558, 7
        %v1560 = vsub.s32 0, %v1559
        %v1561 = vrot.slane %v1556, %v1560
        %v1563 = vpack.i.b16 %v1540, %v1540
        %v1565 = vlaneseq
        %v1566 = vshrl.u32 %v1565, 7
        %v1567 = vsub.s32 0, %v1566
        %v1568 = vrot.slane %v1563, %v1567
        %v1569 = vmul.bf16 %v1476, %v1547
        %v1570 = vmul.bf16 %v1477, %v1554
        %v1571 = vmul.bf16 %v1478, %v1561
        %v1572 = vmul.bf16 %v1479, %v1568
        %v1573 = vmul.bf16 %v1480, %v1547
        %v1574 = vmul.bf16 %v1481, %v1554
        %v1575 = vmul.bf16 %v1482, %v1561
        %v1576 = vmul.bf16 %v1483, %v1568
        %v1577 = vmul.bf16 %v1484, %v1547
        %v1578 = vmul.bf16 %v1485, %v1554
        %v1579 = vmul.bf16 %v1486, %v1561
        %v1580 = vmul.bf16 %v1487, %v1568
        %v1581 = vmul.bf16 %v1488, %v1547
        %v1582 = vmul.bf16 %v1489, %v1554
        %v1583 = vmul.bf16 %v1490, %v1561
        %v1584 = vmul.bf16 %v1491, %v1568
        %v1585 = vmul.bf16 %v1492, %v1547
        %v1586 = vmul.bf16 %v1493, %v1554
        %v1587 = vmul.bf16 %v1494, %v1561
        %v1588 = vmul.bf16 %v1495, %v1568
        %v1589 = vmul.bf16 %v1496, %v1547
        %v1590 = vmul.bf16 %v1497, %v1554
        %v1591 = vmul.bf16 %v1498, %v1561
        %v1592 = vmul.bf16 %v1499, %v1568
        %v1593 = vmul.bf16 %v1500, %v1547
        %v1594 = vmul.bf16 %v1501, %v1554
        %v1595 = vmul.bf16 %v1502, %v1561
        %v1596 = vmul.bf16 %v1503, %v1568
        %v1597 = vmul.bf16 %v1504, %v1547
        %v1598 = vmul.bf16 %v1505, %v1554
        %v1599 = vmul.bf16 %v1506, %v1561
        %v1600 = vmul.bf16 %v1507, %v1568
        %v1601 = vmul.bf16 %v1508, %v1547
        %v1602 = vmul.bf16 %v1509, %v1554
        %v1603 = vmul.bf16 %v1510, %v1561
        %v1604 = vmul.bf16 %v1511, %v1568
        %v1605 = vmul.bf16 %v1512, %v1547
        %v1606 = vmul.bf16 %v1513, %v1554
        %v1607 = vmul.bf16 %v1514, %v1561
        %v1608 = vmul.bf16 %v1515, %v1568
        %v1610 = vlaneseq
        %v1611 = vshrl.u32 %v1610, 7
        %v1612 = vsub.s32 0, %v1611
        %v1613 = vrot.slane %v923, %v1612
        %v1614 = vlaneseq
        %v1615 = vshrl.u32 %v1614, 7
        %v1616 = vsub.s32 1, %v1615
        %v1617 = vrot.slane %v923, %v1616
        %v1618 = vlaneseq
        %v1619 = vshrl.u32 %v1618, 7
        %v1620 = vsub.s32 2, %v1619
        %v1621 = vrot.slane %v923, %v1620
        %v1622 = vlaneseq
        %v1623 = vshrl.u32 %v1622, 7
        %v1624 = vsub.s32 3, %v1623
        %v1625 = vrot.slane %v923, %v1624
        %v1630 = vpack.c.bf16 %v1613, %v1613
        %v1631 = vpack.c.bf16 %v1617, %v1617
        %v1632 = vpack.c.bf16 %v1621, %v1621
        %v1633 = vpack.c.bf16 %v1625, %v1625
        %v1635 = vpack.i.b16 %v1630, %v1630
        %v1637 = vlaneseq
        %v1638 = vshrl.u32 %v1637, 7
        %v1639 = vsub.s32 0, %v1638
        %v1640 = vrot.slane %v1635, %v1639
        %v1642 = vpack.i.b16 %v1631, %v1631
        %v1644 = vlaneseq
        %v1645 = vshrl.u32 %v1644, 7
        %v1646 = vsub.s32 0, %v1645
        %v1647 = vrot.slane %v1642, %v1646
        %v1649 = vpack.i.b16 %v1632, %v1632
        %v1651 = vlaneseq
        %v1652 = vshrl.u32 %v1651, 7
        %v1653 = vsub.s32 0, %v1652
        %v1654 = vrot.slane %v1649, %v1653
        %v1656 = vpack.i.b16 %v1633, %v1633
        %v1658 = vlaneseq
        %v1659 = vshrl.u32 %v1658, 7
        %v1660 = vsub.s32 0, %v1659
        %v1661 = vrot.slane %v1656, %v1660
        %v1662 = vadd.bf16 %v1569, %v1640
        %v1663 = vadd.bf16 %v1570, %v1647
        %v1664 = vadd.bf16 %v1571, %v1654
        %v1665 = vadd.bf16 %v1572, %v1661
        %v1666 = vadd.bf16 %v1573, %v1640
        %v1667 = vadd.bf16 %v1574, %v1647
        %v1668 = vadd.bf16 %v1575, %v1654
        %v1669 = vadd.bf16 %v1576, %v1661
        %v1670 = vadd.bf16 %v1577, %v1640
        %v1671 = vadd.bf16 %v1578, %v1647
        %v1672 = vadd.bf16 %v1579, %v1654
        %v1673 = vadd.bf16 %v1580, %v1661
        %v1674 = vadd.bf16 %v1581, %v1640
        %v1675 = vadd.bf16 %v1582, %v1647
        %v1676 = vadd.bf16 %v1583, %v1654
        %v1677 = vadd.bf16 %v1584, %v1661
        %v1678 = vadd.bf16 %v1585, %v1640
        %v1679 = vadd.bf16 %v1586, %v1647
        %v1680 = vadd.bf16 %v1587, %v1654
        %v1681 = vadd.bf16 %v1588, %v1661
        %v1682 = vadd.bf16 %v1589, %v1640
        %v1683 = vadd.bf16 %v1590, %v1647
        %v1684 = vadd.bf16 %v1591, %v1654
        %v1685 = vadd.bf16 %v1592, %v1661
        %v1686 = vadd.bf16 %v1593, %v1640
        %v1687 = vadd.bf16 %v1594, %v1647
        %v1688 = vadd.bf16 %v1595, %v1654
        %v1689 = vadd.bf16 %v1596, %v1661
        %v1690 = vadd.bf16 %v1597, %v1640
        %v1691 = vadd.bf16 %v1598, %v1647
        %v1692 = vadd.bf16 %v1599, %v1654
        %v1693 = vadd.bf16 %v1600, %v1661
        %v1694 = vadd.bf16 %v1601, %v1640
        %v1695 = vadd.bf16 %v1602, %v1647
        %v1696 = vadd.bf16 %v1603, %v1654
        %v1697 = vadd.bf16 %v1604, %v1661
        %v1698 = vadd.bf16 %v1605, %v1640
        %v1699 = vadd.bf16 %v1606, %v1647
        %v1700 = vadd.bf16 %v1607, %v1654
        %v1701 = vadd.bf16 %v1608, %v1661
        %v1702 = vmax.bf16 %v1662, 0
        %v1703 = vmax.bf16 %v1663, 0
        %v1704 = vmax.bf16 %v1664, 0
        %v1705 = vmax.bf16 %v1665, 0
        %v1706 = vmax.bf16 %v1666, 0
        %v1707 = vmax.bf16 %v1667, 0
        %v1708 = vmax.bf16 %v1668, 0
        %v1709 = vmax.bf16 %v1669, 0
        %v1710 = vmax.bf16 %v1670, 0
        %v1711 = vmax.bf16 %v1671, 0
        %v1712 = vmax.bf16 %v1672, 0
        %v1713 = vmax.bf16 %v1673, 0
        %v1714 = vmax.bf16 %v1674, 0
        %v1715 = vmax.bf16 %v1675, 0
        %v1716 = vmax.bf16 %v1676, 0
        %v1717 = vmax.bf16 %v1677, 0
        %v1718 = vmax.bf16 %v1678, 0
        %v1719 = vmax.bf16 %v1679, 0
        %v1720 = vmax.bf16 %v1680, 0
        %v1721 = vmax.bf16 %v1681, 0
        %v1722 = vmax.bf16 %v1682, 0
        %v1723 = vmax.bf16 %v1683, 0
        %v1724 = vmax.bf16 %v1684, 0
        %v1725 = vmax.bf16 %v1685, 0
        %v1726 = vmax.bf16 %v1686, 0
        %v1727 = vmax.bf16 %v1687, 0
        %v1728 = vmax.bf16 %v1688, 0
        %v1729 = vmax.bf16 %v1689, 0
        %v1730 = vmax.bf16 %v1690, 0
        %v1731 = vmax.bf16 %v1691, 0
        %v1732 = vmax.bf16 %v1692, 0
        %v1733 = vmax.bf16 %v1693, 0
        %v1734 = vmax.bf16 %v1694, 0
        %v1735 = vmax.bf16 %v1695, 0
        %v1736 = vmax.bf16 %v1696, 0
        %v1737 = vmax.bf16 %v1697, 0
        %v1738 = vmax.bf16 %v1698, 0
        %v1739 = vmax.bf16 %v1699, 0
        %v1740 = vmax.bf16 %v1700, 0
        %v1741 = vmax.bf16 %v1701, 0
        %v1742 = vld [vmem:[#allocation3] sm:$0xff]
        %v1743 = vld [vmem:[#allocation3 + $0x8] sm:$0xff]
        %v1744 = vld [vmem:[#allocation3 + $0x10] sm:$0xff]
        %v1745 = vld [vmem:[#allocation3 + $0x18] sm:$0xff]
        %v1746 = vld [vmem:[#allocation3 + $0x20] sm:$0xff]
        %v1747 = vld [vmem:[#allocation3 + $0x28] sm:$0xff]
        %v1748 = vld [vmem:[#allocation3 + $0x30] sm:$0xff]
        %v1749 = vld [vmem:[#allocation3 + $0x38] sm:$0xff]
        %v1750 = vld [vmem:[#allocation3 + $0x40] sm:$0xff]
        %v1751 = vld [vmem:[#allocation3 + $0x48] sm:$0xff]
        %v1752 = vld [vmem:[#allocation3 + $0x50] sm:$0xff]
        %v1753 = vld [vmem:[#allocation3 + $0x58] sm:$0xff]
        %v1754 = vld [vmem:[#allocation3 + $0x60] sm:$0xff]
        %v1755 = vld [vmem:[#allocation3 + $0x68] sm:$0xff]
        %v1756 = vld [vmem:[#allocation3 + $0x70] sm:$0xff]
        %v1757 = vld [vmem:[#allocation3 + $0x78] sm:$0xff]
        %v1758 = vld [vmem:[#allocation3 + $0x80] sm:$0xff]
        %v1759 = vld [vmem:[#allocation3 + $0x88] sm:$0xff]
        %v1760 = vld [vmem:[#allocation3 + $0x90] sm:$0xff]
        %v1761 = vld [vmem:[#allocation3 + $0x98] sm:$0xff]
        %v1762 = vld [vmem:[#allocation3 + $0xa0] sm:$0xff]
        %v1763 = vld [vmem:[#allocation3 + $0xa8] sm:$0xff]
        %v1764 = vld [vmem:[#allocation3 + $0xb0] sm:$0xff]
        %v1765 = vld [vmem:[#allocation3 + $0xb8] sm:$0xff]
        %v1766 = vld [vmem:[#allocation3 + $0xc0] sm:$0xff]
        %v1767 = vld [vmem:[#allocation3 + $0xc8] sm:$0xff]
        %v1768 = vld [vmem:[#allocation3 + $0xd0] sm:$0xff]
        %v1769 = vld [vmem:[#allocation3 + $0xd8] sm:$0xff]
        %v1770 = vld [vmem:[#allocation3 + $0xe0] sm:$0xff]
        %v1771 = vld [vmem:[#allocation3 + $0xe8] sm:$0xff]
        %v1772 = vld [vmem:[#allocation3 + $0xf0] sm:$0xff]
        %v1773 = vld [vmem:[#allocation3 + $0xf8] sm:$0xff]
        %v1774 = vld [vmem:[#allocation3 + $0x100] sm:$0xff]
        %v1775 = vld [vmem:[#allocation3 + $0x108] sm:$0xff]
        %v1776 = vld [vmem:[#allocation3 + $0x110] sm:$0xff]
        %v1777 = vld [vmem:[#allocation3 + $0x118] sm:$0xff]
        %v1778 = vld [vmem:[#allocation3 + $0x120] sm:$0xff]
        %v1779 = vld [vmem:[#allocation3 + $0x128] sm:$0xff]
        %v1780 = vld [vmem:[#allocation3 + $0x130] sm:$0xff]
        %v1781 = vld [vmem:[#allocation3 + $0x138] sm:$0xff]
        %v1782 = vld [vmem:[#allocation3 + $0x140] sm:$0xff]
        %v1783 = vld [vmem:[#allocation3 + $0x148] sm:$0xff]
        %v1784 = vld [vmem:[#allocation3 + $0x150] sm:$0xff]
        %v1785 = vld [vmem:[#allocation3 + $0x158] sm:$0xff]
        %v1786 = vld [vmem:[#allocation3 + $0x160] sm:$0xff]
        %v1787 = vld [vmem:[#allocation3 + $0x168] sm:$0xff]
        %v1788 = vld [vmem:[#allocation3 + $0x170] sm:$0xff]
        %v1789 = vld [vmem:[#allocation3 + $0x178] sm:$0xff]
        %v1790 = vld [vmem:[#allocation3 + $0x180] sm:$0xff]
        %v1791 = vld [vmem:[#allocation3 + $0x188] sm:$0xff]
        %v1792 = vld [vmem:[#allocation3 + $0x190] sm:$0xff]
        %v1793 = vld [vmem:[#allocation3 + $0x198] sm:$0xff]
        %v1794 = vld [vmem:[#allocation3 + $0x1a0] sm:$0xff]
        %v1795 = vld [vmem:[#allocation3 + $0x1a8] sm:$0xff]
        %v1796 = vld [vmem:[#allocation3 + $0x1b0] sm:$0xff]
        %v1797 = vld [vmem:[#allocation3 + $0x1b8] sm:$0xff]
        %v1798 = vld [vmem:[#allocation3 + $0x1c0] sm:$0xff]
        %v1799 = vld [vmem:[#allocation3 + $0x1c8] sm:$0xff]
        %v1800 = vld [vmem:[#allocation3 + $0x1d0] sm:$0xff]
        %v1801 = vld [vmem:[#allocation3 + $0x1d8] sm:$0xff]
        %v1802 = vld [vmem:[#allocation3 + $0x1e0] sm:$0xff]
        %v1803 = vld [vmem:[#allocation3 + $0x1e8] sm:$0xff]
        %v1804 = vld [vmem:[#allocation3 + $0x1f0] sm:$0xff]
        %v1805 = vld [vmem:[#allocation3 + $0x1f8] sm:$0xff]
        %v1806 = vld [vmem:[#allocation3 + $0x200] sm:$0xff]
        %v1807 = vld [vmem:[#allocation3 + $0x208] sm:$0xff]
        %v1808 = vld [vmem:[#allocation3 + $0x210] sm:$0xff]
        %v1809 = vld [vmem:[#allocation3 + $0x218] sm:$0xff]
        %v1810 = vld [vmem:[#allocation3 + $0x220] sm:$0xff]
        %v1811 = vld [vmem:[#allocation3 + $0x228] sm:$0xff]
        %v1812 = vld [vmem:[#allocation3 + $0x230] sm:$0xff]
        %v1813 = vld [vmem:[#allocation3 + $0x238] sm:$0xff]
        %v1814 = vld [vmem:[#allocation3 + $0x240] sm:$0xff]
        %v1815 = vld [vmem:[#allocation3 + $0x248] sm:$0xff]
        %v1816 = vld [vmem:[#allocation3 + $0x250] sm:$0xff]
        %v1817 = vld [vmem:[#allocation3 + $0x258] sm:$0xff]
        %v1818 = vld [vmem:[#allocation3 + $0x260] sm:$0xff]
        %v1819 = vld [vmem:[#allocation3 + $0x268] sm:$0xff]
        %v1820 = vld [vmem:[#allocation3 + $0x270] sm:$0xff]
        %v1821 = vld [vmem:[#allocation3 + $0x278] sm:$0xff]
        %v1822 = vld [vmem:[#allocation3 + $0x280] sm:$0xff]
        %v1823 = vld [vmem:[#allocation3 + $0x288] sm:$0xff]
        %v1824 = vld [vmem:[#allocation3 + $0x290] sm:$0xff]
        %v1825 = vld [vmem:[#allocation3 + $0x298] sm:$0xff]
        %v1826 = vld [vmem:[#allocation3 + $0x2a0] sm:$0xff]
        %v1827 = vld [vmem:[#allocation3 + $0x2a8] sm:$0xff]
        %v1828 = vld [vmem:[#allocation3 + $0x2b0] sm:$0xff]
        %v1829 = vld [vmem:[#allocation3 + $0x2b8] sm:$0xff]
        %v1830 = vld [vmem:[#allocation3 + $0x2c0] sm:$0xff]
        %v1831 = vld [vmem:[#allocation3 + $0x2c8] sm:$0xff]
        %v1832 = vld [vmem:[#allocation3 + $0x2d0] sm:$0xff]
        %v1833 = vld [vmem:[#allocation3 + $0x2d8] sm:$0xff]
        %v1834 = vld [vmem:[#allocation3 + $0x2e0] sm:$0xff]
        %v1835 = vld [vmem:[#allocation3 + $0x2e8] sm:$0xff]
        %v1836 = vld [vmem:[#allocation3 + $0x2f0] sm:$0xff]
        %v1837 = vld [vmem:[#allocation3 + $0x2f8] sm:$0xff]
        %v1838 = vld [vmem:[#allocation3 + $0x300] sm:$0xff]
        %v1839 = vld [vmem:[#allocation3 + $0x308] sm:$0xff]
        %v1840 = vld [vmem:[#allocation3 + $0x310] sm:$0xff]
        %v1841 = vld [vmem:[#allocation3 + $0x318] sm:$0xff]
        %v1842 = vld [vmem:[#allocation3 + $0x320] sm:$0xff]
        %v1843 = vld [vmem:[#allocation3 + $0x328] sm:$0xff]
        %v1844 = vld [vmem:[#allocation3 + $0x330] sm:$0xff]
        %v1845 = vld [vmem:[#allocation3 + $0x338] sm:$0xff]
        %v1846 = vld [vmem:[#allocation3 + $0x340] sm:$0xff]
        %v1847 = vld [vmem:[#allocation3 + $0x348] sm:$0xff]
        %v1848 = vld [vmem:[#allocation3 + $0x350] sm:$0xff]
        %v1849 = vld [vmem:[#allocation3 + $0x358] sm:$0xff]
        %v1850 = vld [vmem:[#allocation3 + $0x360] sm:$0xff]
        %v1851 = vld [vmem:[#allocation3 + $0x368] sm:$0xff]
        %v1852 = vld [vmem:[#allocation3 + $0x370] sm:$0xff]
        %v1853 = vld [vmem:[#allocation3 + $0x378] sm:$0xff]
        %v1854 = vld [vmem:[#allocation3 + $0x380] sm:$0xff]
        %v1855 = vld [vmem:[#allocation3 + $0x388] sm:$0xff]
        %v1856 = vld [vmem:[#allocation3 + $0x390] sm:$0xff]
        %v1857 = vld [vmem:[#allocation3 + $0x398] sm:$0xff]
        %v1858 = vld [vmem:[#allocation3 + $0x3a0] sm:$0xff]
        %v1859 = vld [vmem:[#allocation3 + $0x3a8] sm:$0xff]
        %v1860 = vld [vmem:[#allocation3 + $0x3b0] sm:$0xff]
        %v1861 = vld [vmem:[#allocation3 + $0x3b8] sm:$0xff]
        %v1862 = vld [vmem:[#allocation3 + $0x3c0] sm:$0xff]
        %v1863 = vld [vmem:[#allocation3 + $0x3c8] sm:$0xff]
        %v1864 = vld [vmem:[#allocation3 + $0x3d0] sm:$0xff]
        %v1865 = vld [vmem:[#allocation3 + $0x3d8] sm:$0xff]
        %v1866 = vld [vmem:[#allocation3 + $0x3e0] sm:$0xff]
        %v1867 = vld [vmem:[#allocation3 + $0x3e8] sm:$0xff]
        %v1868 = vld [vmem:[#allocation3 + $0x3f0] sm:$0xff]
        %v1869 = vld [vmem:[#allocation3 + $0x3f8] sm:$0xff]
        %v1870 = vld [vmem:[%s6] sm:$0xf]
        %v1872 = vlaneseq
        %v1873 = vshrl.u32 %v1872, 7
        %v1874 = vsub.s32 0, %v1873
        %v1875 = vrot.slane %v1870, %v1874
        %v1876 = vlaneseq
        %v1877 = vshrl.u32 %v1876, 7
        %v1878 = vsub.s32 1, %v1877
        %v1879 = vrot.slane %v1870, %v1878
        %v1880 = vlaneseq
        %v1881 = vshrl.u32 %v1880, 7
        %v1882 = vsub.s32 2, %v1881
        %v1883 = vrot.slane %v1870, %v1882
        %v1884 = vlaneseq
        %v1885 = vshrl.u32 %v1884, 7
        %v1886 = vsub.s32 3, %v1885
        %v1887 = vrot.slane %v1870, %v1886
        %v2020 = vunpack.c.l.b16 %v1742
        %v2021 = vunpack.c.h.b16 %v1742
        %v2022 = vunpack.c.l.b16 %v1743
        %v2023 = vunpack.c.h.b16 %v1743
        %v2024 = vunpack.c.l.b16 %v1744
        %v2025 = vunpack.c.h.b16 %v1744
        %v2026 = vunpack.c.l.b16 %v1745
        %v2027 = vunpack.c.h.b16 %v1745
        %v2028 = vunpack.c.l.b16 %v1746
        %v2029 = vunpack.c.h.b16 %v1746
        %v2030 = vunpack.c.l.b16 %v1747
        %v2031 = vunpack.c.h.b16 %v1747
        %v2032 = vunpack.c.l.b16 %v1748
        %v2033 = vunpack.c.h.b16 %v1748
        %v2034 = vunpack.c.l.b16 %v1749
        %v2035 = vunpack.c.h.b16 %v1749
        %v2036 = vunpack.c.l.b16 %v1750
        %v2037 = vunpack.c.h.b16 %v1750
        %v2038 = vunpack.c.l.b16 %v1751
        %v2039 = vunpack.c.h.b16 %v1751
        %v2040 = vunpack.c.l.b16 %v1752
        %v2041 = vunpack.c.h.b16 %v1752
        %v2042 = vunpack.c.l.b16 %v1753
        %v2043 = vunpack.c.h.b16 %v1753
        %v2044 = vunpack.c.l.b16 %v1754
        %v2045 = vunpack.c.h.b16 %v1754
        %v2046 = vunpack.c.l.b16 %v1755
        %v2047 = vunpack.c.h.b16 %v1755
        %v2048 = vunpack.c.l.b16 %v1756
        %v2049 = vunpack.c.h.b16 %v1756
        %v2050 = vunpack.c.l.b16 %v1757
        %v2051 = vunpack.c.h.b16 %v1757
        %v2052 = vunpack.c.l.b16 %v1758
        %v2053 = vunpack.c.h.b16 %v1758
        %v2054 = vunpack.c.l.b16 %v1759
        %v2055 = vunpack.c.h.b16 %v1759
        %v2056 = vunpack.c.l.b16 %v1760
        %v2057 = vunpack.c.h.b16 %v1760
        %v2058 = vunpack.c.l.b16 %v1761
        %v2059 = vunpack.c.h.b16 %v1761
        %v2060 = vunpack.c.l.b16 %v1762
        %v2061 = vunpack.c.h.b16 %v1762
        %v2062 = vunpack.c.l.b16 %v1763
        %v2063 = vunpack.c.h.b16 %v1763
        %v2064 = vunpack.c.l.b16 %v1764
        %v2065 = vunpack.c.h.b16 %v1764
        %v2066 = vunpack.c.l.b16 %v1765
        %v2067 = vunpack.c.h.b16 %v1765
        %v2068 = vunpack.c.l.b16 %v1766
        %v2069 = vunpack.c.h.b16 %v1766
        %v2070 = vunpack.c.l.b16 %v1767
        %v2071 = vunpack.c.h.b16 %v1767
        %v2072 = vunpack.c.l.b16 %v1768
        %v2073 = vunpack.c.h.b16 %v1768
        %v2074 = vunpack.c.l.b16 %v1769
        %v2075 = vunpack.c.h.b16 %v1769
        %v2076 = vunpack.c.l.b16 %v1770
        %v2077 = vunpack.c.h.b16 %v1770
        %v2078 = vunpack.c.l.b16 %v1771
        %v2079 = vunpack.c.h.b16 %v1771
        %v2080 = vunpack.c.l.b16 %v1772
        %v2081 = vunpack.c.h.b16 %v1772
        %v2082 = vunpack.c.l.b16 %v1773
        %v2083 = vunpack.c.h.b16 %v1773
        %v2084 = vunpack.c.l.b16 %v1774
        %v2085 = vunpack.c.h.b16 %v1774
        %v2086 = vunpack.c.l.b16 %v1775
        %v2087 = vunpack.c.h.b16 %v1775
        %v2088 = vunpack.c.l.b16 %v1776
        %v2089 = vunpack.c.h.b16 %v1776
        %v2090 = vunpack.c.l.b16 %v1777
        %v2091 = vunpack.c.h.b16 %v1777
        %v2092 = vunpack.c.l.b16 %v1778
        %v2093 = vunpack.c.h.b16 %v1778
        %v2094 = vunpack.c.l.b16 %v1779
        %v2095 = vunpack.c.h.b16 %v1779
        %v2096 = vunpack.c.l.b16 %v1780
        %v2097 = vunpack.c.h.b16 %v1780
        %v2098 = vunpack.c.l.b16 %v1781
        %v2099 = vunpack.c.h.b16 %v1781
        %v2100 = vunpack.c.l.b16 %v1782
        %v2101 = vunpack.c.h.b16 %v1782
        %v2102 = vunpack.c.l.b16 %v1783
        %v2103 = vunpack.c.h.b16 %v1783
        %v2104 = vunpack.c.l.b16 %v1784
        %v2105 = vunpack.c.h.b16 %v1784
        %v2106 = vunpack.c.l.b16 %v1785
        %v2107 = vunpack.c.h.b16 %v1785
        %v2108 = vunpack.c.l.b16 %v1786
        %v2109 = vunpack.c.h.b16 %v1786
        %v2110 = vunpack.c.l.b16 %v1787
        %v2111 = vunpack.c.h.b16 %v1787
        %v2112 = vunpack.c.l.b16 %v1788
        %v2113 = vunpack.c.h.b16 %v1788
        %v2114 = vunpack.c.l.b16 %v1789
        %v2115 = vunpack.c.h.b16 %v1789
        %v2116 = vunpack.c.l.b16 %v1790
        %v2117 = vunpack.c.h.b16 %v1790
        %v2118 = vunpack.c.l.b16 %v1791
        %v2119 = vunpack.c.h.b16 %v1791
        %v2120 = vunpack.c.l.b16 %v1792
        %v2121 = vunpack.c.h.b16 %v1792
        %v2122 = vunpack.c.l.b16 %v1793
        %v2123 = vunpack.c.h.b16 %v1793
        %v2124 = vunpack.c.l.b16 %v1794
        %v2125 = vunpack.c.h.b16 %v1794
        %v2126 = vunpack.c.l.b16 %v1795
        %v2127 = vunpack.c.h.b16 %v1795
        %v2128 = vunpack.c.l.b16 %v1796
        %v2129 = vunpack.c.h.b16 %v1796
        %v2130 = vunpack.c.l.b16 %v1797
        %v2131 = vunpack.c.h.b16 %v1797
        %v2132 = vunpack.c.l.b16 %v1798
        %v2133 = vunpack.c.h.b16 %v1798
        %v2134 = vunpack.c.l.b16 %v1799
        %v2135 = vunpack.c.h.b16 %v1799
        %v2136 = vunpack.c.l.b16 %v1800
        %v2137 = vunpack.c.h.b16 %v1800
        %v2138 = vunpack.c.l.b16 %v1801
        %v2139 = vunpack.c.h.b16 %v1801
        %v2140 = vunpack.c.l.b16 %v1802
        %v2141 = vunpack.c.h.b16 %v1802
        %v2142 = vunpack.c.l.b16 %v1803
        %v2143 = vunpack.c.h.b16 %v1803
        %v2144 = vunpack.c.l.b16 %v1804
        %v2145 = vunpack.c.h.b16 %v1804
        %v2146 = vunpack.c.l.b16 %v1805
        %v2147 = vunpack.c.h.b16 %v1805
        %v2148 = vunpack.c.l.b16 %v1806
        %v2149 = vunpack.c.h.b16 %v1806
        %v2150 = vunpack.c.l.b16 %v1807
        %v2151 = vunpack.c.h.b16 %v1807
        %v2152 = vunpack.c.l.b16 %v1808
        %v2153 = vunpack.c.h.b16 %v1808
        %v2154 = vunpack.c.l.b16 %v1809
        %v2155 = vunpack.c.h.b16 %v1809
        %v2156 = vunpack.c.l.b16 %v1810
        %v2157 = vunpack.c.h.b16 %v1810
        %v2158 = vunpack.c.l.b16 %v1811
        %v2159 = vunpack.c.h.b16 %v1811
        %v2160 = vunpack.c.l.b16 %v1812
        %v2161 = vunpack.c.h.b16 %v1812
        %v2162 = vunpack.c.l.b16 %v1813
        %v2163 = vunpack.c.h.b16 %v1813
        %v2164 = vunpack.c.l.b16 %v1814
        %v2165 = vunpack.c.h.b16 %v1814
        %v2166 = vunpack.c.l.b16 %v1815
        %v2167 = vunpack.c.h.b16 %v1815
        %v2168 = vunpack.c.l.b16 %v1816
        %v2169 = vunpack.c.h.b16 %v1816
        %v2170 = vunpack.c.l.b16 %v1817
        %v2171 = vunpack.c.h.b16 %v1817
        %v2172 = vunpack.c.l.b16 %v1818
        %v2173 = vunpack.c.h.b16 %v1818
        %v2174 = vunpack.c.l.b16 %v1819
        %v2175 = vunpack.c.h.b16 %v1819
        %v2176 = vunpack.c.l.b16 %v1820
        %v2177 = vunpack.c.h.b16 %v1820
        %v2178 = vunpack.c.l.b16 %v1821
        %v2179 = vunpack.c.h.b16 %v1821
        %v2180 = vunpack.c.l.b16 %v1822
        %v2181 = vunpack.c.h.b16 %v1822
        %v2182 = vunpack.c.l.b16 %v1823
        %v2183 = vunpack.c.h.b16 %v1823
        %v2184 = vunpack.c.l.b16 %v1824
        %v2185 = vunpack.c.h.b16 %v1824
        %v2186 = vunpack.c.l.b16 %v1825
        %v2187 = vunpack.c.h.b16 %v1825
        %v2188 = vunpack.c.l.b16 %v1826
        %v2189 = vunpack.c.h.b16 %v1826
        %v2190 = vunpack.c.l.b16 %v1827
        %v2191 = vunpack.c.h.b16 %v1827
        %v2192 = vunpack.c.l.b16 %v1828
        %v2193 = vunpack.c.h.b16 %v1828
        %v2194 = vunpack.c.l.b16 %v1829
        %v2195 = vunpack.c.h.b16 %v1829
        %v2196 = vunpack.c.l.b16 %v1830
        %v2197 = vunpack.c.h.b16 %v1830
        %v2198 = vunpack.c.l.b16 %v1831
        %v2199 = vunpack.c.h.b16 %v1831
        %v2200 = vunpack.c.l.b16 %v1832
        %v2201 = vunpack.c.h.b16 %v1832
        %v2202 = vunpack.c.l.b16 %v1833
        %v2203 = vunpack.c.h.b16 %v1833
        %v2204 = vunpack.c.l.b16 %v1834
        %v2205 = vunpack.c.h.b16 %v1834
        %v2206 = vunpack.c.l.b16 %v1835
        %v2207 = vunpack.c.h.b16 %v1835
        %v2208 = vunpack.c.l.b16 %v1836
        %v2209 = vunpack.c.h.b16 %v1836
        %v2210 = vunpack.c.l.b16 %v1837
        %v2211 = vunpack.c.h.b16 %v1837
        %v2212 = vunpack.c.l.b16 %v1838
        %v2213 = vunpack.c.h.b16 %v1838
        %v2214 = vunpack.c.l.b16 %v1839
        %v2215 = vunpack.c.h.b16 %v1839
        %v2216 = vunpack.c.l.b16 %v1840
        %v2217 = vunpack.c.h.b16 %v1840
        %v2218 = vunpack.c.l.b16 %v1841
        %v2219 = vunpack.c.h.b16 %v1841
        %v2220 = vunpack.c.l.b16 %v1842
        %v2221 = vunpack.c.h.b16 %v1842
        %v2222 = vunpack.c.l.b16 %v1843
        %v2223 = vunpack.c.h.b16 %v1843
        %v2224 = vunpack.c.l.b16 %v1844
        %v2225 = vunpack.c.h.b16 %v1844
        %v2226 = vunpack.c.l.b16 %v1845
        %v2227 = vunpack.c.h.b16 %v1845
        %v2228 = vunpack.c.l.b16 %v1846
        %v2229 = vunpack.c.h.b16 %v1846
        %v2230 = vunpack.c.l.b16 %v1847
        %v2231 = vunpack.c.h.b16 %v1847
        %v2232 = vunpack.c.l.b16 %v1848
        %v2233 = vunpack.c.h.b16 %v1848
        %v2234 = vunpack.c.l.b16 %v1849
        %v2235 = vunpack.c.h.b16 %v1849
        %v2236 = vunpack.c.l.b16 %v1850
        %v2237 = vunpack.c.h.b16 %v1850
        %v2238 = vunpack.c.l.b16 %v1851
        %v2239 = vunpack.c.h.b16 %v1851
        %v2240 = vunpack.c.l.b16 %v1852
        %v2241 = vunpack.c.h.b16 %v1852
        %v2242 = vunpack.c.l.b16 %v1853
        %v2243 = vunpack.c.h.b16 %v1853
        %v2244 = vunpack.c.l.b16 %v1854
        %v2245 = vunpack.c.h.b16 %v1854
        %v2246 = vunpack.c.l.b16 %v1855
        %v2247 = vunpack.c.h.b16 %v1855
        %v2248 = vunpack.c.l.b16 %v1856
        %v2249 = vunpack.c.h.b16 %v1856
        %v2250 = vunpack.c.l.b16 %v1857
        %v2251 = vunpack.c.h.b16 %v1857
        %v2252 = vunpack.c.l.b16 %v1858
        %v2253 = vunpack.c.h.b16 %v1858
        %v2254 = vunpack.c.l.b16 %v1859
        %v2255 = vunpack.c.h.b16 %v1859
        %v2256 = vunpack.c.l.b16 %v1860
        %v2257 = vunpack.c.h.b16 %v1860
        %v2258 = vunpack.c.l.b16 %v1861
        %v2259 = vunpack.c.h.b16 %v1861
        %v2260 = vunpack.c.l.b16 %v1862
        %v2261 = vunpack.c.h.b16 %v1862
        %v2262 = vunpack.c.l.b16 %v1863
        %v2263 = vunpack.c.h.b16 %v1863
        %v2264 = vunpack.c.l.b16 %v1864
        %v2265 = vunpack.c.h.b16 %v1864
        %v2266 = vunpack.c.l.b16 %v1865
        %v2267 = vunpack.c.h.b16 %v1865
        %v2268 = vunpack.c.l.b16 %v1866
        %v2269 = vunpack.c.h.b16 %v1866
        %v2270 = vunpack.c.l.b16 %v1867
        %v2271 = vunpack.c.h.b16 %v1867
        %v2272 = vunpack.c.l.b16 %v1868
        %v2273 = vunpack.c.h.b16 %v1868
        %v2274 = vunpack.c.l.b16 %v1869
        %v2275 = vunpack.c.h.b16 %v1869
        %v2276 = vpack.c.b16 %v2024, %v2020
        %v2277 = vpack.c.b16 %v2025, %v2021
        %v2278 = vpack.c.b16 %v2026, %v2022
        %v2279 = vpack.c.b16 %v2027, %v2023
        %v2280 = vpack.c.b16 %v2032, %v2028
        %v2281 = vpack.c.b16 %v2033, %v2029
        %v2282 = vpack.c.b16 %v2034, %v2030
        %v2283 = vpack.c.b16 %v2035, %v2031
        %v2284 = vpack.c.b16 %v2040, %v2036
        %v2285 = vpack.c.b16 %v2041, %v2037
        %v2286 = vpack.c.b16 %v2042, %v2038
        %v2287 = vpack.c.b16 %v2043, %v2039
        %v2288 = vpack.c.b16 %v2048, %v2044
        %v2289 = vpack.c.b16 %v2049, %v2045
        %v2290 = vpack.c.b16 %v2050, %v2046
        %v2291 = vpack.c.b16 %v2051, %v2047
        %v2292 = vpack.c.b16 %v2056, %v2052
        %v2293 = vpack.c.b16 %v2057, %v2053
        %v2294 = vpack.c.b16 %v2058, %v2054
        %v2295 = vpack.c.b16 %v2059, %v2055
        %v2296 = vpack.c.b16 %v2064, %v2060
        %v2297 = vpack.c.b16 %v2065, %v2061
        %v2298 = vpack.c.b16 %v2066, %v2062
        %v2299 = vpack.c.b16 %v2067, %v2063
        %v2300 = vpack.c.b16 %v2072, %v2068
        %v2301 = vpack.c.b16 %v2073, %v2069
        %v2302 = vpack.c.b16 %v2074, %v2070
        %v2303 = vpack.c.b16 %v2075, %v2071
        %v2304 = vpack.c.b16 %v2080, %v2076
        %v2305 = vpack.c.b16 %v2081, %v2077
        %v2306 = vpack.c.b16 %v2082, %v2078
        %v2307 = vpack.c.b16 %v2083, %v2079
        %v2308 = vpack.c.b16 %v2088, %v2084
        %v2309 = vpack.c.b16 %v2089, %v2085
        %v2310 = vpack.c.b16 %v2090, %v2086
        %v2311 = vpack.c.b16 %v2091, %v2087
        %v2312 = vpack.c.b16 %v2096, %v2092
        %v2313 = vpack.c.b16 %v2097, %v2093
        %v2314 = vpack.c.b16 %v2098, %v2094
        %v2315 = vpack.c.b16 %v2099, %v2095
        %v2316 = vpack.c.b16 %v2104, %v2100
        %v2317 = vpack.c.b16 %v2105, %v2101
        %v2318 = vpack.c.b16 %v2106, %v2102
        %v2319 = vpack.c.b16 %v2107, %v2103
        %v2320 = vpack.c.b16 %v2112, %v2108
        %v2321 = vpack.c.b16 %v2113, %v2109
        %v2322 = vpack.c.b16 %v2114, %v2110
        %v2323 = vpack.c.b16 %v2115, %v2111
        %v2324 = vpack.c.b16 %v2120, %v2116
        %v2325 = vpack.c.b16 %v2121, %v2117
        %v2326 = vpack.c.b16 %v2122, %v2118
        %v2327 = vpack.c.b16 %v2123, %v2119
        %v2328 = vpack.c.b16 %v2128, %v2124
        %v2329 = vpack.c.b16 %v2129, %v2125
        %v2330 = vpack.c.b16 %v2130, %v2126
        %v2331 = vpack.c.b16 %v2131, %v2127
        %v2332 = vpack.c.b16 %v2136, %v2132
        %v2333 = vpack.c.b16 %v2137, %v2133
        %v2334 = vpack.c.b16 %v2138, %v2134
        %v2335 = vpack.c.b16 %v2139, %v2135
        %v2336 = vpack.c.b16 %v2144, %v2140
        %v2337 = vpack.c.b16 %v2145, %v2141
        %v2338 = vpack.c.b16 %v2146, %v2142
        %v2339 = vpack.c.b16 %v2147, %v2143
        %v2340 = vpack.c.b16 %v2152, %v2148
        %v2341 = vpack.c.b16 %v2153, %v2149
        %v2342 = vpack.c.b16 %v2154, %v2150
        %v2343 = vpack.c.b16 %v2155, %v2151
        %v2344 = vpack.c.b16 %v2160, %v2156
        %v2345 = vpack.c.b16 %v2161, %v2157
        %v2346 = vpack.c.b16 %v2162, %v2158
        %v2347 = vpack.c.b16 %v2163, %v2159
        %v2348 = vpack.c.b16 %v2168, %v2164
        %v2349 = vpack.c.b16 %v2169, %v2165
        %v2350 = vpack.c.b16 %v2170, %v2166
        %v2351 = vpack.c.b16 %v2171, %v2167
        %v2352 = vpack.c.b16 %v2176, %v2172
        %v2353 = vpack.c.b16 %v2177, %v2173
        %v2354 = vpack.c.b16 %v2178, %v2174
        %v2355 = vpack.c.b16 %v2179, %v2175
        %v2356 = vpack.c.b16 %v2184, %v2180
        %v2357 = vpack.c.b16 %v2185, %v2181
        %v2358 = vpack.c.b16 %v2186, %v2182
        %v2359 = vpack.c.b16 %v2187, %v2183
        %v2360 = vpack.c.b16 %v2192, %v2188
        %v2361 = vpack.c.b16 %v2193, %v2189
        %v2362 = vpack.c.b16 %v2194, %v2190
        %v2363 = vpack.c.b16 %v2195, %v2191
        %v2364 = vpack.c.b16 %v2200, %v2196
        %v2365 = vpack.c.b16 %v2201, %v2197
        %v2366 = vpack.c.b16 %v2202, %v2198
        %v2367 = vpack.c.b16 %v2203, %v2199
        %v2368 = vpack.c.b16 %v2208, %v2204
        %v2369 = vpack.c.b16 %v2209, %v2205
        %v2370 = vpack.c.b16 %v2210, %v2206
        %v2371 = vpack.c.b16 %v2211, %v2207
        %v2372 = vpack.c.b16 %v2216, %v2212
        %v2373 = vpack.c.b16 %v2217, %v2213
        %v2374 = vpack.c.b16 %v2218, %v2214
        %v2375 = vpack.c.b16 %v2219, %v2215
        %v2376 = vpack.c.b16 %v2224, %v2220
        %v2377 = vpack.c.b16 %v2225, %v2221
        %v2378 = vpack.c.b16 %v2226, %v2222
        %v2379 = vpack.c.b16 %v2227, %v2223
        %v2380 = vpack.c.b16 %v2232, %v2228
        %v2381 = vpack.c.b16 %v2233, %v2229
        %v2382 = vpack.c.b16 %v2234, %v2230
        %v2383 = vpack.c.b16 %v2235, %v2231
        %v2384 = vpack.c.b16 %v2240, %v2236
        %v2385 = vpack.c.b16 %v2241, %v2237
        %v2386 = vpack.c.b16 %v2242, %v2238
        %v2387 = vpack.c.b16 %v2243, %v2239
        %v2388 = vpack.c.b16 %v2248, %v2244
        %v2389 = vpack.c.b16 %v2249, %v2245
        %v2390 = vpack.c.b16 %v2250, %v2246
        %v2391 = vpack.c.b16 %v2251, %v2247
        %v2392 = vpack.c.b16 %v2256, %v2252
        %v2393 = vpack.c.b16 %v2257, %v2253
        %v2394 = vpack.c.b16 %v2258, %v2254
        %v2395 = vpack.c.b16 %v2259, %v2255
        %v2396 = vpack.c.b16 %v2264, %v2260
        %v2397 = vpack.c.b16 %v2265, %v2261
        %v2398 = vpack.c.b16 %v2266, %v2262
        %v2399 = vpack.c.b16 %v2267, %v2263
        %v2400 = vpack.c.b16 %v2272, %v2268
        %v2401 = vpack.c.b16 %v2273, %v2269
        %v2402 = vpack.c.b16 %v2274, %v2270
        %v2403 = vpack.c.b16 %v2275, %v2271
        %2532 = vmatprep.subr.bf16.mxu0 %v2305
        %2533 = vmatpush1.bf16.msra.mxu0 %v2304
        %2534 = vmatprep.subr.bf16.mxu0 %v2301
        %2535 = vmatpush1.bf16.msra.mxu0 %v2300
        %2536 = vmatprep.subr.bf16.mxu0 %v2297
        %2537 = vmatpush1.bf16.msra.mxu0 %v2296
        %2538 = vmatprep.subr.bf16.mxu0 %v2293
        %2539 = vmatpush1.bf16.msra.mxu0 %v2292
        %2540 = vmatprep.subr.bf16.mxu0 %v2289
        %2541 = vmatpush1.bf16.msra.mxu0 %v2288
        %2542 = vmatprep.subr.bf16.mxu0 %v2285
        %2543 = vmatpush1.bf16.msra.mxu0 %v2284
        %2544 = vmatprep.subr.bf16.mxu0 %v2281
        %2545 = vmatpush1.bf16.msra.mxu0 %v2280
        %2546 = vmatprep.subr.bf16.mxu0 %v2277
        %2547 = vmatpush1.bf16.msra.mxu0 %v2276
        %2548 = vmatprep.subr.bf16.mxu0 %v2337
        %2549 = vmatpush2.bf16.msra.mxu0 %v2336
        %2550 = vmatprep.subr.bf16.mxu0 %v2333
        %2551 = vmatpush2.bf16.msra.mxu0 %v2332
        %2552 = vmatprep.subr.bf16.mxu0 %v2329
        %2553 = vmatpush2.bf16.msra.mxu0 %v2328
        %2554 = vmatprep.subr.bf16.mxu0 %v2325
        %2555 = vmatpush2.bf16.msra.mxu0 %v2324
        %2556 = vmatprep.subr.bf16.mxu0 %v2321
        %2557 = vmatpush2.bf16.msra.mxu0 %v2320
        %2558 = vmatprep.subr.bf16.mxu0 %v2317
        %2559 = vmatpush2.bf16.msra.mxu0 %v2316
        %2560 = vmatprep.subr.bf16.mxu0 %v2313
        %2561 = vmatpush2.bf16.msra.mxu0 %v2312
        %2562 = vmatprep.subr.bf16.mxu0 %v2309
        %2563 = vmatpush2.bf16.msra.mxu0 %v2308
        %2564 = vmatprep.mubr.bf16.mxu0 %v1703
        %2565 = vmatmul.mubr.bf16.gmra.mxu0 %v1702
        %v2566 = vpop.f32.mrf.mxu0
        %v2567 = vadd.f32 %v1875, %v2566
        %v2568 = vpop.f32.mrf.mxu0
        %v2569 = vadd.f32 %v1879, %v2568
        %v2570 = vpop.f32.mrf.mxu0
        %v2571 = vadd.f32 %v1875, %v2570
        %v2572 = vpop.f32.mrf.mxu0
        %v2573 = vadd.f32 %v1879, %v2572
        %2574 = vmatprep.mubr.bf16.mxu0 %v1707
        %2575 = vmatmul.mubr.bf16.gmra.mxu0 %v1706
        %v2576 = vpop.f32.mrf.mxu0
        %v2577 = vadd.f32 %v1875, %v2576
        %v2578 = vpop.f32.mrf.mxu0
        %v2579 = vadd.f32 %v1879, %v2578
        %v2580 = vpop.f32.mrf.mxu0
        %v2581 = vadd.f32 %v1875, %v2580
        %v2582 = vpop.f32.mrf.mxu0
        %v2583 = vadd.f32 %v1879, %v2582
        %2584 = vmatprep.mubr.bf16.mxu0 %v1711
        %2585 = vmatmul.mubr.bf16.gmra.mxu0 %v1710
        %v2586 = vpop.f32.mrf.mxu0
        %v2587 = vadd.f32 %v1875, %v2586
        %v2588 = vpop.f32.mrf.mxu0
        %v2589 = vadd.f32 %v1879, %v2588
        %v2590 = vpop.f32.mrf.mxu0
        %v2591 = vadd.f32 %v1875, %v2590
        %v2592 = vpop.f32.mrf.mxu0
        %v2593 = vadd.f32 %v1879, %v2592
        %2594 = vmatprep.mubr.bf16.mxu0 %v1715
        %2595 = vmatmul.mubr.bf16.gmra.mxu0 %v1714
        %v2596 = vpop.f32.mrf.mxu0
        %v2597 = vadd.f32 %v1875, %v2596
        %v2598 = vpop.f32.mrf.mxu0
        %v2599 = vadd.f32 %v1879, %v2598
        %v2600 = vpop.f32.mrf.mxu0
        %v2601 = vadd.f32 %v1875, %v2600
        %v2602 = vpop.f32.mrf.mxu0
        %v2603 = vadd.f32 %v1879, %v2602
        %2604 = vmatprep.mubr.bf16.mxu0 %v1719
        %2605 = vmatmul.mubr.bf16.gmra.mxu0 %v1718
        %v2606 = vpop.f32.mrf.mxu0
        %v2607 = vadd.f32 %v1875, %v2606
        %v2608 = vpop.f32.mrf.mxu0
        %v2609 = vadd.f32 %v1879, %v2608
        %v2610 = vpop.f32.mrf.mxu0
        %v2611 = vadd.f32 %v1875, %v2610
        %v2612 = vpop.f32.mrf.mxu0
        %v2613 = vadd.f32 %v1879, %v2612
        %2614 = vmatprep.mubr.bf16.mxu0 %v1723
        %2615 = vmatmul.mubr.bf16.gmra.mxu0 %v1722
        %v2616 = vpop.f32.mrf.mxu0
        %v2617 = vadd.f32 %v1875, %v2616
        %v2618 = vpop.f32.mrf.mxu0
        %v2619 = vadd.f32 %v1879, %v2618
        %v2620 = vpop.f32.mrf.mxu0
        %v2621 = vadd.f32 %v1875, %v2620
        %v2622 = vpop.f32.mrf.mxu0
        %v2623 = vadd.f32 %v1879, %v2622
        %2624 = vmatprep.mubr.bf16.mxu0 %v1727
        %2625 = vmatmul.mubr.bf16.gmra.mxu0 %v1726
        %v2626 = vpop.f32.mrf.mxu0
        %v2627 = vadd.f32 %v1875, %v2626
        %v2628 = vpop.f32.mrf.mxu0
        %v2629 = vadd.f32 %v1879, %v2628
        %v2630 = vpop.f32.mrf.mxu0
        %v2631 = vadd.f32 %v1875, %v2630
        %v2632 = vpop.f32.mrf.mxu0
        %v2633 = vadd.f32 %v1879, %v2632
        %2634 = vmatprep.mubr.bf16.mxu0 %v1731
        %2635 = vmatmul.mubr.bf16.gmra.mxu0 %v1730
        %v2636 = vpop.f32.mrf.mxu0
        %v2637 = vadd.f32 %v1875, %v2636
        %v2638 = vpop.f32.mrf.mxu0
        %v2639 = vadd.f32 %v1879, %v2638
        %v2640 = vpop.f32.mrf.mxu0
        %v2641 = vadd.f32 %v1875, %v2640
        %v2642 = vpop.f32.mrf.mxu0
        %v2643 = vadd.f32 %v1879, %v2642
        %2644 = vmatprep.mubr.bf16.mxu0 %v1735
        %2645 = vmatmul.mubr.bf16.gmra.mxu0 %v1734
        %v2646 = vpop.f32.mrf.mxu0
        %v2647 = vadd.f32 %v1875, %v2646
        %v2648 = vpop.f32.mrf.mxu0
        %v2649 = vadd.f32 %v1879, %v2648
        %v2650 = vpop.f32.mrf.mxu0
        %v2651 = vadd.f32 %v1875, %v2650
        %v2652 = vpop.f32.mrf.mxu0
        %v2653 = vadd.f32 %v1879, %v2652
        %2654 = vmatprep.mubr.bf16.mxu0 %v1739
        %2655 = vmatmul.mubr.bf16.gmra.mxu0 %v1738
        %v2656 = vpop.f32.mrf.mxu0
        %v2657 = vadd.f32 %v1875, %v2656
        %v2658 = vpop.f32.mrf.mxu0
        %v2659 = vadd.f32 %v1879, %v2658
        %v2660 = vpop.f32.mrf.mxu0
        %v2661 = vpop.f32.mrf.mxu0
        %2662 = vdwg.mxu0
        %2663 = vmatprep.subr.bf16.mxu0 %v2369
        %2664 = vmatpush1.bf16.msra.mxu0 %v2368
        %2665 = vmatprep.subr.bf16.mxu0 %v2365
        %2666 = vmatpush1.bf16.msra.mxu0 %v2364
        %2667 = vmatprep.subr.bf16.mxu0 %v2361
        %2668 = vmatpush1.bf16.msra.mxu0 %v2360
        %2669 = vmatprep.subr.bf16.mxu0 %v2357
        %2670 = vmatpush1.bf16.msra.mxu0 %v2356
        %2671 = vmatprep.subr.bf16.mxu0 %v2353
        %2672 = vmatpush1.bf16.msra.mxu0 %v2352
        %2673 = vmatprep.subr.bf16.mxu0 %v2349
        %2674 = vmatpush1.bf16.msra.mxu0 %v2348
        %2675 = vmatprep.subr.bf16.mxu0 %v2345
        %2676 = vmatpush1.bf16.msra.mxu0 %v2344
        %2677 = vmatprep.subr.bf16.mxu0 %v2341
        %2678 = vmatpush1.bf16.msra.mxu0 %v2340
        %2679 = vmatprep.subr.bf16.mxu0 %v2401
        %2680 = vmatpush2.bf16.msra.mxu0 %v2400
        %2681 = vmatprep.subr.bf16.mxu0 %v2397
        %2682 = vmatpush2.bf16.msra.mxu0 %v2396
        %2683 = vmatprep.subr.bf16.mxu0 %v2393
        %2684 = vmatpush2.bf16.msra.mxu0 %v2392
        %2685 = vmatprep.subr.bf16.mxu0 %v2389
        %2686 = vmatpush2.bf16.msra.mxu0 %v2388
        %2687 = vmatprep.subr.bf16.mxu0 %v2385
        %2688 = vmatpush2.bf16.msra.mxu0 %v2384
        %2689 = vmatprep.subr.bf16.mxu0 %v2381
        %2690 = vmatpush2.bf16.msra.mxu0 %v2380
        %2691 = vmatprep.subr.bf16.mxu0 %v2377
        %2692 = vmatpush2.bf16.msra.mxu0 %v2376
        %2693 = vmatprep.subr.bf16.mxu0 %v2373
        %2694 = vmatpush2.bf16.msra.mxu0 %v2372
        %2695 = vmatprep.mubr.bf16.mxu0 %v1705
        %2696 = vmatmul.mubr.bf16.gmra.mxu0 %v1704
        %v2697 = vpop.f32.mrf.mxu0
        %v2698 = vadd.f32 %v2567, %v2697
        %v2699 = vpop.f32.mrf.mxu0
        %v2700 = vadd.f32 %v2569, %v2699
        %v2701 = vpop.f32.mrf.mxu0
        %v2702 = vadd.f32 %v2571, %v2701
        %v2703 = vpop.f32.mrf.mxu0
        %v2704 = vadd.f32 %v2573, %v2703
        %2705 = vmatprep.mubr.bf16.mxu0 %v1709
        %2706 = vmatmul.mubr.bf16.gmra.mxu0 %v1708
        %v2707 = vpop.f32.mrf.mxu0
        %v2708 = vadd.f32 %v2577, %v2707
        %v2709 = vpop.f32.mrf.mxu0
        %v2710 = vadd.f32 %v2579, %v2709
        %v2711 = vpop.f32.mrf.mxu0
        %v2712 = vadd.f32 %v2581, %v2711
        %v2713 = vpop.f32.mrf.mxu0
        %v2714 = vadd.f32 %v2583, %v2713
        %2715 = vmatprep.mubr.bf16.mxu0 %v1713
        %2716 = vmatmul.mubr.bf16.gmra.mxu0 %v1712
        %v2717 = vpop.f32.mrf.mxu0
        %v2718 = vadd.f32 %v2587, %v2717
        %v2719 = vpop.f32.mrf.mxu0
        %v2720 = vadd.f32 %v2589, %v2719
        %v2721 = vpop.f32.mrf.mxu0
        %v2722 = vadd.f32 %v2591, %v2721
        %v2723 = vpop.f32.mrf.mxu0
        %v2724 = vadd.f32 %v2593, %v2723
        %2725 = vmatprep.mubr.bf16.mxu0 %v1717
        %2726 = vmatmul.mubr.bf16.gmra.mxu0 %v1716
        %v2727 = vpop.f32.mrf.mxu0
        %v2728 = vadd.f32 %v2597, %v2727
        %v2729 = vpop.f32.mrf.mxu0
        %v2730 = vadd.f32 %v2599, %v2729
        %v2731 = vpop.f32.mrf.mxu0
        %v2732 = vadd.f32 %v2601, %v2731
        %v2733 = vpop.f32.mrf.mxu0
        %v2734 = vadd.f32 %v2603, %v2733
        %2735 = vmatprep.mubr.bf16.mxu0 %v1721
        %2736 = vmatmul.mubr.bf16.gmra.mxu0 %v1720
        %v2737 = vpop.f32.mrf.mxu0
        %v2738 = vadd.f32 %v2607, %v2737
        %v2739 = vpop.f32.mrf.mxu0
        %v2740 = vadd.f32 %v2609, %v2739
        %v2741 = vpop.f32.mrf.mxu0
        %v2742 = vadd.f32 %v2611, %v2741
        %v2743 = vpop.f32.mrf.mxu0
        %v2744 = vadd.f32 %v2613, %v2743
        %2745 = vmatprep.mubr.bf16.mxu0 %v1725
        %2746 = vmatmul.mubr.bf16.gmra.mxu0 %v1724
        %v2747 = vpop.f32.mrf.mxu0
        %v2748 = vadd.f32 %v2617, %v2747
        %v2749 = vpop.f32.mrf.mxu0
        %v2750 = vadd.f32 %v2619, %v2749
        %v2751 = vpop.f32.mrf.mxu0
        %v2752 = vadd.f32 %v2621, %v2751
        %v2753 = vpop.f32.mrf.mxu0
        %v2754 = vadd.f32 %v2623, %v2753
        %2755 = vmatprep.mubr.bf16.mxu0 %v1729
        %2756 = vmatmul.mubr.bf16.gmra.mxu0 %v1728
        %v2757 = vpop.f32.mrf.mxu0
        %v2758 = vadd.f32 %v2627, %v2757
        %v2759 = vpop.f32.mrf.mxu0
        %v2760 = vadd.f32 %v2629, %v2759
        %v2761 = vpop.f32.mrf.mxu0
        %v2762 = vadd.f32 %v2631, %v2761
        %v2763 = vpop.f32.mrf.mxu0
        %v2764 = vadd.f32 %v2633, %v2763
        %2765 = vmatprep.mubr.bf16.mxu0 %v1733
        %2766 = vmatmul.mubr.bf16.gmra.mxu0 %v1732
        %v2767 = vpop.f32.mrf.mxu0
        %v2768 = vadd.f32 %v2637, %v2767
        %v2769 = vpop.f32.mrf.mxu0
        %v2770 = vadd.f32 %v2639, %v2769
        %v2771 = vpop.f32.mrf.mxu0
        %v2772 = vadd.f32 %v2641, %v2771
        %v2773 = vpop.f32.mrf.mxu0
        %v2774 = vadd.f32 %v2643, %v2773
        %2775 = vmatprep.mubr.bf16.mxu0 %v1737
        %2776 = vmatmul.mubr.bf16.gmra.mxu0 %v1736
        %v2777 = vpop.f32.mrf.mxu0
        %v2778 = vadd.f32 %v2647, %v2777
        %v2779 = vpop.f32.mrf.mxu0
        %v2780 = vadd.f32 %v2649, %v2779
        %v2781 = vpop.f32.mrf.mxu0
        %v2782 = vadd.f32 %v2651, %v2781
        %v2783 = vpop.f32.mrf.mxu0
        %v2784 = vadd.f32 %v2653, %v2783
        %2785 = vmatprep.mubr.bf16.mxu0 %v1741
        %2786 = vmatmul.mubr.bf16.gmra.mxu0 %v1740
        %v2787 = vpop.f32.mrf.mxu0
        %v2788 = vadd.f32 %v2657, %v2787
        %v2789 = vpop.f32.mrf.mxu0
        %v2790 = vadd.f32 %v2659, %v2789
        %v2791 = vpop.f32.mrf.mxu0
        %v2792 = vpop.f32.mrf.mxu0
        %2793 = vdwg.mxu0
        %2794 = vmatprep.subr.bf16.mxu0 %v2307
        %2795 = vmatpush1.bf16.msra.mxu0 %v2306
        %2796 = vmatprep.subr.bf16.mxu0 %v2303
        %2797 = vmatpush1.bf16.msra.mxu0 %v2302
        %2798 = vmatprep.subr.bf16.mxu0 %v2299
        %2799 = vmatpush1.bf16.msra.mxu0 %v2298
        %2800 = vmatprep.subr.bf16.mxu0 %v2295
        %2801 = vmatpush1.bf16.msra.mxu0 %v2294
        %2802 = vmatprep.subr.bf16.mxu0 %v2291
        %2803 = vmatpush1.bf16.msra.mxu0 %v2290
        %2804 = vmatprep.subr.bf16.mxu0 %v2287
        %2805 = vmatpush1.bf16.msra.mxu0 %v2286
        %2806 = vmatprep.subr.bf16.mxu0 %v2283
        %2807 = vmatpush1.bf16.msra.mxu0 %v2282
        %2808 = vmatprep.subr.bf16.mxu0 %v2279
        %2809 = vmatpush1.bf16.msra.mxu0 %v2278
        %2810 = vmatprep.subr.bf16.mxu0 %v2339
        %2811 = vmatpush2.bf16.msra.mxu0 %v2338
        %2812 = vmatprep.subr.bf16.mxu0 %v2335
        %2813 = vmatpush2.bf16.msra.mxu0 %v2334
        %2814 = vmatprep.subr.bf16.mxu0 %v2331
        %2815 = vmatpush2.bf16.msra.mxu0 %v2330
        %2816 = vmatprep.subr.bf16.mxu0 %v2327
        %2817 = vmatpush2.bf16.msra.mxu0 %v2326
        %2818 = vmatprep.subr.bf16.mxu0 %v2323
        %2819 = vmatpush2.bf16.msra.mxu0 %v2322
        %2820 = vmatprep.subr.bf16.mxu0 %v2319
        %2821 = vmatpush2.bf16.msra.mxu0 %v2318
        %2822 = vmatprep.subr.bf16.mxu0 %v2315
        %2823 = vmatpush2.bf16.msra.mxu0 %v2314
        %2824 = vmatprep.subr.bf16.mxu0 %v2311
        %2825 = vmatpush2.bf16.msra.mxu0 %v2310
        %2826 = vmatprep.mubr.bf16.mxu0 %v1703
        %2827 = vmatmul.mubr.bf16.gmra.mxu0 %v1702
        %v2828 = vpop.f32.mrf.mxu0
        %v2829 = vadd.f32 %v1883, %v2828
        %v2830 = vpop.f32.mrf.mxu0
        %v2831 = vadd.f32 %v1887, %v2830
        %v2832 = vpop.f32.mrf.mxu0
        %v2833 = vadd.f32 %v1883, %v2832
        %v2834 = vpop.f32.mrf.mxu0
        %v2835 = vadd.f32 %v1887, %v2834
        %2836 = vmatprep.mubr.bf16.mxu0 %v1707
        %2837 = vmatmul.mubr.bf16.gmra.mxu0 %v1706
        %v2838 = vpop.f32.mrf.mxu0
        %v2839 = vadd.f32 %v1883, %v2838
        %v2840 = vpop.f32.mrf.mxu0
        %v2841 = vadd.f32 %v1887, %v2840
        %v2842 = vpop.f32.mrf.mxu0
        %v2843 = vadd.f32 %v1883, %v2842
        %v2844 = vpop.f32.mrf.mxu0
        %v2845 = vadd.f32 %v1887, %v2844
        %2846 = vmatprep.mubr.bf16.mxu0 %v1711
        %2847 = vmatmul.mubr.bf16.gmra.mxu0 %v1710
        %v2848 = vpop.f32.mrf.mxu0
        %v2849 = vadd.f32 %v1883, %v2848
        %v2850 = vpop.f32.mrf.mxu0
        %v2851 = vadd.f32 %v1887, %v2850
        %v2852 = vpop.f32.mrf.mxu0
        %v2853 = vadd.f32 %v1883, %v2852
        %v2854 = vpop.f32.mrf.mxu0
        %v2855 = vadd.f32 %v1887, %v2854
        %2856 = vmatprep.mubr.bf16.mxu0 %v1715
        %2857 = vmatmul.mubr.bf16.gmra.mxu0 %v1714
        %v2858 = vpop.f32.mrf.mxu0
        %v2859 = vadd.f32 %v1883, %v2858
        %v2860 = vpop.f32.mrf.mxu0
        %v2861 = vadd.f32 %v1887, %v2860
        %v2862 = vpop.f32.mrf.mxu0
        %v2863 = vadd.f32 %v1883, %v2862
        %v2864 = vpop.f32.mrf.mxu0
        %v2865 = vadd.f32 %v1887, %v2864
        %2866 = vmatprep.mubr.bf16.mxu0 %v1719
        %2867 = vmatmul.mubr.bf16.gmra.mxu0 %v1718
        %v2868 = vpop.f32.mrf.mxu0
        %v2869 = vadd.f32 %v1883, %v2868
        %v2870 = vpop.f32.mrf.mxu0
        %v2871 = vadd.f32 %v1887, %v2870
        %v2872 = vpop.f32.mrf.mxu0
        %v2873 = vadd.f32 %v1883, %v2872
        %v2874 = vpop.f32.mrf.mxu0
        %v2875 = vadd.f32 %v1887, %v2874
        %2876 = vmatprep.mubr.bf16.mxu0 %v1723
        %2877 = vmatmul.mubr.bf16.gmra.mxu0 %v1722
        %v2878 = vpop.f32.mrf.mxu0
        %v2879 = vadd.f32 %v1883, %v2878
        %v2880 = vpop.f32.mrf.mxu0
        %v2881 = vadd.f32 %v1887, %v2880
        %v2882 = vpop.f32.mrf.mxu0
        %v2883 = vadd.f32 %v1883, %v2882
        %v2884 = vpop.f32.mrf.mxu0
        %v2885 = vadd.f32 %v1887, %v2884
        %2886 = vmatprep.mubr.bf16.mxu0 %v1727
        %2887 = vmatmul.mubr.bf16.gmra.mxu0 %v1726
        %v2888 = vpop.f32.mrf.mxu0
        %v2889 = vadd.f32 %v1883, %v2888
        %v2890 = vpop.f32.mrf.mxu0
        %v2891 = vadd.f32 %v1887, %v2890
        %v2892 = vpop.f32.mrf.mxu0
        %v2893 = vadd.f32 %v1883, %v2892
        %v2894 = vpop.f32.mrf.mxu0
        %v2895 = vadd.f32 %v1887, %v2894
        %2896 = vmatprep.mubr.bf16.mxu0 %v1731
        %2897 = vmatmul.mubr.bf16.gmra.mxu0 %v1730
        %v2898 = vpop.f32.mrf.mxu0
        %v2899 = vadd.f32 %v1883, %v2898
        %v2900 = vpop.f32.mrf.mxu0
        %v2901 = vadd.f32 %v1887, %v2900
        %v2902 = vpop.f32.mrf.mxu0
        %v2903 = vadd.f32 %v1883, %v2902
        %v2904 = vpop.f32.mrf.mxu0
        %v2905 = vadd.f32 %v1887, %v2904
        %2906 = vmatprep.mubr.bf16.mxu0 %v1735
        %2907 = vmatmul.mubr.bf16.gmra.mxu0 %v1734
        %v2908 = vpop.f32.mrf.mxu0
        %v2909 = vadd.f32 %v1883, %v2908
        %v2910 = vpop.f32.mrf.mxu0
        %v2911 = vadd.f32 %v1887, %v2910
        %v2912 = vpop.f32.mrf.mxu0
        %v2913 = vadd.f32 %v1883, %v2912
        %v2914 = vpop.f32.mrf.mxu0
        %v2915 = vadd.f32 %v1887, %v2914
        %2916 = vmatprep.mubr.bf16.mxu0 %v1739
        %2917 = vmatmul.mubr.bf16.gmra.mxu0 %v1738
        %v2918 = vpop.f32.mrf.mxu0
        %v2919 = vadd.f32 %v1883, %v2918
        %v2920 = vpop.f32.mrf.mxu0
        %v2921 = vadd.f32 %v1887, %v2920
        %v2922 = vpop.f32.mrf.mxu0
        %v2923 = vpop.f32.mrf.mxu0
        %2924 = vdwg.mxu0
        %2925 = vmatprep.subr.bf16.mxu0 %v2371
        %2926 = vmatpush1.bf16.msra.mxu0 %v2370
        %2927 = vmatprep.subr.bf16.mxu0 %v2367
        %2928 = vmatpush1.bf16.msra.mxu0 %v2366
        %2929 = vmatprep.subr.bf16.mxu0 %v2363
        %2930 = vmatpush1.bf16.msra.mxu0 %v2362
        %2931 = vmatprep.subr.bf16.mxu0 %v2359
        %2932 = vmatpush1.bf16.msra.mxu0 %v2358
        %2933 = vmatprep.subr.bf16.mxu0 %v2355
        %2934 = vmatpush1.bf16.msra.mxu0 %v2354
        %2935 = vmatprep.subr.bf16.mxu0 %v2351
        %2936 = vmatpush1.bf16.msra.mxu0 %v2350
        %2937 = vmatprep.subr.bf16.mxu0 %v2347
        %2938 = vmatpush1.bf16.msra.mxu0 %v2346
        %2939 = vmatprep.subr.bf16.mxu0 %v2343
        %2940 = vmatpush1.bf16.msra.mxu0 %v2342
        %2941 = vmatprep.subr.bf16.mxu0 %v2403
        %2942 = vmatpush2.bf16.msra.mxu0 %v2402
        %2943 = vmatprep.subr.bf16.mxu0 %v2399
        %2944 = vmatpush2.bf16.msra.mxu0 %v2398
        %2945 = vmatprep.subr.bf16.mxu0 %v2395
        %2946 = vmatpush2.bf16.msra.mxu0 %v2394
        %2947 = vmatprep.subr.bf16.mxu0 %v2391
        %2948 = vmatpush2.bf16.msra.mxu0 %v2390
        %2949 = vmatprep.subr.bf16.mxu0 %v2387
        %2950 = vmatpush2.bf16.msra.mxu0 %v2386
        %2951 = vmatprep.subr.bf16.mxu0 %v2383
        %2952 = vmatpush2.bf16.msra.mxu0 %v2382
        %2953 = vmatprep.subr.bf16.mxu0 %v2379
        %2954 = vmatpush2.bf16.msra.mxu0 %v2378
        %2955 = vmatprep.subr.bf16.mxu0 %v2375
        %2956 = vmatpush2.bf16.msra.mxu0 %v2374
        %2957 = vmatprep.mubr.bf16.mxu0 %v1705
        %2958 = vmatmul.mubr.bf16.gmra.mxu0 %v1704
        %v2959 = vpop.f32.mrf.mxu0
        %v2960 = vadd.f32 %v2829, %v2959
        %v2961 = vpop.f32.mrf.mxu0
        %v2962 = vadd.f32 %v2831, %v2961
        %v2963 = vpop.f32.mrf.mxu0
        %v2964 = vadd.f32 %v2833, %v2963
        %v2965 = vpop.f32.mrf.mxu0
        %v2966 = vadd.f32 %v2835, %v2965
        %2967 = vmatprep.mubr.bf16.mxu0 %v1709
        %2968 = vmatmul.mubr.bf16.gmra.mxu0 %v1708
        %v2969 = vpop.f32.mrf.mxu0
        %v2970 = vadd.f32 %v2839, %v2969
        %v2971 = vpop.f32.mrf.mxu0
        %v2972 = vadd.f32 %v2841, %v2971
        %v2973 = vpop.f32.mrf.mxu0
        %v2974 = vadd.f32 %v2843, %v2973
        %v2975 = vpop.f32.mrf.mxu0
        %v2976 = vadd.f32 %v2845, %v2975
        %2977 = vmatprep.mubr.bf16.mxu0 %v1713
        %2978 = vmatmul.mubr.bf16.gmra.mxu0 %v1712
        %v2979 = vpop.f32.mrf.mxu0
        %v2980 = vadd.f32 %v2849, %v2979
        %v2981 = vpop.f32.mrf.mxu0
        %v2982 = vadd.f32 %v2851, %v2981
        %v2983 = vpop.f32.mrf.mxu0
        %v2984 = vadd.f32 %v2853, %v2983
        %v2985 = vpop.f32.mrf.mxu0
        %v2986 = vadd.f32 %v2855, %v2985
        %2987 = vmatprep.mubr.bf16.mxu0 %v1717
        %2988 = vmatmul.mubr.bf16.gmra.mxu0 %v1716
        %v2989 = vpop.f32.mrf.mxu0
        %v2990 = vadd.f32 %v2859, %v2989
        %v2991 = vpop.f32.mrf.mxu0
        %v2992 = vadd.f32 %v2861, %v2991
        %v2993 = vpop.f32.mrf.mxu0
        %v2994 = vadd.f32 %v2863, %v2993
        %v2995 = vpop.f32.mrf.mxu0
        %v2996 = vadd.f32 %v2865, %v2995
        %2997 = vmatprep.mubr.bf16.mxu0 %v1721
        %2998 = vmatmul.mubr.bf16.gmra.mxu0 %v1720
        %v2999 = vpop.f32.mrf.mxu0
        %v3000 = vadd.f32 %v2869, %v2999
        %v3001 = vpop.f32.mrf.mxu0
        %v3002 = vadd.f32 %v2871, %v3001
        %v3003 = vpop.f32.mrf.mxu0
        %v3004 = vadd.f32 %v2873, %v3003
        %v3005 = vpop.f32.mrf.mxu0
        %v3006 = vadd.f32 %v2875, %v3005
        %3007 = vmatprep.mubr.bf16.mxu0 %v1725
        %3008 = vmatmul.mubr.bf16.gmra.mxu0 %v1724
        %v3009 = vpop.f32.mrf.mxu0
        %v3010 = vadd.f32 %v2879, %v3009
        %v3011 = vpop.f32.mrf.mxu0
        %v3012 = vadd.f32 %v2881, %v3011
        %v3013 = vpop.f32.mrf.mxu0
        %v3014 = vadd.f32 %v2883, %v3013
        %v3015 = vpop.f32.mrf.mxu0
        %v3016 = vadd.f32 %v2885, %v3015
        %3017 = vmatprep.mubr.bf16.mxu0 %v1729
        %3018 = vmatmul.mubr.bf16.gmra.mxu0 %v1728
        %v3019 = vpop.f32.mrf.mxu0
        %v3020 = vadd.f32 %v2889, %v3019
        %v3021 = vpop.f32.mrf.mxu0
        %v3022 = vadd.f32 %v2891, %v3021
        %v3023 = vpop.f32.mrf.mxu0
        %v3024 = vadd.f32 %v2893, %v3023
        %v3025 = vpop.f32.mrf.mxu0
        %v3026 = vadd.f32 %v2895, %v3025
        %3027 = vmatprep.mubr.bf16.mxu0 %v1733
        %3028 = vmatmul.mubr.bf16.gmra.mxu0 %v1732
        %v3029 = vpop.f32.mrf.mxu0
        %v3030 = vadd.f32 %v2899, %v3029
        %v3031 = vpop.f32.mrf.mxu0
        %v3032 = vadd.f32 %v2901, %v3031
        %v3033 = vpop.f32.mrf.mxu0
        %v3034 = vadd.f32 %v2903, %v3033
        %v3035 = vpop.f32.mrf.mxu0
        %v3036 = vadd.f32 %v2905, %v3035
        %3037 = vmatprep.mubr.bf16.mxu0 %v1737
        %3038 = vmatmul.mubr.bf16.gmra.mxu0 %v1736
        %v3039 = vpop.f32.mrf.mxu0
        %v3040 = vadd.f32 %v2909, %v3039
        %v3041 = vpop.f32.mrf.mxu0
        %v3042 = vadd.f32 %v2911, %v3041
        %v3043 = vpop.f32.mrf.mxu0
        %v3044 = vadd.f32 %v2913, %v3043
        %v3045 = vpop.f32.mrf.mxu0
        %v3046 = vadd.f32 %v2915, %v3045
        %3047 = vmatprep.mubr.bf16.mxu0 %v1741
        %3048 = vmatmul.mubr.bf16.gmra.mxu0 %v1740
        %v3049 = vpop.f32.mrf.mxu0
        %v3050 = vadd.f32 %v2919, %v3049
        %v3051 = vpop.f32.mrf.mxu0
        %v3052 = vadd.f32 %v2921, %v3051
        %v3053 = vpop.f32.mrf.mxu0
        %v3054 = vpop.f32.mrf.mxu0
        %3055 = vdwg.mxu0
        %v3056 = vld [vmem:[%s7] sm:$0xf]
        %v3057 = vld [vmem:[%s8] sm:$0xf]
        %v3058 = vadd.f32 %v2698, %v2700
        %v3059 = vadd.f32 %v3058, %v2960
        %v3060 = vadd.f32 %v3059, %v2962
        %3061 = vadd.xlane.f32.xlu0 %v3060
        %v3062 = vpop.xlane.xlu0 %3061
        %v3063 = vadd.f32 %v2702, %v2704
        %v3064 = vadd.f32 %v3063, %v2964
        %v3065 = vadd.f32 %v3064, %v2966
        %3066 = vadd.xlane.f32.xlu0 %v3065
        %v3067 = vpop.xlane.xlu0 %3066
        %v3068 = vadd.f32 %v2708, %v2710
        %v3069 = vadd.f32 %v3068, %v2970
        %v3070 = vadd.f32 %v3069, %v2972
        %3071 = vadd.xlane.f32.xlu0 %v3070
        %v3072 = vpop.xlane.xlu0 %3071
        %v3073 = vadd.f32 %v2712, %v2714
        %v3074 = vadd.f32 %v3073, %v2974
        %v3075 = vadd.f32 %v3074, %v2976
        %3076 = vadd.xlane.f32.xlu0 %v3075
        %v3077 = vpop.xlane.xlu0 %3076
        %v3078 = vadd.f32 %v2718, %v2720
        %v3079 = vadd.f32 %v3078, %v2980
        %v3080 = vadd.f32 %v3079, %v2982
        %3081 = vadd.xlane.f32.xlu0 %v3080
        %v3082 = vpop.xlane.xlu0 %3081
        %v3083 = vadd.f32 %v2722, %v2724
        %v3084 = vadd.f32 %v3083, %v2984
        %v3085 = vadd.f32 %v3084, %v2986
        %3086 = vadd.xlane.f32.xlu0 %v3085
        %v3087 = vpop.xlane.xlu0 %3086
        %v3088 = vadd.f32 %v2728, %v2730
        %v3089 = vadd.f32 %v3088, %v2990
        %v3090 = vadd.f32 %v3089, %v2992
        %3091 = vadd.xlane.f32.xlu0 %v3090
        %v3092 = vpop.xlane.xlu0 %3091
        %v3093 = vadd.f32 %v2732, %v2734
        %v3094 = vadd.f32 %v3093, %v2994
        %v3095 = vadd.f32 %v3094, %v2996
        %3096 = vadd.xlane.f32.xlu0 %v3095
        %v3097 = vpop.xlane.xlu0 %3096
        %v3098 = vadd.f32 %v2738, %v2740
        %v3099 = vadd.f32 %v3098, %v3000
        %v3100 = vadd.f32 %v3099, %v3002
        %3101 = vadd.xlane.f32.xlu0 %v3100
        %v3102 = vpop.xlane.xlu0 %3101
        %v3103 = vadd.f32 %v2742, %v2744
        %v3104 = vadd.f32 %v3103, %v3004
        %v3105 = vadd.f32 %v3104, %v3006
        %3106 = vadd.xlane.f32.xlu0 %v3105
        %v3107 = vpop.xlane.xlu0 %3106
        %v3108 = vadd.f32 %v2748, %v2750
        %v3109 = vadd.f32 %v3108, %v3010
        %v3110 = vadd.f32 %v3109, %v3012
        %3111 = vadd.xlane.f32.xlu0 %v3110
        %v3112 = vpop.xlane.xlu0 %3111
        %v3113 = vadd.f32 %v2752, %v2754
        %v3114 = vadd.f32 %v3113, %v3014
        %v3115 = vadd.f32 %v3114, %v3016
        %3116 = vadd.xlane.f32.xlu0 %v3115
        %v3117 = vpop.xlane.xlu0 %3116
        %v3118 = vadd.f32 %v2758, %v2760
        %v3119 = vadd.f32 %v3118, %v3020
        %v3120 = vadd.f32 %v3119, %v3022
        %3121 = vadd.xlane.f32.xlu0 %v3120
        %v3122 = vpop.xlane.xlu0 %3121
        %v3123 = vadd.f32 %v2762, %v2764
        %v3124 = vadd.f32 %v3123, %v3024
        %v3125 = vadd.f32 %v3124, %v3026
        %3126 = vadd.xlane.f32.xlu0 %v3125
        %v3127 = vpop.xlane.xlu0 %3126
        %v3128 = vadd.f32 %v2768, %v2770
        %v3129 = vadd.f32 %v3128, %v3030
        %v3130 = vadd.f32 %v3129, %v3032
        %3131 = vadd.xlane.f32.xlu0 %v3130
        %v3132 = vpop.xlane.xlu0 %3131
        %v3133 = vadd.f32 %v2772, %v2774
        %v3134 = vadd.f32 %v3133, %v3034
        %v3135 = vadd.f32 %v3134, %v3036
        %3136 = vadd.xlane.f32.xlu0 %v3135
        %v3137 = vpop.xlane.xlu0 %3136
        %v3138 = vadd.f32 %v2778, %v2780
        %v3139 = vadd.f32 %v3138, %v3040
        %v3140 = vadd.f32 %v3139, %v3042
        %3141 = vadd.xlane.f32.xlu0 %v3140
        %v3142 = vpop.xlane.xlu0 %3141
        %v3143 = vadd.f32 %v2782, %v2784
        %v3144 = vadd.f32 %v3143, %v3044
        %v3145 = vadd.f32 %v3144, %v3046
        %3146 = vadd.xlane.f32.xlu0 %v3145
        %v3147 = vpop.xlane.xlu0 %3146
        %v3148 = vadd.f32 %v2788, %v2790
        %v3149 = vadd.f32 %v3148, %v3050
        %v3150 = vadd.f32 %v3149, %v3052
        %3151 = vadd.xlane.f32.xlu0 %v3150
        %v3152 = vpop.xlane.xlu0 %3151
        %v3153 = vmul.f32 %v3062, %v1019
        %v3154 = vmul.f32 %v3067, %v1019
        %v3155 = vmul.f32 %v3072, %v1019
        %v3156 = vmul.f32 %v3077, %v1019
        %v3157 = vmul.f32 %v3082, %v1019
        %v3158 = vmul.f32 %v3087, %v1019
        %v3159 = vmul.f32 %v3092, %v1019
        %v3160 = vmul.f32 %v3097, %v1019
        %v3161 = vmul.f32 %v3102, %v1019
        %v3162 = vmul.f32 %v3107, %v1019
        %v3163 = vmul.f32 %v3112, %v1019
        %v3164 = vmul.f32 %v3117, %v1019
        %v3165 = vmul.f32 %v3122, %v1019
        %v3166 = vmul.f32 %v3127, %v1019
        %v3167 = vmul.f32 %v3132, %v1019
        %v3168 = vmul.f32 %v3137, %v1019
        %v3169 = vmul.f32 %v3142, %v1019
        %v3170 = vmul.f32 %v3147, %v1019
        %v3171 = vmul.f32 %v3152, %v1019
        %v3172 = vmul.f32 %v2698, %v2698
        %v3173 = vmul.f32 %v2700, %v2700
        %v3174 = vmul.f32 %v2960, %v2960
        %v3175 = vmul.f32 %v2962, %v2962
        %v3176 = vmul.f32 %v2702, %v2702
        %v3177 = vmul.f32 %v2704, %v2704
        %v3178 = vmul.f32 %v2964, %v2964
        %v3179 = vmul.f32 %v2966, %v2966
        %v3180 = vmul.f32 %v2708, %v2708
        %v3181 = vmul.f32 %v2710, %v2710
        %v3182 = vmul.f32 %v2970, %v2970
        %v3183 = vmul.f32 %v2972, %v2972
        %v3184 = vmul.f32 %v2712, %v2712
        %v3185 = vmul.f32 %v2714, %v2714
        %v3186 = vmul.f32 %v2974, %v2974
        %v3187 = vmul.f32 %v2976, %v2976
        %v3188 = vmul.f32 %v2718, %v2718
        %v3189 = vmul.f32 %v2720, %v2720
        %v3190 = vmul.f32 %v2980, %v2980
        %v3191 = vmul.f32 %v2982, %v2982
        %v3192 = vmul.f32 %v2722, %v2722
        %v3193 = vmul.f32 %v2724, %v2724
        %v3194 = vmul.f32 %v2984, %v2984
        %v3195 = vmul.f32 %v2986, %v2986
        %v3196 = vmul.f32 %v2728, %v2728
        %v3197 = vmul.f32 %v2730, %v2730
        %v3198 = vmul.f32 %v2990, %v2990
        %v3199 = vmul.f32 %v2992, %v2992
        %v3200 = vmul.f32 %v2732, %v2732
        %v3201 = vmul.f32 %v2734, %v2734
        %v3202 = vmul.f32 %v2994, %v2994
        %v3203 = vmul.f32 %v2996, %v2996
        %v3204 = vmul.f32 %v2738, %v2738
        %v3205 = vmul.f32 %v2740, %v2740
        %v3206 = vmul.f32 %v3000, %v3000
        %v3207 = vmul.f32 %v3002, %v3002
        %v3208 = vmul.f32 %v2742, %v2742
        %v3209 = vmul.f32 %v2744, %v2744
        %v3210 = vmul.f32 %v3004, %v3004
        %v3211 = vmul.f32 %v3006, %v3006
        %v3212 = vmul.f32 %v2748, %v2748
        %v3213 = vmul.f32 %v2750, %v2750
        %v3214 = vmul.f32 %v3010, %v3010
        %v3215 = vmul.f32 %v3012, %v3012
        %v3216 = vmul.f32 %v2752, %v2752
        %v3217 = vmul.f32 %v2754, %v2754
        %v3218 = vmul.f32 %v3014, %v3014
        %v3219 = vmul.f32 %v3016, %v3016
        %v3220 = vmul.f32 %v2758, %v2758
        %v3221 = vmul.f32 %v2760, %v2760
        %v3222 = vmul.f32 %v3020, %v3020
        %v3223 = vmul.f32 %v3022, %v3022
        %v3224 = vmul.f32 %v2762, %v2762
        %v3225 = vmul.f32 %v2764, %v2764
        %v3226 = vmul.f32 %v3024, %v3024
        %v3227 = vmul.f32 %v3026, %v3026
        %v3228 = vmul.f32 %v2768, %v2768
        %v3229 = vmul.f32 %v2770, %v2770
        %v3230 = vmul.f32 %v3030, %v3030
        %v3231 = vmul.f32 %v3032, %v3032
        %v3232 = vmul.f32 %v2772, %v2772
        %v3233 = vmul.f32 %v2774, %v2774
        %v3234 = vmul.f32 %v3034, %v3034
        %v3235 = vmul.f32 %v3036, %v3036
        %v3236 = vmul.f32 %v2778, %v2778
        %v3237 = vmul.f32 %v2780, %v2780
        %v3238 = vmul.f32 %v3040, %v3040
        %v3239 = vmul.f32 %v3042, %v3042
        %v3240 = vmul.f32 %v2782, %v2782
        %v3241 = vmul.f32 %v2784, %v2784
        %v3242 = vmul.f32 %v3044, %v3044
        %v3243 = vmul.f32 %v3046, %v3046
        %v3244 = vmul.f32 %v2788, %v2788
        %v3245 = vmul.f32 %v2790, %v2790
        %v3246 = vmul.f32 %v3050, %v3050
        %v3247 = vmul.f32 %v3052, %v3052
        %v3248 = vadd.f32 %v3172, %v3173
        %v3249 = vadd.f32 %v3248, %v3174
        %v3250 = vadd.f32 %v3249, %v3175
        %3251 = vadd.xlane.f32.xlu0 %v3250
        %v3252 = vpop.xlane.xlu0 %3251
        %v3253 = vadd.f32 %v3176, %v3177
        %v3254 = vadd.f32 %v3253, %v3178
        %v3255 = vadd.f32 %v3254, %v3179
        %3256 = vadd.xlane.f32.xlu0 %v3255
        %v3257 = vpop.xlane.xlu0 %3256
        %v3258 = vadd.f32 %v3180, %v3181
        %v3259 = vadd.f32 %v3258, %v3182
        %v3260 = vadd.f32 %v3259, %v3183
        %3261 = vadd.xlane.f32.xlu0 %v3260
        %v3262 = vpop.xlane.xlu0 %3261
        %v3263 = vadd.f32 %v3184, %v3185
        %v3264 = vadd.f32 %v3263, %v3186
        %v3265 = vadd.f32 %v3264, %v3187
        %3266 = vadd.xlane.f32.xlu0 %v3265
        %v3267 = vpop.xlane.xlu0 %3266
        %v3268 = vadd.f32 %v3188, %v3189
        %v3269 = vadd.f32 %v3268, %v3190
        %v3270 = vadd.f32 %v3269, %v3191
        %3271 = vadd.xlane.f32.xlu0 %v3270
        %v3272 = vpop.xlane.xlu0 %3271
        %v3273 = vadd.f32 %v3192, %v3193
        %v3274 = vadd.f32 %v3273, %v3194
        %v3275 = vadd.f32 %v3274, %v3195
        %3276 = vadd.xlane.f32.xlu0 %v3275
        %v3277 = vpop.xlane.xlu0 %3276
        %v3278 = vadd.f32 %v3196, %v3197
        %v3279 = vadd.f32 %v3278, %v3198
        %v3280 = vadd.f32 %v3279, %v3199
        %3281 = vadd.xlane.f32.xlu0 %v3280
        %v3282 = vpop.xlane.xlu0 %3281
        %v3283 = vadd.f32 %v3200, %v3201
        %v3284 = vadd.f32 %v3283, %v3202
        %v3285 = vadd.f32 %v3284, %v3203
        %3286 = vadd.xlane.f32.xlu0 %v3285
        %v3287 = vpop.xlane.xlu0 %3286
        %v3288 = vadd.f32 %v3204, %v3205
        %v3289 = vadd.f32 %v3288, %v3206
        %v3290 = vadd.f32 %v3289, %v3207
        %3291 = vadd.xlane.f32.xlu0 %v3290
        %v3292 = vpop.xlane.xlu0 %3291
        %v3293 = vadd.f32 %v3208, %v3209
        %v3294 = vadd.f32 %v3293, %v3210
        %v3295 = vadd.f32 %v3294, %v3211
        %3296 = vadd.xlane.f32.xlu0 %v3295
        %v3297 = vpop.xlane.xlu0 %3296
        %v3298 = vadd.f32 %v3212, %v3213
        %v3299 = vadd.f32 %v3298, %v3214
        %v3300 = vadd.f32 %v3299, %v3215
        %3301 = vadd.xlane.f32.xlu0 %v3300
        %v3302 = vpop.xlane.xlu0 %3301
        %v3303 = vadd.f32 %v3216, %v3217
        %v3304 = vadd.f32 %v3303, %v3218
        %v3305 = vadd.f32 %v3304, %v3219
        %3306 = vadd.xlane.f32.xlu0 %v3305
        %v3307 = vpop.xlane.xlu0 %3306
        %v3308 = vadd.f32 %v3220, %v3221
        %v3309 = vadd.f32 %v3308, %v3222
        %v3310 = vadd.f32 %v3309, %v3223
        %3311 = vadd.xlane.f32.xlu0 %v3310
        %v3312 = vpop.xlane.xlu0 %3311
        %v3313 = vadd.f32 %v3224, %v3225
        %v3314 = vadd.f32 %v3313, %v3226
        %v3315 = vadd.f32 %v3314, %v3227
        %3316 = vadd.xlane.f32.xlu0 %v3315
        %v3317 = vpop.xlane.xlu0 %3316
        %v3318 = vadd.f32 %v3228, %v3229
        %v3319 = vadd.f32 %v3318, %v3230
        %v3320 = vadd.f32 %v3319, %v3231
        %3321 = vadd.xlane.f32.xlu0 %v3320
        %v3322 = vpop.xlane.xlu0 %3321
        %v3323 = vadd.f32 %v3232, %v3233
        %v3324 = vadd.f32 %v3323, %v3234
        %v3325 = vadd.f32 %v3324, %v3235
        %3326 = vadd.xlane.f32.xlu0 %v3325
        %v3327 = vpop.xlane.xlu0 %3326
        %v3328 = vadd.f32 %v3236, %v3237
        %v3329 = vadd.f32 %v3328, %v3238
        %v3330 = vadd.f32 %v3329, %v3239
        %3331 = vadd.xlane.f32.xlu0 %v3330
        %v3332 = vpop.xlane.xlu0 %3331
        %v3333 = vadd.f32 %v3240, %v3241
        %v3334 = vadd.f32 %v3333, %v3242
        %v3335 = vadd.f32 %v3334, %v3243
        %3336 = vadd.xlane.f32.xlu0 %v3335
        %v3337 = vpop.xlane.xlu0 %3336
        %v3338 = vadd.f32 %v3244, %v3245
        %v3339 = vadd.f32 %v3338, %v3246
        %v3340 = vadd.f32 %v3339, %v3247
        %3341 = vadd.xlane.f32.xlu0 %v3340
        %v3342 = vpop.xlane.xlu0 %3341
        %v3343 = vmul.f32 %v3252, %v1019
        %v3344 = vmul.f32 %v3257, %v1019
        %v3345 = vmul.f32 %v3262, %v1019
        %v3346 = vmul.f32 %v3267, %v1019
        %v3347 = vmul.f32 %v3272, %v1019
        %v3348 = vmul.f32 %v3277, %v1019
        %v3349 = vmul.f32 %v3282, %v1019
        %v3350 = vmul.f32 %v3287, %v1019
        %v3351 = vmul.f32 %v3292, %v1019
        %v3352 = vmul.f32 %v3297, %v1019
        %v3353 = vmul.f32 %v3302, %v1019
        %v3354 = vmul.f32 %v3307, %v1019
        %v3355 = vmul.f32 %v3312, %v1019
        %v3356 = vmul.f32 %v3317, %v1019
        %v3357 = vmul.f32 %v3322, %v1019
        %v3358 = vmul.f32 %v3327, %v1019
        %v3359 = vmul.f32 %v3332, %v1019
        %v3360 = vmul.f32 %v3337, %v1019
        %v3361 = vmul.f32 %v3342, %v1019
        %v3362 = vmul.f32 %v3153, %v3153
        %v3363 = vmul.f32 %v3154, %v3154
        %v3364 = vmul.f32 %v3155, %v3155
        %v3365 = vmul.f32 %v3156, %v3156
        %v3366 = vmul.f32 %v3157, %v3157
        %v3367 = vmul.f32 %v3158, %v3158
        %v3368 = vmul.f32 %v3159, %v3159
        %v3369 = vmul.f32 %v3160, %v3160
        %v3370 = vmul.f32 %v3161, %v3161
        %v3371 = vmul.f32 %v3162, %v3162
        %v3372 = vmul.f32 %v3163, %v3163
        %v3373 = vmul.f32 %v3164, %v3164
        %v3374 = vmul.f32 %v3165, %v3165
        %v3375 = vmul.f32 %v3166, %v3166
        %v3376 = vmul.f32 %v3167, %v3167
        %v3377 = vmul.f32 %v3168, %v3168
        %v3378 = vmul.f32 %v3169, %v3169
        %v3379 = vmul.f32 %v3170, %v3170
        %v3380 = vmul.f32 %v3171, %v3171
        %v3381 = vsub.f32 %v3343, %v3362
        %v3382 = vsub.f32 %v3344, %v3363
        %v3383 = vsub.f32 %v3345, %v3364
        %v3384 = vsub.f32 %v3346, %v3365
        %v3385 = vsub.f32 %v3347, %v3366
        %v3386 = vsub.f32 %v3348, %v3367
        %v3387 = vsub.f32 %v3349, %v3368
        %v3388 = vsub.f32 %v3350, %v3369
        %v3389 = vsub.f32 %v3351, %v3370
        %v3390 = vsub.f32 %v3352, %v3371
        %v3391 = vsub.f32 %v3353, %v3372
        %v3392 = vsub.f32 %v3354, %v3373
        %v3393 = vsub.f32 %v3355, %v3374
        %v3394 = vsub.f32 %v3356, %v3375
        %v3395 = vsub.f32 %v3357, %v3376
        %v3396 = vsub.f32 %v3358, %v3377
        %v3397 = vsub.f32 %v3359, %v3378
        %v3398 = vsub.f32 %v3360, %v3379
        %v3399 = vsub.f32 %v3361, %v3380
        %v3400 = vmax.f32 %v3381, 0.0
        %v3401 = vmax.f32 %v3382, 0.0
        %v3402 = vmax.f32 %v3383, 0.0
        %v3403 = vmax.f32 %v3384, 0.0
        %v3404 = vmax.f32 %v3385, 0.0
        %v3405 = vmax.f32 %v3386, 0.0
        %v3406 = vmax.f32 %v3387, 0.0
        %v3407 = vmax.f32 %v3388, 0.0
        %v3408 = vmax.f32 %v3389, 0.0
        %v3409 = vmax.f32 %v3390, 0.0
        %v3410 = vmax.f32 %v3391, 0.0
        %v3411 = vmax.f32 %v3392, 0.0
        %v3412 = vmax.f32 %v3393, 0.0
        %v3413 = vmax.f32 %v3394, 0.0
        %v3414 = vmax.f32 %v3395, 0.0
        %v3415 = vmax.f32 %v3396, 0.0
        %v3416 = vmax.f32 %v3397, 0.0
        %v3417 = vmax.f32 %v3398, 0.0
        %v3418 = vmax.f32 %v3399, 0.0
        %v3419 = vsub.f32 %v2698, %v3153
        %v3420 = vsub.f32 %v2700, %v3153
        %v3421 = vsub.f32 %v2960, %v3153
        %v3422 = vsub.f32 %v2962, %v3153
        %v3423 = vsub.f32 %v2702, %v3154
        %v3424 = vsub.f32 %v2704, %v3154
        %v3425 = vsub.f32 %v2964, %v3154
        %v3426 = vsub.f32 %v2966, %v3154
        %v3427 = vsub.f32 %v2708, %v3155
        %v3428 = vsub.f32 %v2710, %v3155
        %v3429 = vsub.f32 %v2970, %v3155
        %v3430 = vsub.f32 %v2972, %v3155
        %v3431 = vsub.f32 %v2712, %v3156
        %v3432 = vsub.f32 %v2714, %v3156
        %v3433 = vsub.f32 %v2974, %v3156
        %v3434 = vsub.f32 %v2976, %v3156
        %v3435 = vsub.f32 %v2718, %v3157
        %v3436 = vsub.f32 %v2720, %v3157
        %v3437 = vsub.f32 %v2980, %v3157
        %v3438 = vsub.f32 %v2982, %v3157
        %v3439 = vsub.f32 %v2722, %v3158
        %v3440 = vsub.f32 %v2724, %v3158
        %v3441 = vsub.f32 %v2984, %v3158
        %v3442 = vsub.f32 %v2986, %v3158
        %v3443 = vsub.f32 %v2728, %v3159
        %v3444 = vsub.f32 %v2730, %v3159
        %v3445 = vsub.f32 %v2990, %v3159
        %v3446 = vsub.f32 %v2992, %v3159
        %v3447 = vsub.f32 %v2732, %v3160
        %v3448 = vsub.f32 %v2734, %v3160
        %v3449 = vsub.f32 %v2994, %v3160
        %v3450 = vsub.f32 %v2996, %v3160
        %v3451 = vsub.f32 %v2738, %v3161
        %v3452 = vsub.f32 %v2740, %v3161
        %v3453 = vsub.f32 %v3000, %v3161
        %v3454 = vsub.f32 %v3002, %v3161
        %v3455 = vsub.f32 %v2742, %v3162
        %v3456 = vsub.f32 %v2744, %v3162
        %v3457 = vsub.f32 %v3004, %v3162
        %v3458 = vsub.f32 %v3006, %v3162
        %v3459 = vsub.f32 %v2748, %v3163
        %v3460 = vsub.f32 %v2750, %v3163
        %v3461 = vsub.f32 %v3010, %v3163
        %v3462 = vsub.f32 %v3012, %v3163
        %v3463 = vsub.f32 %v2752, %v3164
        %v3464 = vsub.f32 %v2754, %v3164
        %v3465 = vsub.f32 %v3014, %v3164
        %v3466 = vsub.f32 %v3016, %v3164
        %v3467 = vsub.f32 %v2758, %v3165
        %v3468 = vsub.f32 %v2760, %v3165
        %v3469 = vsub.f32 %v3020, %v3165
        %v3470 = vsub.f32 %v3022, %v3165
        %v3471 = vsub.f32 %v2762, %v3166
        %v3472 = vsub.f32 %v2764, %v3166
        %v3473 = vsub.f32 %v3024, %v3166
        %v3474 = vsub.f32 %v3026, %v3166
        %v3475 = vsub.f32 %v2768, %v3167
        %v3476 = vsub.f32 %v2770, %v3167
        %v3477 = vsub.f32 %v3030, %v3167
        %v3478 = vsub.f32 %v3032, %v3167
        %v3479 = vsub.f32 %v2772, %v3168
        %v3480 = vsub.f32 %v2774, %v3168
        %v3481 = vsub.f32 %v3034, %v3168
        %v3482 = vsub.f32 %v3036, %v3168
        %v3483 = vsub.f32 %v2778, %v3169
        %v3484 = vsub.f32 %v2780, %v3169
        %v3485 = vsub.f32 %v3040, %v3169
        %v3486 = vsub.f32 %v3042, %v3169
        %v3487 = vsub.f32 %v2782, %v3170
        %v3488 = vsub.f32 %v2784, %v3170
        %v3489 = vsub.f32 %v3044, %v3170
        %v3490 = vsub.f32 %v3046, %v3170
        %v3491 = vsub.f32 %v2788, %v3171
        %v3492 = vsub.f32 %v2790, %v3171
        %v3493 = vsub.f32 %v3050, %v3171
        %v3494 = vsub.f32 %v3052, %v3171
        %v3495 = vadd.f32 %v3400, 1e-05
        %v3496 = vadd.f32 %v3401, 1e-05
        %v3497 = vadd.f32 %v3402, 1e-05
        %v3498 = vadd.f32 %v3403, 1e-05
        %v3499 = vadd.f32 %v3404, 1e-05
        %v3500 = vadd.f32 %v3405, 1e-05
        %v3501 = vadd.f32 %v3406, 1e-05
        %v3502 = vadd.f32 %v3407, 1e-05
        %v3503 = vadd.f32 %v3408, 1e-05
        %v3504 = vadd.f32 %v3409, 1e-05
        %v3505 = vadd.f32 %v3410, 1e-05
        %v3506 = vadd.f32 %v3411, 1e-05
        %v3507 = vadd.f32 %v3412, 1e-05
        %v3508 = vadd.f32 %v3413, 1e-05
        %v3509 = vadd.f32 %v3414, 1e-05
        %v3510 = vadd.f32 %v3415, 1e-05
        %v3511 = vadd.f32 %v3416, 1e-05
        %v3512 = vadd.f32 %v3417, 1e-05
        %v3513 = vadd.f32 %v3418, 1e-05
        %v3514 = vrsqrt.pop %v3495
        %v3515 = vrsqrt.pop %v3496
        %v3516 = vrsqrt.pop %v3497
        %v3517 = vrsqrt.pop %v3498
        %v3518 = vrsqrt.pop %v3499
        %v3519 = vrsqrt.pop %v3500
        %v3520 = vrsqrt.pop %v3501
        %v3521 = vrsqrt.pop %v3502
        %v3522 = vrsqrt.pop %v3503
        %v3523 = vrsqrt.pop %v3504
        %v3524 = vrsqrt.pop %v3505
        %v3525 = vrsqrt.pop %v3506
        %v3526 = vrsqrt.pop %v3507
        %v3527 = vrsqrt.pop %v3508
        %v3528 = vrsqrt.pop %v3509
        %v3529 = vrsqrt.pop %v3510
        %v3530 = vrsqrt.pop %v3511
        %v3531 = vrsqrt.pop %v3512
        %v3532 = vrsqrt.pop %v3513
        %v3533 = vmul.f32 %v3419, %v3514
        %v3534 = vmul.f32 %v3420, %v3514
        %v3535 = vmul.f32 %v3421, %v3514
        %v3536 = vmul.f32 %v3422, %v3514
        %v3537 = vmul.f32 %v3423, %v3515
        %v3538 = vmul.f32 %v3424, %v3515
        %v3539 = vmul.f32 %v3425, %v3515
        %v3540 = vmul.f32 %v3426, %v3515
        %v3541 = vmul.f32 %v3427, %v3516
        %v3542 = vmul.f32 %v3428, %v3516
        %v3543 = vmul.f32 %v3429, %v3516
        %v3544 = vmul.f32 %v3430, %v3516
        %v3545 = vmul.f32 %v3431, %v3517
        %v3546 = vmul.f32 %v3432, %v3517
        %v3547 = vmul.f32 %v3433, %v3517
        %v3548 = vmul.f32 %v3434, %v3517
        %v3549 = vmul.f32 %v3435, %v3518
        %v3550 = vmul.f32 %v3436, %v3518
        %v3551 = vmul.f32 %v3437, %v3518
        %v3552 = vmul.f32 %v3438, %v3518
        %v3553 = vmul.f32 %v3439, %v3519
        %v3554 = vmul.f32 %v3440, %v3519
        %v3555 = vmul.f32 %v3441, %v3519
        %v3556 = vmul.f32 %v3442, %v3519
        %v3557 = vmul.f32 %v3443, %v3520
        %v3558 = vmul.f32 %v3444, %v3520
        %v3559 = vmul.f32 %v3445, %v3520
        %v3560 = vmul.f32 %v3446, %v3520
        %v3561 = vmul.f32 %v3447, %v3521
        %v3562 = vmul.f32 %v3448, %v3521
        %v3563 = vmul.f32 %v3449, %v3521
        %v3564 = vmul.f32 %v3450, %v3521
        %v3565 = vmul.f32 %v3451, %v3522
        %v3566 = vmul.f32 %v3452, %v3522
        %v3567 = vmul.f32 %v3453, %v3522
        %v3568 = vmul.f32 %v3454, %v3522
        %v3569 = vmul.f32 %v3455, %v3523
        %v3570 = vmul.f32 %v3456, %v3523
        %v3571 = vmul.f32 %v3457, %v3523
        %v3572 = vmul.f32 %v3458, %v3523
        %v3573 = vmul.f32 %v3459, %v3524
        %v3574 = vmul.f32 %v3460, %v3524
        %v3575 = vmul.f32 %v3461, %v3524
        %v3576 = vmul.f32 %v3462, %v3524
        %v3577 = vmul.f32 %v3463, %v3525
        %v3578 = vmul.f32 %v3464, %v3525
        %v3579 = vmul.f32 %v3465, %v3525
        %v3580 = vmul.f32 %v3466, %v3525
        %v3581 = vmul.f32 %v3467, %v3526
        %v3582 = vmul.f32 %v3468, %v3526
        %v3583 = vmul.f32 %v3469, %v3526
        %v3584 = vmul.f32 %v3470, %v3526
        %v3585 = vmul.f32 %v3471, %v3527
        %v3586 = vmul.f32 %v3472, %v3527
        %v3587 = vmul.f32 %v3473, %v3527
        %v3588 = vmul.f32 %v3474, %v3527
        %v3589 = vmul.f32 %v3475, %v3528
        %v3590 = vmul.f32 %v3476, %v3528
        %v3591 = vmul.f32 %v3477, %v3528
        %v3592 = vmul.f32 %v3478, %v3528
        %v3593 = vmul.f32 %v3479, %v3529
        %v3594 = vmul.f32 %v3480, %v3529
        %v3595 = vmul.f32 %v3481, %v3529
        %v3596 = vmul.f32 %v3482, %v3529
        %v3597 = vmul.f32 %v3483, %v3530
        %v3598 = vmul.f32 %v3484, %v3530
        %v3599 = vmul.f32 %v3485, %v3530
        %v3600 = vmul.f32 %v3486, %v3530
        %v3601 = vmul.f32 %v3487, %v3531
        %v3602 = vmul.f32 %v3488, %v3531
        %v3603 = vmul.f32 %v3489, %v3531
        %v3604 = vmul.f32 %v3490, %v3531
        %v3605 = vmul.f32 %v3491, %v3532
        %v3606 = vmul.f32 %v3492, %v3532
        %v3607 = vmul.f32 %v3493, %v3532
        %v3608 = vmul.f32 %v3494, %v3532
        %v3609 = vpack.c.bf16 %v3537, %v3533
        %v3610 = vpack.c.bf16 %v3538, %v3534
        %v3611 = vpack.c.bf16 %v3539, %v3535
        %v3612 = vpack.c.bf16 %v3540, %v3536
        %v3613 = vpack.c.bf16 %v3545, %v3541
        %v3614 = vpack.c.bf16 %v3546, %v3542
        %v3615 = vpack.c.bf16 %v3547, %v3543
        %v3616 = vpack.c.bf16 %v3548, %v3544
        %v3617 = vpack.c.bf16 %v3553, %v3549
        %v3618 = vpack.c.bf16 %v3554, %v3550
        %v3619 = vpack.c.bf16 %v3555, %v3551
        %v3620 = vpack.c.bf16 %v3556, %v3552
        %v3621 = vpack.c.bf16 %v3561, %v3557
        %v3622 = vpack.c.bf16 %v3562, %v3558
        %v3623 = vpack.c.bf16 %v3563, %v3559
        %v3624 = vpack.c.bf16 %v3564, %v3560
        %v3625 = vpack.c.bf16 %v3569, %v3565
        %v3626 = vpack.c.bf16 %v3570, %v3566
        %v3627 = vpack.c.bf16 %v3571, %v3567
        %v3628 = vpack.c.bf16 %v3572, %v3568
        %v3629 = vpack.c.bf16 %v3577, %v3573
        %v3630 = vpack.c.bf16 %v3578, %v3574
        %v3631 = vpack.c.bf16 %v3579, %v3575
        %v3632 = vpack.c.bf16 %v3580, %v3576
        %v3633 = vpack.c.bf16 %v3585, %v3581
        %v3634 = vpack.c.bf16 %v3586, %v3582
        %v3635 = vpack.c.bf16 %v3587, %v3583
        %v3636 = vpack.c.bf16 %v3588, %v3584
        %v3637 = vpack.c.bf16 %v3593, %v3589
        %v3638 = vpack.c.bf16 %v3594, %v3590
        %v3639 = vpack.c.bf16 %v3595, %v3591
        %v3640 = vpack.c.bf16 %v3596, %v3592
        %v3641 = vpack.c.bf16 %v3601, %v3597
        %v3642 = vpack.c.bf16 %v3602, %v3598
        %v3643 = vpack.c.bf16 %v3603, %v3599
        %v3644 = vpack.c.bf16 %v3604, %v3600
        %v3645 = vpack.c.bf16 %v3605, %v3605
        %v3646 = vpack.c.bf16 %v3606, %v3606
        %v3647 = vpack.c.bf16 %v3607, %v3607
        %v3648 = vpack.c.bf16 %v3608, %v3608
        %v3650 = vlaneseq
        %v3651 = vshrl.u32 %v3650, 7
        %v3652 = vsub.s32 0, %v3651
        %v3653 = vrot.slane %v3056, %v3652
        %v3654 = vlaneseq
        %v3655 = vshrl.u32 %v3654, 7
        %v3656 = vsub.s32 1, %v3655
        %v3657 = vrot.slane %v3056, %v3656
        %v3658 = vlaneseq
        %v3659 = vshrl.u32 %v3658, 7
        %v3660 = vsub.s32 2, %v3659
        %v3661 = vrot.slane %v3056, %v3660
        %v3662 = vlaneseq
        %v3663 = vshrl.u32 %v3662, 7
        %v3664 = vsub.s32 3, %v3663
        %v3665 = vrot.slane %v3056, %v3664
        %v3670 = vpack.c.bf16 %v3653, %v3653
        %v3671 = vpack.c.bf16 %v3657, %v3657
        %v3672 = vpack.c.bf16 %v3661, %v3661
        %v3673 = vpack.c.bf16 %v3665, %v3665
        %v3675 = vpack.i.b16 %v3670, %v3670
        %v3677 = vlaneseq
        %v3678 = vshrl.u32 %v3677, 7
        %v3679 = vsub.s32 0, %v3678
        %v3680 = vrot.slane %v3675, %v3679
        %v3682 = vpack.i.b16 %v3671, %v3671
        %v3684 = vlaneseq
        %v3685 = vshrl.u32 %v3684, 7
        %v3686 = vsub.s32 0, %v3685
        %v3687 = vrot.slane %v3682, %v3686
        %v3689 = vpack.i.b16 %v3672, %v3672
        %v3691 = vlaneseq
        %v3692 = vshrl.u32 %v3691, 7
        %v3693 = vsub.s32 0, %v3692
        %v3694 = vrot.slane %v3689, %v3693
        %v3696 = vpack.i.b16 %v3673, %v3673
        %v3698 = vlaneseq
        %v3699 = vshrl.u32 %v3698, 7
        %v3700 = vsub.s32 0, %v3699
        %v3701 = vrot.slane %v3696, %v3700
        %v3702 = vmul.bf16 %v3609, %v3680
        %v3703 = vmul.bf16 %v3610, %v3687
        %v3704 = vmul.bf16 %v3611, %v3694
        %v3705 = vmul.bf16 %v3612, %v3701
        %v3706 = vmul.bf16 %v3613, %v3680
        %v3707 = vmul.bf16 %v3614, %v3687
        %v3708 = vmul.bf16 %v3615, %v3694
        %v3709 = vmul.bf16 %v3616, %v3701
        %v3710 = vmul.bf16 %v3617, %v3680
        %v3711 = vmul.bf16 %v3618, %v3687
        %v3712 = vmul.bf16 %v3619, %v3694
        %v3713 = vmul.bf16 %v3620, %v3701
        %v3714 = vmul.bf16 %v3621, %v3680
        %v3715 = vmul.bf16 %v3622, %v3687
        %v3716 = vmul.bf16 %v3623, %v3694
        %v3717 = vmul.bf16 %v3624, %v3701
        %v3718 = vmul.bf16 %v3625, %v3680
        %v3719 = vmul.bf16 %v3626, %v3687
        %v3720 = vmul.bf16 %v3627, %v3694
        %v3721 = vmul.bf16 %v3628, %v3701
        %v3722 = vmul.bf16 %v3629, %v3680
        %v3723 = vmul.bf16 %v3630, %v3687
        %v3724 = vmul.bf16 %v3631, %v3694
        %v3725 = vmul.bf16 %v3632, %v3701
        %v3726 = vmul.bf16 %v3633, %v3680
        %v3727 = vmul.bf16 %v3634, %v3687
        %v3728 = vmul.bf16 %v3635, %v3694
        %v3729 = vmul.bf16 %v3636, %v3701
        %v3730 = vmul.bf16 %v3637, %v3680
        %v3731 = vmul.bf16 %v3638, %v3687
        %v3732 = vmul.bf16 %v3639, %v3694
        %v3733 = vmul.bf16 %v3640, %v3701
        %v3734 = vmul.bf16 %v3641, %v3680
        %v3735 = vmul.bf16 %v3642, %v3687
        %v3736 = vmul.bf16 %v3643, %v3694
        %v3737 = vmul.bf16 %v3644, %v3701
        %v3738 = vmul.bf16 %v3645, %v3680
        %v3739 = vmul.bf16 %v3646, %v3687
        %v3740 = vmul.bf16 %v3647, %v3694
        %v3741 = vmul.bf16 %v3648, %v3701
        %v3743 = vlaneseq
        %v3744 = vshrl.u32 %v3743, 7
        %v3745 = vsub.s32 0, %v3744
        %v3746 = vrot.slane %v3057, %v3745
        %v3747 = vlaneseq
        %v3748 = vshrl.u32 %v3747, 7
        %v3749 = vsub.s32 1, %v3748
        %v3750 = vrot.slane %v3057, %v3749
        %v3751 = vlaneseq
        %v3752 = vshrl.u32 %v3751, 7
        %v3753 = vsub.s32 2, %v3752
        %v3754 = vrot.slane %v3057, %v3753
        %v3755 = vlaneseq
        %v3756 = vshrl.u32 %v3755, 7
        %v3757 = vsub.s32 3, %v3756
        %v3758 = vrot.slane %v3057, %v3757
        %v3763 = vpack.c.bf16 %v3746, %v3746
        %v3764 = vpack.c.bf16 %v3750, %v3750
        %v3765 = vpack.c.bf16 %v3754, %v3754
        %v3766 = vpack.c.bf16 %v3758, %v3758
        %v3768 = vpack.i.b16 %v3763, %v3763
        %v3770 = vlaneseq
        %v3771 = vshrl.u32 %v3770, 7
        %v3772 = vsub.s32 0, %v3771
        %v3773 = vrot.slane %v3768, %v3772
        %v3775 = vpack.i.b16 %v3764, %v3764
        %v3777 = vlaneseq
        %v3778 = vshrl.u32 %v3777, 7
        %v3779 = vsub.s32 0, %v3778
        %v3780 = vrot.slane %v3775, %v3779
        %v3782 = vpack.i.b16 %v3765, %v3765
        %v3784 = vlaneseq
        %v3785 = vshrl.u32 %v3784, 7
        %v3786 = vsub.s32 0, %v3785
        %v3787 = vrot.slane %v3782, %v3786
        %v3789 = vpack.i.b16 %v3766, %v3766
        %v3791 = vlaneseq
        %v3792 = vshrl.u32 %v3791, 7
        %v3793 = vsub.s32 0, %v3792
        %v3794 = vrot.slane %v3789, %v3793
        %v3795 = vadd.bf16 %v3702, %v3773
        %v3796 = vadd.bf16 %v3703, %v3780
        %v3797 = vadd.bf16 %v3704, %v3787
        %v3798 = vadd.bf16 %v3705, %v3794
        %v3799 = vadd.bf16 %v3706, %v3773
        %v3800 = vadd.bf16 %v3707, %v3780
        %v3801 = vadd.bf16 %v3708, %v3787
        %v3802 = vadd.bf16 %v3709, %v3794
        %v3803 = vadd.bf16 %v3710, %v3773
        %v3804 = vadd.bf16 %v3711, %v3780
        %v3805 = vadd.bf16 %v3712, %v3787
        %v3806 = vadd.bf16 %v3713, %v3794
        %v3807 = vadd.bf16 %v3714, %v3773
        %v3808 = vadd.bf16 %v3715, %v3780
        %v3809 = vadd.bf16 %v3716, %v3787
        %v3810 = vadd.bf16 %v3717, %v3794
        %v3811 = vadd.bf16 %v3718, %v3773
        %v3812 = vadd.bf16 %v3719, %v3780
        %v3813 = vadd.bf16 %v3720, %v3787
        %v3814 = vadd.bf16 %v3721, %v3794
        %v3815 = vadd.bf16 %v3722, %v3773
        %v3816 = vadd.bf16 %v3723, %v3780
        %v3817 = vadd.bf16 %v3724, %v3787
        %v3818 = vadd.bf16 %v3725, %v3794
        %v3819 = vadd.bf16 %v3726, %v3773
        %v3820 = vadd.bf16 %v3727, %v3780
        %v3821 = vadd.bf16 %v3728, %v3787
        %v3822 = vadd.bf16 %v3729, %v3794
        %v3823 = vadd.bf16 %v3730, %v3773
        %v3824 = vadd.bf16 %v3731, %v3780
        %v3825 = vadd.bf16 %v3732, %v3787
        %v3826 = vadd.bf16 %v3733, %v3794
        %v3827 = vadd.bf16 %v3734, %v3773
        %v3828 = vadd.bf16 %v3735, %v3780
        %v3829 = vadd.bf16 %v3736, %v3787
        %v3830 = vadd.bf16 %v3737, %v3794
        %v3831 = vadd.bf16 %v3738, %v3773
        %v3832 = vadd.bf16 %v3739, %v3780
        %v3833 = vadd.bf16 %v3740, %v3787
        %v3834 = vadd.bf16 %v3741, %v3794
        %v3835 = vmax.bf16 %v3795, 0
        %v3836 = vmax.bf16 %v3796, 0
        %v3837 = vmax.bf16 %v3797, 0
        %v3838 = vmax.bf16 %v3798, 0
        %v3839 = vmax.bf16 %v3799, 0
        %v3840 = vmax.bf16 %v3800, 0
        %v3841 = vmax.bf16 %v3801, 0
        %v3842 = vmax.bf16 %v3802, 0
        %v3843 = vmax.bf16 %v3803, 0
        %v3844 = vmax.bf16 %v3804, 0
        %v3845 = vmax.bf16 %v3805, 0
        %v3846 = vmax.bf16 %v3806, 0
        %v3847 = vmax.bf16 %v3807, 0
        %v3848 = vmax.bf16 %v3808, 0
        %v3849 = vmax.bf16 %v3809, 0
        %v3850 = vmax.bf16 %v3810, 0
        %v3851 = vmax.bf16 %v3811, 0
        %v3852 = vmax.bf16 %v3812, 0
        %v3853 = vmax.bf16 %v3813, 0
        %v3854 = vmax.bf16 %v3814, 0
        %v3855 = vmax.bf16 %v3815, 0
        %v3856 = vmax.bf16 %v3816, 0
        %v3857 = vmax.bf16 %v3817, 0
        %v3858 = vmax.bf16 %v3818, 0
        %v3859 = vmax.bf16 %v3819, 0
        %v3860 = vmax.bf16 %v3820, 0
        %v3861 = vmax.bf16 %v3821, 0
        %v3862 = vmax.bf16 %v3822, 0
        %v3863 = vmax.bf16 %v3823, 0
        %v3864 = vmax.bf16 %v3824, 0
        %v3865 = vmax.bf16 %v3825, 0
        %v3866 = vmax.bf16 %v3826, 0
        %v3867 = vmax.bf16 %v3827, 0
        %v3868 = vmax.bf16 %v3828, 0
        %v3869 = vmax.bf16 %v3829, 0
        %v3870 = vmax.bf16 %v3830, 0
        %v3871 = vmax.bf16 %v3831, 0
        %v3872 = vmax.bf16 %v3832, 0
        %v3873 = vmax.bf16 %v3833, 0
        %v3874 = vmax.bf16 %v3834, 0
        %v3875 = vld [vmem:[%s9] sm:$0xff]
        %v3876 = vld [vmem:[%s9 + $0x8] sm:$0xff]
        %v3877 = vld [vmem:[%s9 + $0x10] sm:$0xff]
        %v3878 = vld [vmem:[%s9 + $0x18] sm:$0xff]
        %v3879 = vld [vmem:[%s9 + $0x20] sm:$0xff]
        %v3880 = vld [vmem:[%s9 + $0x28] sm:$0xff]
        %v3881 = vld [vmem:[%s9 + $0x30] sm:$0xff]
        %v3882 = vld [vmem:[%s9 + $0x38] sm:$0xff]
        %v3883 = vld [vmem:[%s9 + $0x40] sm:$0xff]
        %v3884 = vld [vmem:[%s9 + $0x48] sm:$0xff]
        %v3885 = vld [vmem:[%s9 + $0x50] sm:$0xff]
        %v3886 = vld [vmem:[%s9 + $0x58] sm:$0xff]
        %v3887 = vld [vmem:[%s9 + $0x60] sm:$0xff]
        %v3888 = vld [vmem:[%s9 + $0x68] sm:$0xff]
        %v3889 = vld [vmem:[%s9 + $0x70] sm:$0xff]
        %v3890 = vld [vmem:[%s9 + $0x78] sm:$0xff]
        %v3891 = vld [vmem:[%s9 + $0x80] sm:$0xff]
        %v3892 = vld [vmem:[%s9 + $0x88] sm:$0xff]
        %v3893 = vld [vmem:[%s9 + $0x90] sm:$0xff]
        %v3894 = vld [vmem:[%s9 + $0x98] sm:$0xff]
        %v3895 = vld [vmem:[%s9 + $0xa0] sm:$0xff]
        %v3896 = vld [vmem:[%s9 + $0xa8] sm:$0xff]
        %v3897 = vld [vmem:[%s9 + $0xb0] sm:$0xff]
        %v3898 = vld [vmem:[%s9 + $0xb8] sm:$0xff]
        %v3899 = vld [vmem:[%s9 + $0xc0] sm:$0xff]
        %v3900 = vld [vmem:[%s9 + $0xc8] sm:$0xff]
        %v3901 = vld [vmem:[%s9 + $0xd0] sm:$0xff]
        %v3902 = vld [vmem:[%s9 + $0xd8] sm:$0xff]
        %v3903 = vld [vmem:[%s9 + $0xe0] sm:$0xff]
        %v3904 = vld [vmem:[%s9 + $0xe8] sm:$0xff]
        %v3905 = vld [vmem:[%s9 + $0xf0] sm:$0xff]
        %v3906 = vld [vmem:[%s9 + $0xf8] sm:$0xff]
        %v3907 = vld [vmem:[%s9 + $0x100] sm:$0xff]
        %v3908 = vld [vmem:[%s9 + $0x108] sm:$0xff]
        %v3909 = vld [vmem:[%s9 + $0x110] sm:$0xff]
        %v3910 = vld [vmem:[%s9 + $0x118] sm:$0xff]
        %v3911 = vld [vmem:[%s9 + $0x120] sm:$0xff]
        %v3912 = vld [vmem:[%s9 + $0x128] sm:$0xff]
        %v3913 = vld [vmem:[%s9 + $0x130] sm:$0xff]
        %v3914 = vld [vmem:[%s9 + $0x138] sm:$0xff]
        %v3915 = vld [vmem:[%s9 + $0x140] sm:$0xff]
        %v3916 = vld [vmem:[%s9 + $0x148] sm:$0xff]
        %v3917 = vld [vmem:[%s9 + $0x150] sm:$0xff]
        %v3918 = vld [vmem:[%s9 + $0x158] sm:$0xff]
        %v3919 = vld [vmem:[%s9 + $0x160] sm:$0xff]
        %v3920 = vld [vmem:[%s9 + $0x168] sm:$0xff]
        %v3921 = vld [vmem:[%s9 + $0x170] sm:$0xff]
        %v3922 = vld [vmem:[%s9 + $0x178] sm:$0xff]
        %v3923 = vld [vmem:[%s9 + $0x180] sm:$0xff]
        %v3924 = vld [vmem:[%s9 + $0x188] sm:$0xff]
        %v3925 = vld [vmem:[%s9 + $0x190] sm:$0xff]
        %v3926 = vld [vmem:[%s9 + $0x198] sm:$0xff]
        %v3927 = vld [vmem:[%s9 + $0x1a0] sm:$0xff]
        %v3928 = vld [vmem:[%s9 + $0x1a8] sm:$0xff]
        %v3929 = vld [vmem:[%s9 + $0x1b0] sm:$0xff]
        %v3930 = vld [vmem:[%s9 + $0x1b8] sm:$0xff]
        %v3931 = vld [vmem:[%s9 + $0x1c0] sm:$0xff]
        %v3932 = vld [vmem:[%s9 + $0x1c8] sm:$0xff]
        %v3933 = vld [vmem:[%s9 + $0x1d0] sm:$0xff]
        %v3934 = vld [vmem:[%s9 + $0x1d8] sm:$0xff]
        %v3935 = vld [vmem:[%s9 + $0x1e0] sm:$0xff]
        %v3936 = vld [vmem:[%s9 + $0x1e8] sm:$0xff]
        %v3937 = vld [vmem:[%s9 + $0x1f0] sm:$0xff]
        %v3938 = vld [vmem:[%s9 + $0x1f8] sm:$0xff]
        %v3939 = vld [vmem:[%s10] sm:$0x3]
        %v3941 = vlaneseq
        %v3942 = vshrl.u32 %v3941, 7
        %v3943 = vsub.s32 0, %v3942
        %v3944 = vrot.slane %v3939, %v3943
        %v3945 = vlaneseq
        %v3946 = vshrl.u32 %v3945, 7
        %v3947 = vsub.s32 1, %v3946
        %v3948 = vrot.slane %v3939, %v3947
        %v4015 = vunpack.c.l.b16 %v3875
        %v4016 = vunpack.c.h.b16 %v3875
        %v4017 = vunpack.c.l.b16 %v3876
        %v4018 = vunpack.c.h.b16 %v3876
        %v4019 = vunpack.c.l.b16 %v3877
        %v4020 = vunpack.c.h.b16 %v3877
        %v4021 = vunpack.c.l.b16 %v3878
        %v4022 = vunpack.c.h.b16 %v3878
        %v4023 = vunpack.c.l.b16 %v3879
        %v4024 = vunpack.c.h.b16 %v3879
        %v4025 = vunpack.c.l.b16 %v3880
        %v4026 = vunpack.c.h.b16 %v3880
        %v4027 = vunpack.c.l.b16 %v3881
        %v4028 = vunpack.c.h.b16 %v3881
        %v4029 = vunpack.c.l.b16 %v3882
        %v4030 = vunpack.c.h.b16 %v3882
        %v4031 = vunpack.c.l.b16 %v3883
        %v4032 = vunpack.c.h.b16 %v3883
        %v4033 = vunpack.c.l.b16 %v3884
        %v4034 = vunpack.c.h.b16 %v3884
        %v4035 = vunpack.c.l.b16 %v3885
        %v4036 = vunpack.c.h.b16 %v3885
        %v4037 = vunpack.c.l.b16 %v3886
        %v4038 = vunpack.c.h.b16 %v3886
        %v4039 = vunpack.c.l.b16 %v3887
        %v4040 = vunpack.c.h.b16 %v3887
        %v4041 = vunpack.c.l.b16 %v3888
        %v4042 = vunpack.c.h.b16 %v3888
        %v4043 = vunpack.c.l.b16 %v3889
        %v4044 = vunpack.c.h.b16 %v3889
        %v4045 = vunpack.c.l.b16 %v3890
        %v4046 = vunpack.c.h.b16 %v3890
        %v4047 = vunpack.c.l.b16 %v3891
        %v4048 = vunpack.c.h.b16 %v3891
        %v4049 = vunpack.c.l.b16 %v3892
        %v4050 = vunpack.c.h.b16 %v3892
        %v4051 = vunpack.c.l.b16 %v3893
        %v4052 = vunpack.c.h.b16 %v3893
        %v4053 = vunpack.c.l.b16 %v3894
        %v4054 = vunpack.c.h.b16 %v3894
        %v4055 = vunpack.c.l.b16 %v3895
        %v4056 = vunpack.c.h.b16 %v3895
        %v4057 = vunpack.c.l.b16 %v3896
        %v4058 = vunpack.c.h.b16 %v3896
        %v4059 = vunpack.c.l.b16 %v3897
        %v4060 = vunpack.c.h.b16 %v3897
        %v4061 = vunpack.c.l.b16 %v3898
        %v4062 = vunpack.c.h.b16 %v3898
        %v4063 = vunpack.c.l.b16 %v3899
        %v4064 = vunpack.c.h.b16 %v3899
        %v4065 = vunpack.c.l.b16 %v3900
        %v4066 = vunpack.c.h.b16 %v3900
        %v4067 = vunpack.c.l.b16 %v3901
        %v4068 = vunpack.c.h.b16 %v3901
        %v4069 = vunpack.c.l.b16 %v3902
        %v4070 = vunpack.c.h.b16 %v3902
        %v4071 = vunpack.c.l.b16 %v3903
        %v4072 = vunpack.c.h.b16 %v3903
        %v4073 = vunpack.c.l.b16 %v3904
        %v4074 = vunpack.c.h.b16 %v3904
        %v4075 = vunpack.c.l.b16 %v3905
        %v4076 = vunpack.c.h.b16 %v3905
        %v4077 = vunpack.c.l.b16 %v3906
        %v4078 = vunpack.c.h.b16 %v3906
        %v4079 = vunpack.c.l.b16 %v3907
        %v4080 = vunpack.c.h.b16 %v3907
        %v4081 = vunpack.c.l.b16 %v3908
        %v4082 = vunpack.c.h.b16 %v3908
        %v4083 = vunpack.c.l.b16 %v3909
        %v4084 = vunpack.c.h.b16 %v3909
        %v4085 = vunpack.c.l.b16 %v3910
        %v4086 = vunpack.c.h.b16 %v3910
        %v4087 = vunpack.c.l.b16 %v3911
        %v4088 = vunpack.c.h.b16 %v3911
        %v4089 = vunpack.c.l.b16 %v3912
        %v4090 = vunpack.c.h.b16 %v3912
        %v4091 = vunpack.c.l.b16 %v3913
        %v4092 = vunpack.c.h.b16 %v3913
        %v4093 = vunpack.c.l.b16 %v3914
        %v4094 = vunpack.c.h.b16 %v3914
        %v4095 = vunpack.c.l.b16 %v3915
        %v4096 = vunpack.c.h.b16 %v3915
        %v4097 = vunpack.c.l.b16 %v3916
        %v4098 = vunpack.c.h.b16 %v3916
        %v4099 = vunpack.c.l.b16 %v3917
        %v4100 = vunpack.c.h.b16 %v3917
        %v4101 = vunpack.c.l.b16 %v3918
        %v4102 = vunpack.c.h.b16 %v3918
        %v4103 = vunpack.c.l.b16 %v3919
        %v4104 = vunpack.c.h.b16 %v3919
        %v4105 = vunpack.c.l.b16 %v3920
        %v4106 = vunpack.c.h.b16 %v3920
        %v4107 = vunpack.c.l.b16 %v3921
        %v4108 = vunpack.c.h.b16 %v3921
        %v4109 = vunpack.c.l.b16 %v3922
        %v4110 = vunpack.c.h.b16 %v3922
        %v4111 = vunpack.c.l.b16 %v3923
        %v4112 = vunpack.c.h.b16 %v3923
        %v4113 = vunpack.c.l.b16 %v3924
        %v4114 = vunpack.c.h.b16 %v3924
        %v4115 = vunpack.c.l.b16 %v3925
        %v4116 = vunpack.c.h.b16 %v3925
        %v4117 = vunpack.c.l.b16 %v3926
        %v4118 = vunpack.c.h.b16 %v3926
        %v4119 = vunpack.c.l.b16 %v3927
        %v4120 = vunpack.c.h.b16 %v3927
        %v4121 = vunpack.c.l.b16 %v3928
        %v4122 = vunpack.c.h.b16 %v3928
        %v4123 = vunpack.c.l.b16 %v3929
        %v4124 = vunpack.c.h.b16 %v3929
        %v4125 = vunpack.c.l.b16 %v3930
        %v4126 = vunpack.c.h.b16 %v3930
        %v4127 = vunpack.c.l.b16 %v3931
        %v4128 = vunpack.c.h.b16 %v3931
        %v4129 = vunpack.c.l.b16 %v3932
        %v4130 = vunpack.c.h.b16 %v3932
        %v4131 = vunpack.c.l.b16 %v3933
        %v4132 = vunpack.c.h.b16 %v3933
        %v4133 = vunpack.c.l.b16 %v3934
        %v4134 = vunpack.c.h.b16 %v3934
        %v4135 = vunpack.c.l.b16 %v3935
        %v4136 = vunpack.c.h.b16 %v3935
        %v4137 = vunpack.c.l.b16 %v3936
        %v4138 = vunpack.c.h.b16 %v3936
        %v4139 = vunpack.c.l.b16 %v3937
        %v4140 = vunpack.c.h.b16 %v3937
        %v4141 = vunpack.c.l.b16 %v3938
        %v4142 = vunpack.c.h.b16 %v3938
        %v4143 = vpack.c.b16 %v4017, %v4015
        %v4144 = vpack.c.b16 %v4018, %v4016
        %v4145 = vpack.c.b16 %v4021, %v4019
        %v4146 = vpack.c.b16 %v4022, %v4020
        %v4147 = vpack.c.b16 %v4025, %v4023
        %v4148 = vpack.c.b16 %v4026, %v4024
        %v4149 = vpack.c.b16 %v4029, %v4027
        %v4150 = vpack.c.b16 %v4030, %v4028
        %v4151 = vpack.c.b16 %v4033, %v4031
        %v4152 = vpack.c.b16 %v4034, %v4032
        %v4153 = vpack.c.b16 %v4037, %v4035
        %v4154 = vpack.c.b16 %v4038, %v4036
        %v4155 = vpack.c.b16 %v4041, %v4039
        %v4156 = vpack.c.b16 %v4042, %v4040
        %v4157 = vpack.c.b16 %v4045, %v4043
        %v4158 = vpack.c.b16 %v4046, %v4044
        %v4159 = vpack.c.b16 %v4049, %v4047
        %v4160 = vpack.c.b16 %v4050, %v4048
        %v4161 = vpack.c.b16 %v4053, %v4051
        %v4162 = vpack.c.b16 %v4054, %v4052
        %v4163 = vpack.c.b16 %v4057, %v4055
        %v4164 = vpack.c.b16 %v4058, %v4056
        %v4165 = vpack.c.b16 %v4061, %v4059
        %v4166 = vpack.c.b16 %v4062, %v4060
        %v4167 = vpack.c.b16 %v4065, %v4063
        %v4168 = vpack.c.b16 %v4066, %v4064
        %v4169 = vpack.c.b16 %v4069, %v4067
        %v4170 = vpack.c.b16 %v4070, %v4068
        %v4171 = vpack.c.b16 %v4073, %v4071
        %v4172 = vpack.c.b16 %v4074, %v4072
        %v4173 = vpack.c.b16 %v4077, %v4075
        %v4174 = vpack.c.b16 %v4078, %v4076
        %v4175 = vpack.c.b16 %v4081, %v4079
        %v4176 = vpack.c.b16 %v4082, %v4080
        %v4177 = vpack.c.b16 %v4085, %v4083
        %v4178 = vpack.c.b16 %v4086, %v4084
        %v4179 = vpack.c.b16 %v4089, %v4087
        %v4180 = vpack.c.b16 %v4090, %v4088
        %v4181 = vpack.c.b16 %v4093, %v4091
        %v4182 = vpack.c.b16 %v4094, %v4092
        %v4183 = vpack.c.b16 %v4097, %v4095
        %v4184 = vpack.c.b16 %v4098, %v4096
        %v4185 = vpack.c.b16 %v4101, %v4099
        %v4186 = vpack.c.b16 %v4102, %v4100
        %v4187 = vpack.c.b16 %v4105, %v4103
        %v4188 = vpack.c.b16 %v4106, %v4104
        %v4189 = vpack.c.b16 %v4109, %v4107
        %v4190 = vpack.c.b16 %v4110, %v4108
        %v4191 = vpack.c.b16 %v4113, %v4111
        %v4192 = vpack.c.b16 %v4114, %v4112
        %v4193 = vpack.c.b16 %v4117, %v4115
        %v4194 = vpack.c.b16 %v4118, %v4116
        %v4195 = vpack.c.b16 %v4121, %v4119
        %v4196 = vpack.c.b16 %v4122, %v4120
        %v4197 = vpack.c.b16 %v4125, %v4123
        %v4198 = vpack.c.b16 %v4126, %v4124
        %v4199 = vpack.c.b16 %v4129, %v4127
        %v4200 = vpack.c.b16 %v4130, %v4128
        %v4201 = vpack.c.b16 %v4133, %v4131
        %v4202 = vpack.c.b16 %v4134, %v4132
        %v4203 = vpack.c.b16 %v4137, %v4135
        %v4204 = vpack.c.b16 %v4138, %v4136
        %v4205 = vpack.c.b16 %v4141, %v4139
        %v4206 = vpack.c.b16 %v4142, %v4140
        %4271 = vmatprep.subr.bf16.mxu0 %v4158
        %4272 = vmatpush1.bf16.msra.mxu0 %v4157
        %4273 = vmatprep.subr.bf16.mxu0 %v4156
        %4274 = vmatpush1.bf16.msra.mxu0 %v4155
        %4275 = vmatprep.subr.bf16.mxu0 %v4154
        %4276 = vmatpush1.bf16.msra.mxu0 %v4153
        %4277 = vmatprep.subr.bf16.mxu0 %v4152
        %4278 = vmatpush1.bf16.msra.mxu0 %v4151
        %4279 = vmatprep.subr.bf16.mxu0 %v4150
        %4280 = vmatpush1.bf16.msra.mxu0 %v4149
        %4281 = vmatprep.subr.bf16.mxu0 %v4148
        %4282 = vmatpush1.bf16.msra.mxu0 %v4147
        %4283 = vmatprep.subr.bf16.mxu0 %v4146
        %4284 = vmatpush1.bf16.msra.mxu0 %v4145
        %4285 = vmatprep.subr.bf16.mxu0 %v4144
        %4286 = vmatpush1.bf16.msra.mxu0 %v4143
        %4287 = vmatprep.subr.bf16.mxu0 %v4174
        %4288 = vmatpush2.bf16.msra.mxu0 %v4173
        %4289 = vmatprep.subr.bf16.mxu0 %v4172
        %4290 = vmatpush2.bf16.msra.mxu0 %v4171
        %4291 = vmatprep.subr.bf16.mxu0 %v4170
        %4292 = vmatpush2.bf16.msra.mxu0 %v4169
        %4293 = vmatprep.subr.bf16.mxu0 %v4168
        %4294 = vmatpush2.bf16.msra.mxu0 %v4167
        %4295 = vmatprep.subr.bf16.mxu0 %v4166
        %4296 = vmatpush2.bf16.msra.mxu0 %v4165
        %4297 = vmatprep.subr.bf16.mxu0 %v4164
        %4298 = vmatpush2.bf16.msra.mxu0 %v4163
        %4299 = vmatprep.subr.bf16.mxu0 %v4162
        %4300 = vmatpush2.bf16.msra.mxu0 %v4161
        %4301 = vmatprep.subr.bf16.mxu0 %v4160
        %4302 = vmatpush2.bf16.msra.mxu0 %v4159
        %4303 = vmatprep.mubr.bf16.mxu0 %v3836
        %4304 = vmatmul.mubr.bf16.gmra.mxu0 %v3835
        %v4305 = vpop.f32.mrf.mxu0
        %v4306 = vadd.f32 %v3944, %v4305
        %v4307 = vpop.f32.mrf.mxu0
        %v4308 = vadd.f32 %v3948, %v4307
        %v4309 = vpop.f32.mrf.mxu0
        %v4310 = vadd.f32 %v3944, %v4309
        %v4311 = vpop.f32.mrf.mxu0
        %v4312 = vadd.f32 %v3948, %v4311
        %4313 = vmatprep.mubr.bf16.mxu0 %v3840
        %4314 = vmatmul.mubr.bf16.gmra.mxu0 %v3839
        %v4315 = vpop.f32.mrf.mxu0
        %v4316 = vadd.f32 %v3944, %v4315
        %v4317 = vpop.f32.mrf.mxu0
        %v4318 = vadd.f32 %v3948, %v4317
        %v4319 = vpop.f32.mrf.mxu0
        %v4320 = vadd.f32 %v3944, %v4319
        %v4321 = vpop.f32.mrf.mxu0
        %v4322 = vadd.f32 %v3948, %v4321
        %4323 = vmatprep.mubr.bf16.mxu0 %v3844
        %4324 = vmatmul.mubr.bf16.gmra.mxu0 %v3843
        %v4325 = vpop.f32.mrf.mxu0
        %v4326 = vadd.f32 %v3944, %v4325
        %v4327 = vpop.f32.mrf.mxu0
        %v4328 = vadd.f32 %v3948, %v4327
        %v4329 = vpop.f32.mrf.mxu0
        %v4330 = vadd.f32 %v3944, %v4329
        %v4331 = vpop.f32.mrf.mxu0
        %v4332 = vadd.f32 %v3948, %v4331
        %4333 = vmatprep.mubr.bf16.mxu0 %v3848
        %4334 = vmatmul.mubr.bf16.gmra.mxu0 %v3847
        %v4335 = vpop.f32.mrf.mxu0
        %v4336 = vadd.f32 %v3944, %v4335
        %v4337 = vpop.f32.mrf.mxu0
        %v4338 = vadd.f32 %v3948, %v4337
        %v4339 = vpop.f32.mrf.mxu0
        %v4340 = vadd.f32 %v3944, %v4339
        %v4341 = vpop.f32.mrf.mxu0
        %v4342 = vadd.f32 %v3948, %v4341
        %4343 = vmatprep.mubr.bf16.mxu0 %v3852
        %4344 = vmatmul.mubr.bf16.gmra.mxu0 %v3851
        %v4345 = vpop.f32.mrf.mxu0
        %v4346 = vadd.f32 %v3944, %v4345
        %v4347 = vpop.f32.mrf.mxu0
        %v4348 = vadd.f32 %v3948, %v4347
        %v4349 = vpop.f32.mrf.mxu0
        %v4350 = vadd.f32 %v3944, %v4349
        %v4351 = vpop.f32.mrf.mxu0
        %v4352 = vadd.f32 %v3948, %v4351
        %4353 = vmatprep.mubr.bf16.mxu0 %v3856
        %4354 = vmatmul.mubr.bf16.gmra.mxu0 %v3855
        %v4355 = vpop.f32.mrf.mxu0
        %v4356 = vadd.f32 %v3944, %v4355
        %v4357 = vpop.f32.mrf.mxu0
        %v4358 = vadd.f32 %v3948, %v4357
        %v4359 = vpop.f32.mrf.mxu0
        %v4360 = vadd.f32 %v3944, %v4359
        %v4361 = vpop.f32.mrf.mxu0
        %v4362 = vadd.f32 %v3948, %v4361
        %4363 = vmatprep.mubr.bf16.mxu0 %v3860
        %4364 = vmatmul.mubr.bf16.gmra.mxu0 %v3859
        %v4365 = vpop.f32.mrf.mxu0
        %v4366 = vadd.f32 %v3944, %v4365
        %v4367 = vpop.f32.mrf.mxu0
        %v4368 = vadd.f32 %v3948, %v4367
        %v4369 = vpop.f32.mrf.mxu0
        %v4370 = vadd.f32 %v3944, %v4369
        %v4371 = vpop.f32.mrf.mxu0
        %v4372 = vadd.f32 %v3948, %v4371
        %4373 = vmatprep.mubr.bf16.mxu0 %v3864
        %4374 = vmatmul.mubr.bf16.gmra.mxu0 %v3863
        %v4375 = vpop.f32.mrf.mxu0
        %v4376 = vadd.f32 %v3944, %v4375
        %v4377 = vpop.f32.mrf.mxu0
        %v4378 = vadd.f32 %v3948, %v4377
        %v4379 = vpop.f32.mrf.mxu0
        %v4380 = vadd.f32 %v3944, %v4379
        %v4381 = vpop.f32.mrf.mxu0
        %v4382 = vadd.f32 %v3948, %v4381
        %4383 = vmatprep.mubr.bf16.mxu0 %v3868
        %4384 = vmatmul.mubr.bf16.gmra.mxu0 %v3867
        %v4385 = vpop.f32.mrf.mxu0
        %v4386 = vadd.f32 %v3944, %v4385
        %v4387 = vpop.f32.mrf.mxu0
        %v4388 = vadd.f32 %v3948, %v4387
        %v4389 = vpop.f32.mrf.mxu0
        %v4390 = vadd.f32 %v3944, %v4389
        %v4391 = vpop.f32.mrf.mxu0
        %v4392 = vadd.f32 %v3948, %v4391
        %4393 = vmatprep.mubr.bf16.mxu0 %v3872
        %4394 = vmatmul.mubr.bf16.gmra.mxu0 %v3871
        %v4395 = vpop.f32.mrf.mxu0
        %v4396 = vadd.f32 %v3944, %v4395
        %v4397 = vpop.f32.mrf.mxu0
        %v4398 = vadd.f32 %v3948, %v4397
        %v4399 = vpop.f32.mrf.mxu0
        %v4400 = vpop.f32.mrf.mxu0
        %4401 = vdwg.mxu0
        %4402 = vmatprep.subr.bf16.mxu0 %v4190
        %4403 = vmatpush1.bf16.msra.mxu0 %v4189
        %4404 = vmatprep.subr.bf16.mxu0 %v4188
        %4405 = vmatpush1.bf16.msra.mxu0 %v4187
        %4406 = vmatprep.subr.bf16.mxu0 %v4186
        %4407 = vmatpush1.bf16.msra.mxu0 %v4185
        %4408 = vmatprep.subr.bf16.mxu0 %v4184
        %4409 = vmatpush1.bf16.msra.mxu0 %v4183
        %4410 = vmatprep.subr.bf16.mxu0 %v4182
        %4411 = vmatpush1.bf16.msra.mxu0 %v4181
        %4412 = vmatprep.subr.bf16.mxu0 %v4180
        %4413 = vmatpush1.bf16.msra.mxu0 %v4179
        %4414 = vmatprep.subr.bf16.mxu0 %v4178
        %4415 = vmatpush1.bf16.msra.mxu0 %v4177
        %4416 = vmatprep.subr.bf16.mxu0 %v4176
        %4417 = vmatpush1.bf16.msra.mxu0 %v4175
        %4418 = vmatprep.subr.bf16.mxu0 %v4206
        %4419 = vmatpush2.bf16.msra.mxu0 %v4205
        %4420 = vmatprep.subr.bf16.mxu0 %v4204
        %4421 = vmatpush2.bf16.msra.mxu0 %v4203
        %4422 = vmatprep.subr.bf16.mxu0 %v4202
        %4423 = vmatpush2.bf16.msra.mxu0 %v4201
        %4424 = vmatprep.subr.bf16.mxu0 %v4200
        %4425 = vmatpush2.bf16.msra.mxu0 %v4199
        %4426 = vmatprep.subr.bf16.mxu0 %v4198
        %4427 = vmatpush2.bf16.msra.mxu0 %v4197
        %4428 = vmatprep.subr.bf16.mxu0 %v4196
        %4429 = vmatpush2.bf16.msra.mxu0 %v4195
        %4430 = vmatprep.subr.bf16.mxu0 %v4194
        %4431 = vmatpush2.bf16.msra.mxu0 %v4193
        %4432 = vmatprep.subr.bf16.mxu0 %v4192
        %4433 = vmatpush2.bf16.msra.mxu0 %v4191
        %4434 = vmatprep.mubr.bf16.mxu0 %v3838
        %4435 = vmatmul.mubr.bf16.gmra.mxu0 %v3837
        %v4436 = vpop.f32.mrf.mxu0
        %v4437 = vadd.f32 %v4306, %v4436
        %v4438 = vpop.f32.mrf.mxu0
        %v4439 = vadd.f32 %v4308, %v4438
        %v4440 = vpop.f32.mrf.mxu0
        %v4441 = vadd.f32 %v4310, %v4440
        %v4442 = vpop.f32.mrf.mxu0
        %v4443 = vadd.f32 %v4312, %v4442
        %4444 = vmatprep.mubr.bf16.mxu0 %v3842
        %4445 = vmatmul.mubr.bf16.gmra.mxu0 %v3841
        %v4446 = vpop.f32.mrf.mxu0
        %v4447 = vadd.f32 %v4316, %v4446
        %v4448 = vpop.f32.mrf.mxu0
        %v4449 = vadd.f32 %v4318, %v4448
        %v4450 = vpop.f32.mrf.mxu0
        %v4451 = vadd.f32 %v4320, %v4450
        %v4452 = vpop.f32.mrf.mxu0
        %v4453 = vadd.f32 %v4322, %v4452
        %4454 = vmatprep.mubr.bf16.mxu0 %v3846
        %4455 = vmatmul.mubr.bf16.gmra.mxu0 %v3845
        %v4456 = vpop.f32.mrf.mxu0
        %v4457 = vadd.f32 %v4326, %v4456
        %v4458 = vpop.f32.mrf.mxu0
        %v4459 = vadd.f32 %v4328, %v4458
        %v4460 = vpop.f32.mrf.mxu0
        %v4461 = vadd.f32 %v4330, %v4460
        %v4462 = vpop.f32.mrf.mxu0
        %v4463 = vadd.f32 %v4332, %v4462
        %4464 = vmatprep.mubr.bf16.mxu0 %v3850
        %4465 = vmatmul.mubr.bf16.gmra.mxu0 %v3849
        %v4466 = vpop.f32.mrf.mxu0
        %v4467 = vadd.f32 %v4336, %v4466
        %v4468 = vpop.f32.mrf.mxu0
        %v4469 = vadd.f32 %v4338, %v4468
        %v4470 = vpop.f32.mrf.mxu0
        %v4471 = vadd.f32 %v4340, %v4470
        %v4472 = vpop.f32.mrf.mxu0
        %v4473 = vadd.f32 %v4342, %v4472
        %4474 = vmatprep.mubr.bf16.mxu0 %v3854
        %4475 = vmatmul.mubr.bf16.gmra.mxu0 %v3853
        %v4476 = vpop.f32.mrf.mxu0
        %v4477 = vadd.f32 %v4346, %v4476
        %v4478 = vpop.f32.mrf.mxu0
        %v4479 = vadd.f32 %v4348, %v4478
        %v4480 = vpop.f32.mrf.mxu0
        %v4481 = vadd.f32 %v4350, %v4480
        %v4482 = vpop.f32.mrf.mxu0
        %v4483 = vadd.f32 %v4352, %v4482
        %4484 = vmatprep.mubr.bf16.mxu0 %v3858
        %4485 = vmatmul.mubr.bf16.gmra.mxu0 %v3857
        %v4486 = vpop.f32.mrf.mxu0
        %v4487 = vadd.f32 %v4356, %v4486
        %v4488 = vpop.f32.mrf.mxu0
        %v4489 = vadd.f32 %v4358, %v4488
        %v4490 = vpop.f32.mrf.mxu0
        %v4491 = vadd.f32 %v4360, %v4490
        %v4492 = vpop.f32.mrf.mxu0
        %v4493 = vadd.f32 %v4362, %v4492
        %4494 = vmatprep.mubr.bf16.mxu0 %v3862
        %4495 = vmatmul.mubr.bf16.gmra.mxu0 %v3861
        %v4496 = vpop.f32.mrf.mxu0
        %v4497 = vadd.f32 %v4366, %v4496
        %v4498 = vpop.f32.mrf.mxu0
        %v4499 = vadd.f32 %v4368, %v4498
        %v4500 = vpop.f32.mrf.mxu0
        %v4501 = vadd.f32 %v4370, %v4500
        %v4502 = vpop.f32.mrf.mxu0
        %v4503 = vadd.f32 %v4372, %v4502
        %4504 = vmatprep.mubr.bf16.mxu0 %v3866
        %4505 = vmatmul.mubr.bf16.gmra.mxu0 %v3865
        %v4506 = vpop.f32.mrf.mxu0
        %v4507 = vadd.f32 %v4376, %v4506
        %v4508 = vpop.f32.mrf.mxu0
        %v4509 = vadd.f32 %v4378, %v4508
        %v4510 = vpop.f32.mrf.mxu0
        %v4511 = vadd.f32 %v4380, %v4510
        %v4512 = vpop.f32.mrf.mxu0
        %v4513 = vadd.f32 %v4382, %v4512
        %4514 = vmatprep.mubr.bf16.mxu0 %v3870
        %4515 = vmatmul.mubr.bf16.gmra.mxu0 %v3869
        %v4516 = vpop.f32.mrf.mxu0
        %v4517 = vadd.f32 %v4386, %v4516
        %v4518 = vpop.f32.mrf.mxu0
        %v4519 = vadd.f32 %v4388, %v4518
        %v4520 = vpop.f32.mrf.mxu0
        %v4521 = vadd.f32 %v4390, %v4520
        %v4522 = vpop.f32.mrf.mxu0
        %v4523 = vadd.f32 %v4392, %v4522
        %4524 = vmatprep.mubr.bf16.mxu0 %v3874
        %4525 = vmatmul.mubr.bf16.gmra.mxu0 %v3873
        %v4526 = vpop.f32.mrf.mxu0
        %v4527 = vadd.f32 %v4396, %v4526
        %v4528 = vpop.f32.mrf.mxu0
        %v4529 = vadd.f32 %v4398, %v4528
        %v4530 = vpop.f32.mrf.mxu0
        %v4531 = vpop.f32.mrf.mxu0
        %4532 = vdwg.mxu0
        %v4533 = vld [vmem:[%s11] sm:$0x3]
        %v4534 = vld [vmem:[%s12] sm:$0x3]
        %v4535 = vadd.f32 %v4437, %v4439
        %4536 = vadd.xlane.f32.xlu0 %v4535
        %v4537 = vpop.xlane.xlu0 %4536
        %v4538 = vadd.f32 %v4441, %v4443
        %4539 = vadd.xlane.f32.xlu0 %v4538
        %v4540 = vpop.xlane.xlu0 %4539
        %v4541 = vadd.f32 %v4447, %v4449
        %4542 = vadd.xlane.f32.xlu0 %v4541
        %v4543 = vpop.xlane.xlu0 %4542
        %v4544 = vadd.f32 %v4451, %v4453
        %4545 = vadd.xlane.f32.xlu0 %v4544
        %v4546 = vpop.xlane.xlu0 %4545
        %v4547 = vadd.f32 %v4457, %v4459
        %4548 = vadd.xlane.f32.xlu0 %v4547
        %v4549 = vpop.xlane.xlu0 %4548
        %v4550 = vadd.f32 %v4461, %v4463
        %4551 = vadd.xlane.f32.xlu0 %v4550
        %v4552 = vpop.xlane.xlu0 %4551
        %v4553 = vadd.f32 %v4467, %v4469
        %4554 = vadd.xlane.f32.xlu0 %v4553
        %v4555 = vpop.xlane.xlu0 %4554
        %v4556 = vadd.f32 %v4471, %v4473
        %4557 = vadd.xlane.f32.xlu0 %v4556
        %v4558 = vpop.xlane.xlu0 %4557
        %v4559 = vadd.f32 %v4477, %v4479
        %4560 = vadd.xlane.f32.xlu0 %v4559
        %v4561 = vpop.xlane.xlu0 %4560
        %v4562 = vadd.f32 %v4481, %v4483
        %4563 = vadd.xlane.f32.xlu0 %v4562
        %v4564 = vpop.xlane.xlu0 %4563
        %v4565 = vadd.f32 %v4487, %v4489
        %4566 = vadd.xlane.f32.xlu0 %v4565
        %v4567 = vpop.xlane.xlu0 %4566
        %v4568 = vadd.f32 %v4491, %v4493
        %4569 = vadd.xlane.f32.xlu0 %v4568
        %v4570 = vpop.xlane.xlu0 %4569
        %v4571 = vadd.f32 %v4497, %v4499
        %4572 = vadd.xlane.f32.xlu0 %v4571
        %v4573 = vpop.xlane.xlu0 %4572
        %v4574 = vadd.f32 %v4501, %v4503
        %4575 = vadd.xlane.f32.xlu0 %v4574
        %v4576 = vpop.xlane.xlu0 %4575
        %v4577 = vadd.f32 %v4507, %v4509
        %4578 = vadd.xlane.f32.xlu0 %v4577
        %v4579 = vpop.xlane.xlu0 %4578
        %v4580 = vadd.f32 %v4511, %v4513
        %4581 = vadd.xlane.f32.xlu0 %v4580
        %v4582 = vpop.xlane.xlu0 %4581
        %v4583 = vadd.f32 %v4517, %v4519
        %4584 = vadd.xlane.f32.xlu0 %v4583
        %v4585 = vpop.xlane.xlu0 %4584
        %v4586 = vadd.f32 %v4521, %v4523
        %4587 = vadd.xlane.f32.xlu0 %v4586
        %v4588 = vpop.xlane.xlu0 %4587
        %v4589 = vadd.f32 %v4527, %v4529
        %4590 = vadd.xlane.f32.xlu0 %v4589
        %v4591 = vpop.xlane.xlu0 %4590
        %v4592 = vrcp.pop 256.0
        %v4593 = vmul.f32 %v4537, %v4592
        %v4594 = vmul.f32 %v4540, %v4592
        %v4595 = vmul.f32 %v4543, %v4592
        %v4596 = vmul.f32 %v4546, %v4592
        %v4597 = vmul.f32 %v4549, %v4592
        %v4598 = vmul.f32 %v4552, %v4592
        %v4599 = vmul.f32 %v4555, %v4592
        %v4600 = vmul.f32 %v4558, %v4592
        %v4601 = vmul.f32 %v4561, %v4592
        %v4602 = vmul.f32 %v4564, %v4592
        %v4603 = vmul.f32 %v4567, %v4592
        %v4604 = vmul.f32 %v4570, %v4592
        %v4605 = vmul.f32 %v4573, %v4592
        %v4606 = vmul.f32 %v4576, %v4592
        %v4607 = vmul.f32 %v4579, %v4592
        %v4608 = vmul.f32 %v4582, %v4592
        %v4609 = vmul.f32 %v4585, %v4592
        %v4610 = vmul.f32 %v4588, %v4592
        %v4611 = vmul.f32 %v4591, %v4592
        %v4612 = vmul.f32 %v4437, %v4437
        %v4613 = vmul.f32 %v4439, %v4439
        %v4614 = vmul.f32 %v4441, %v4441
        %v4615 = vmul.f32 %v4443, %v4443
        %v4616 = vmul.f32 %v4447, %v4447
        %v4617 = vmul.f32 %v4449, %v4449
        %v4618 = vmul.f32 %v4451, %v4451
        %v4619 = vmul.f32 %v4453, %v4453
        %v4620 = vmul.f32 %v4457, %v4457
        %v4621 = vmul.f32 %v4459, %v4459
        %v4622 = vmul.f32 %v4461, %v4461
        %v4623 = vmul.f32 %v4463, %v4463
        %v4624 = vmul.f32 %v4467, %v4467
        %v4625 = vmul.f32 %v4469, %v4469
        %v4626 = vmul.f32 %v4471, %v4471
        %v4627 = vmul.f32 %v4473, %v4473
        %v4628 = vmul.f32 %v4477, %v4477
        %v4629 = vmul.f32 %v4479, %v4479
        %v4630 = vmul.f32 %v4481, %v4481
        %v4631 = vmul.f32 %v4483, %v4483
        %v4632 = vmul.f32 %v4487, %v4487
        %v4633 = vmul.f32 %v4489, %v4489
        %v4634 = vmul.f32 %v4491, %v4491
        %v4635 = vmul.f32 %v4493, %v4493
        %v4636 = vmul.f32 %v4497, %v4497
        %v4637 = vmul.f32 %v4499, %v4499
        %v4638 = vmul.f32 %v4501, %v4501
        %v4639 = vmul.f32 %v4503, %v4503
        %v4640 = vmul.f32 %v4507, %v4507
        %v4641 = vmul.f32 %v4509, %v4509
        %v4642 = vmul.f32 %v4511, %v4511
        %v4643 = vmul.f32 %v4513, %v4513
        %v4644 = vmul.f32 %v4517, %v4517
        %v4645 = vmul.f32 %v4519, %v4519
        %v4646 = vmul.f32 %v4521, %v4521
        %v4647 = vmul.f32 %v4523, %v4523
        %v4648 = vmul.f32 %v4527, %v4527
        %v4649 = vmul.f32 %v4529, %v4529
        %v4650 = vadd.f32 %v4612, %v4613
        %4651 = vadd.xlane.f32.xlu0 %v4650
        %v4652 = vpop.xlane.xlu0 %4651
        %v4653 = vadd.f32 %v4614, %v4615
        %4654 = vadd.xlane.f32.xlu0 %v4653
        %v4655 = vpop.xlane.xlu0 %4654
        %v4656 = vadd.f32 %v4616, %v4617
        %4657 = vadd.xlane.f32.xlu0 %v4656
        %v4658 = vpop.xlane.xlu0 %4657
        %v4659 = vadd.f32 %v4618, %v4619
        %4660 = vadd.xlane.f32.xlu0 %v4659
        %v4661 = vpop.xlane.xlu0 %4660
        %v4662 = vadd.f32 %v4620, %v4621
        %4663 = vadd.xlane.f32.xlu0 %v4662
        %v4664 = vpop.xlane.xlu0 %4663
        %v4665 = vadd.f32 %v4622, %v4623
        %4666 = vadd.xlane.f32.xlu0 %v4665
        %v4667 = vpop.xlane.xlu0 %4666
        %v4668 = vadd.f32 %v4624, %v4625
        %4669 = vadd.xlane.f32.xlu0 %v4668
        %v4670 = vpop.xlane.xlu0 %4669
        %v4671 = vadd.f32 %v4626, %v4627
        %4672 = vadd.xlane.f32.xlu0 %v4671
        %v4673 = vpop.xlane.xlu0 %4672
        %v4674 = vadd.f32 %v4628, %v4629
        %4675 = vadd.xlane.f32.xlu0 %v4674
        %v4676 = vpop.xlane.xlu0 %4675
        %v4677 = vadd.f32 %v4630, %v4631
        %4678 = vadd.xlane.f32.xlu0 %v4677
        %v4679 = vpop.xlane.xlu0 %4678
        %v4680 = vadd.f32 %v4632, %v4633
        %4681 = vadd.xlane.f32.xlu0 %v4680
        %v4682 = vpop.xlane.xlu0 %4681
        %v4683 = vadd.f32 %v4634, %v4635
        %4684 = vadd.xlane.f32.xlu0 %v4683
        %v4685 = vpop.xlane.xlu0 %4684
        %v4686 = vadd.f32 %v4636, %v4637
        %4687 = vadd.xlane.f32.xlu0 %v4686
        %v4688 = vpop.xlane.xlu0 %4687
        %v4689 = vadd.f32 %v4638, %v4639
        %4690 = vadd.xlane.f32.xlu0 %v4689
        %v4691 = vpop.xlane.xlu0 %4690
        %v4692 = vadd.f32 %v4640, %v4641
        %4693 = vadd.xlane.f32.xlu0 %v4692
        %v4694 = vpop.xlane.xlu0 %4693
        %v4695 = vadd.f32 %v4642, %v4643
        %4696 = vadd.xlane.f32.xlu0 %v4695
        %v4697 = vpop.xlane.xlu0 %4696
        %v4698 = vadd.f32 %v4644, %v4645
        %4699 = vadd.xlane.f32.xlu0 %v4698
        %v4700 = vpop.xlane.xlu0 %4699
        %v4701 = vadd.f32 %v4646, %v4647
        %4702 = vadd.xlane.f32.xlu0 %v4701
        %v4703 = vpop.xlane.xlu0 %4702
        %v4704 = vadd.f32 %v4648, %v4649
        %4705 = vadd.xlane.f32.xlu0 %v4704
        %v4706 = vpop.xlane.xlu0 %4705
        %v4707 = vmul.f32 %v4652, %v4592
        %v4708 = vmul.f32 %v4655, %v4592
        %v4709 = vmul.f32 %v4658, %v4592
        %v4710 = vmul.f32 %v4661, %v4592
        %v4711 = vmul.f32 %v4664, %v4592
        %v4712 = vmul.f32 %v4667, %v4592
        %v4713 = vmul.f32 %v4670, %v4592
        %v4714 = vmul.f32 %v4673, %v4592
        %v4715 = vmul.f32 %v4676, %v4592
        %v4716 = vmul.f32 %v4679, %v4592
        %v4717 = vmul.f32 %v4682, %v4592
        %v4718 = vmul.f32 %v4685, %v4592
        %v4719 = vmul.f32 %v4688, %v4592
        %v4720 = vmul.f32 %v4691, %v4592
        %v4721 = vmul.f32 %v4694, %v4592
        %v4722 = vmul.f32 %v4697, %v4592
        %v4723 = vmul.f32 %v4700, %v4592
        %v4724 = vmul.f32 %v4703, %v4592
        %v4725 = vmul.f32 %v4706, %v4592
        %v4726 = vmul.f32 %v4593, %v4593
        %v4727 = vmul.f32 %v4594, %v4594
        %v4728 = vmul.f32 %v4595, %v4595
        %v4729 = vmul.f32 %v4596, %v4596
        %v4730 = vmul.f32 %v4597, %v4597
        %v4731 = vmul.f32 %v4598, %v4598
        %v4732 = vmul.f32 %v4599, %v4599
        %v4733 = vmul.f32 %v4600, %v4600
        %v4734 = vmul.f32 %v4601, %v4601
        %v4735 = vmul.f32 %v4602, %v4602
        %v4736 = vmul.f32 %v4603, %v4603
        %v4737 = vmul.f32 %v4604, %v4604
        %v4738 = vmul.f32 %v4605, %v4605
        %v4739 = vmul.f32 %v4606, %v4606
        %v4740 = vmul.f32 %v4607, %v4607
        %v4741 = vmul.f32 %v4608, %v4608
        %v4742 = vmul.f32 %v4609, %v4609
        %v4743 = vmul.f32 %v4610, %v4610
        %v4744 = vmul.f32 %v4611, %v4611
        %v4745 = vsub.f32 %v4707, %v4726
        %v4746 = vsub.f32 %v4708, %v4727
        %v4747 = vsub.f32 %v4709, %v4728
        %v4748 = vsub.f32 %v4710, %v4729
        %v4749 = vsub.f32 %v4711, %v4730
        %v4750 = vsub.f32 %v4712, %v4731
        %v4751 = vsub.f32 %v4713, %v4732
        %v4752 = vsub.f32 %v4714, %v4733
        %v4753 = vsub.f32 %v4715, %v4734
        %v4754 = vsub.f32 %v4716, %v4735
        %v4755 = vsub.f32 %v4717, %v4736
        %v4756 = vsub.f32 %v4718, %v4737
        %v4757 = vsub.f32 %v4719, %v4738
        %v4758 = vsub.f32 %v4720, %v4739
        %v4759 = vsub.f32 %v4721, %v4740
        %v4760 = vsub.f32 %v4722, %v4741
        %v4761 = vsub.f32 %v4723, %v4742
        %v4762 = vsub.f32 %v4724, %v4743
        %v4763 = vsub.f32 %v4725, %v4744
        %v4764 = vmax.f32 %v4745, 0.0
        %v4765 = vmax.f32 %v4746, 0.0
        %v4766 = vmax.f32 %v4747, 0.0
        %v4767 = vmax.f32 %v4748, 0.0
        %v4768 = vmax.f32 %v4749, 0.0
        %v4769 = vmax.f32 %v4750, 0.0
        %v4770 = vmax.f32 %v4751, 0.0
        %v4771 = vmax.f32 %v4752, 0.0
        %v4772 = vmax.f32 %v4753, 0.0
        %v4773 = vmax.f32 %v4754, 0.0
        %v4774 = vmax.f32 %v4755, 0.0
        %v4775 = vmax.f32 %v4756, 0.0
        %v4776 = vmax.f32 %v4757, 0.0
        %v4777 = vmax.f32 %v4758, 0.0
        %v4778 = vmax.f32 %v4759, 0.0
        %v4779 = vmax.f32 %v4760, 0.0
        %v4780 = vmax.f32 %v4761, 0.0
        %v4781 = vmax.f32 %v4762, 0.0
        %v4782 = vmax.f32 %v4763, 0.0
        %v4783 = vsub.f32 %v4437, %v4593
        %v4784 = vsub.f32 %v4439, %v4593
        %v4785 = vsub.f32 %v4441, %v4594
        %v4786 = vsub.f32 %v4443, %v4594
        %v4787 = vsub.f32 %v4447, %v4595
        %v4788 = vsub.f32 %v4449, %v4595
        %v4789 = vsub.f32 %v4451, %v4596
        %v4790 = vsub.f32 %v4453, %v4596
        %v4791 = vsub.f32 %v4457, %v4597
        %v4792 = vsub.f32 %v4459, %v4597
        %v4793 = vsub.f32 %v4461, %v4598
        %v4794 = vsub.f32 %v4463, %v4598
        %v4795 = vsub.f32 %v4467, %v4599
        %v4796 = vsub.f32 %v4469, %v4599
        %v4797 = vsub.f32 %v4471, %v4600
        %v4798 = vsub.f32 %v4473, %v4600
        %v4799 = vsub.f32 %v4477, %v4601
        %v4800 = vsub.f32 %v4479, %v4601
        %v4801 = vsub.f32 %v4481, %v4602
        %v4802 = vsub.f32 %v4483, %v4602
        %v4803 = vsub.f32 %v4487, %v4603
        %v4804 = vsub.f32 %v4489, %v4603
        %v4805 = vsub.f32 %v4491, %v4604
        %v4806 = vsub.f32 %v4493, %v4604
        %v4807 = vsub.f32 %v4497, %v4605
        %v4808 = vsub.f32 %v4499, %v4605
        %v4809 = vsub.f32 %v4501, %v4606
        %v4810 = vsub.f32 %v4503, %v4606
        %v4811 = vsub.f32 %v4507, %v4607
        %v4812 = vsub.f32 %v4509, %v4607
        %v4813 = vsub.f32 %v4511, %v4608
        %v4814 = vsub.f32 %v4513, %v4608
        %v4815 = vsub.f32 %v4517, %v4609
        %v4816 = vsub.f32 %v4519, %v4609
        %v4817 = vsub.f32 %v4521, %v4610
        %v4818 = vsub.f32 %v4523, %v4610
        %v4819 = vsub.f32 %v4527, %v4611
        %v4820 = vsub.f32 %v4529, %v4611
        %v4821 = vadd.f32 %v4764, 1e-05
        %v4822 = vadd.f32 %v4765, 1e-05
        %v4823 = vadd.f32 %v4766, 1e-05
        %v4824 = vadd.f32 %v4767, 1e-05
        %v4825 = vadd.f32 %v4768, 1e-05
        %v4826 = vadd.f32 %v4769, 1e-05
        %v4827 = vadd.f32 %v4770, 1e-05
        %v4828 = vadd.f32 %v4771, 1e-05
        %v4829 = vadd.f32 %v4772, 1e-05
        %v4830 = vadd.f32 %v4773, 1e-05
        %v4831 = vadd.f32 %v4774, 1e-05
        %v4832 = vadd.f32 %v4775, 1e-05
        %v4833 = vadd.f32 %v4776, 1e-05
        %v4834 = vadd.f32 %v4777, 1e-05
        %v4835 = vadd.f32 %v4778, 1e-05
        %v4836 = vadd.f32 %v4779, 1e-05
        %v4837 = vadd.f32 %v4780, 1e-05
        %v4838 = vadd.f32 %v4781, 1e-05
        %v4839 = vadd.f32 %v4782, 1e-05
        %v4840 = vrsqrt.pop %v4821
        %v4841 = vrsqrt.pop %v4822
        %v4842 = vrsqrt.pop %v4823
        %v4843 = vrsqrt.pop %v4824
        %v4844 = vrsqrt.pop %v4825
        %v4845 = vrsqrt.pop %v4826
        %v4846 = vrsqrt.pop %v4827
        %v4847 = vrsqrt.pop %v4828
        %v4848 = vrsqrt.pop %v4829
        %v4849 = vrsqrt.pop %v4830
        %v4850 = vrsqrt.pop %v4831
        %v4851 = vrsqrt.pop %v4832
        %v4852 = vrsqrt.pop %v4833
        %v4853 = vrsqrt.pop %v4834
        %v4854 = vrsqrt.pop %v4835
        %v4855 = vrsqrt.pop %v4836
        %v4856 = vrsqrt.pop %v4837
        %v4857 = vrsqrt.pop %v4838
        %v4858 = vrsqrt.pop %v4839
        %v4859 = vmul.f32 %v4783, %v4840
        %v4860 = vmul.f32 %v4784, %v4840
        %v4861 = vmul.f32 %v4785, %v4841
        %v4862 = vmul.f32 %v4786, %v4841
        %v4863 = vmul.f32 %v4787, %v4842
        %v4864 = vmul.f32 %v4788, %v4842
        %v4865 = vmul.f32 %v4789, %v4843
        %v4866 = vmul.f32 %v4790, %v4843
        %v4867 = vmul.f32 %v4791, %v4844
        %v4868 = vmul.f32 %v4792, %v4844
        %v4869 = vmul.f32 %v4793, %v4845
        %v4870 = vmul.f32 %v4794, %v4845
        %v4871 = vmul.f32 %v4795, %v4846
        %v4872 = vmul.f32 %v4796, %v4846
        %v4873 = vmul.f32 %v4797, %v4847
        %v4874 = vmul.f32 %v4798, %v4847
        %v4875 = vmul.f32 %v4799, %v4848
        %v4876 = vmul.f32 %v4800, %v4848
        %v4877 = vmul.f32 %v4801, %v4849
        %v4878 = vmul.f32 %v4802, %v4849
        %v4879 = vmul.f32 %v4803, %v4850
        %v4880 = vmul.f32 %v4804, %v4850
        %v4881 = vmul.f32 %v4805, %v4851
        %v4882 = vmul.f32 %v4806, %v4851
        %v4883 = vmul.f32 %v4807, %v4852
        %v4884 = vmul.f32 %v4808, %v4852
        %v4885 = vmul.f32 %v4809, %v4853
        %v4886 = vmul.f32 %v4810, %v4853
        %v4887 = vmul.f32 %v4811, %v4854
        %v4888 = vmul.f32 %v4812, %v4854
        %v4889 = vmul.f32 %v4813, %v4855
        %v4890 = vmul.f32 %v4814, %v4855
        %v4891 = vmul.f32 %v4815, %v4856
        %v4892 = vmul.f32 %v4816, %v4856
        %v4893 = vmul.f32 %v4817, %v4857
        %v4894 = vmul.f32 %v4818, %v4857
        %v4895 = vmul.f32 %v4819, %v4858
        %v4896 = vmul.f32 %v4820, %v4858
        %v4898 = vlaneseq
        %v4899 = vshrl.u32 %v4898, 7
        %v4900 = vsub.s32 0, %v4899
        %v4901 = vrot.slane %v4533, %v4900
        %v4902 = vlaneseq
        %v4903 = vshrl.u32 %v4902, 7
        %v4904 = vsub.s32 1, %v4903
        %v4905 = vrot.slane %v4533, %v4904
        %v4908 = vmul.f32 %v4859, %v4901
        %v4909 = vmul.f32 %v4860, %v4905
        %v4910 = vmul.f32 %v4861, %v4901
        %v4911 = vmul.f32 %v4862, %v4905
        %v4912 = vmul.f32 %v4863, %v4901
        %v4913 = vmul.f32 %v4864, %v4905
        %v4914 = vmul.f32 %v4865, %v4901
        %v4915 = vmul.f32 %v4866, %v4905
        %v4916 = vmul.f32 %v4867, %v4901
        %v4917 = vmul.f32 %v4868, %v4905
        %v4918 = vmul.f32 %v4869, %v4901
        %v4919 = vmul.f32 %v4870, %v4905
        %v4920 = vmul.f32 %v4871, %v4901
        %v4921 = vmul.f32 %v4872, %v4905
        %v4922 = vmul.f32 %v4873, %v4901
        %v4923 = vmul.f32 %v4874, %v4905
        %v4924 = vmul.f32 %v4875, %v4901
        %v4925 = vmul.f32 %v4876, %v4905
        %v4926 = vmul.f32 %v4877, %v4901
        %v4927 = vmul.f32 %v4878, %v4905
        %v4928 = vmul.f32 %v4879, %v4901
        %v4929 = vmul.f32 %v4880, %v4905
        %v4930 = vmul.f32 %v4881, %v4901
        %v4931 = vmul.f32 %v4882, %v4905
        %v4932 = vmul.f32 %v4883, %v4901
        %v4933 = vmul.f32 %v4884, %v4905
        %v4934 = vmul.f32 %v4885, %v4901
        %v4935 = vmul.f32 %v4886, %v4905
        %v4936 = vmul.f32 %v4887, %v4901
        %v4937 = vmul.f32 %v4888, %v4905
        %v4938 = vmul.f32 %v4889, %v4901
        %v4939 = vmul.f32 %v4890, %v4905
        %v4940 = vmul.f32 %v4891, %v4901
        %v4941 = vmul.f32 %v4892, %v4905
        %v4942 = vmul.f32 %v4893, %v4901
        %v4943 = vmul.f32 %v4894, %v4905
        %v4944 = vmul.f32 %v4895, %v4901
        %v4945 = vmul.f32 %v4896, %v4905
        %v4947 = vlaneseq
        %v4948 = vshrl.u32 %v4947, 7
        %v4949 = vsub.s32 0, %v4948
        %v4950 = vrot.slane %v4534, %v4949
        %v4951 = vlaneseq
        %v4952 = vshrl.u32 %v4951, 7
        %v4953 = vsub.s32 1, %v4952
        %v4954 = vrot.slane %v4534, %v4953
        %v4957 = vadd.f32 %v4908, %v4950
        %v4958 = vadd.f32 %v4909, %v4954
        %v4959 = vadd.f32 %v4910, %v4950
        %v4960 = vadd.f32 %v4911, %v4954
        %v4961 = vadd.f32 %v4912, %v4950
        %v4962 = vadd.f32 %v4913, %v4954
        %v4963 = vadd.f32 %v4914, %v4950
        %v4964 = vadd.f32 %v4915, %v4954
        %v4965 = vadd.f32 %v4916, %v4950
        %v4966 = vadd.f32 %v4917, %v4954
        %v4967 = vadd.f32 %v4918, %v4950
        %v4968 = vadd.f32 %v4919, %v4954
        %v4969 = vadd.f32 %v4920, %v4950
        %v4970 = vadd.f32 %v4921, %v4954
        %v4971 = vadd.f32 %v4922, %v4950
        %v4972 = vadd.f32 %v4923, %v4954
        %v4973 = vadd.f32 %v4924, %v4950
        %v4974 = vadd.f32 %v4925, %v4954
        %v4975 = vadd.f32 %v4926, %v4950
        %v4976 = vadd.f32 %v4927, %v4954
        %v4977 = vadd.f32 %v4928, %v4950
        %v4978 = vadd.f32 %v4929, %v4954
        %v4979 = vadd.f32 %v4930, %v4950
        %v4980 = vadd.f32 %v4931, %v4954
        %v4981 = vadd.f32 %v4932, %v4950
        %v4982 = vadd.f32 %v4933, %v4954
        %v4983 = vadd.f32 %v4934, %v4950
        %v4984 = vadd.f32 %v4935, %v4954
        %v4985 = vadd.f32 %v4936, %v4950
        %v4986 = vadd.f32 %v4937, %v4954
        %v4987 = vadd.f32 %v4938, %v4950
        %v4988 = vadd.f32 %v4939, %v4954
        %v4989 = vadd.f32 %v4940, %v4950
        %v4990 = vadd.f32 %v4941, %v4954
        %v4991 = vadd.f32 %v4942, %v4950
        %v4992 = vadd.f32 %v4943, %v4954
        %v4993 = vadd.f32 %v4944, %v4950
        %v4994 = vadd.f32 %v4945, %v4954
        %v4995 = vmax.f32 %v4957, 0.0
        %v4996 = vmax.f32 %v4958, 0.0
        %v4997 = vmax.f32 %v4959, 0.0
        %v4998 = vmax.f32 %v4960, 0.0
        %v4999 = vmax.f32 %v4961, 0.0
        %v5000 = vmax.f32 %v4962, 0.0
        %v5001 = vmax.f32 %v4963, 0.0
        %v5002 = vmax.f32 %v4964, 0.0
        %v5003 = vmax.f32 %v4965, 0.0
        %v5004 = vmax.f32 %v4966, 0.0
        %v5005 = vmax.f32 %v4967, 0.0
        %v5006 = vmax.f32 %v4968, 0.0
        %v5007 = vmax.f32 %v4969, 0.0
        %v5008 = vmax.f32 %v4970, 0.0
        %v5009 = vmax.f32 %v4971, 0.0
        %v5010 = vmax.f32 %v4972, 0.0
        %v5011 = vmax.f32 %v4973, 0.0
        %v5012 = vmax.f32 %v4974, 0.0
        %v5013 = vmax.f32 %v4975, 0.0
        %v5014 = vmax.f32 %v4976, 0.0
        %v5015 = vmax.f32 %v4977, 0.0
        %v5016 = vmax.f32 %v4978, 0.0
        %v5017 = vmax.f32 %v4979, 0.0
        %v5018 = vmax.f32 %v4980, 0.0
        %v5019 = vmax.f32 %v4981, 0.0
        %v5020 = vmax.f32 %v4982, 0.0
        %v5021 = vmax.f32 %v4983, 0.0
        %v5022 = vmax.f32 %v4984, 0.0
        %v5023 = vmax.f32 %v4985, 0.0
        %v5024 = vmax.f32 %v4986, 0.0
        %v5025 = vmax.f32 %v4987, 0.0
        %v5026 = vmax.f32 %v4988, 0.0
        %v5027 = vmax.f32 %v4989, 0.0
        %v5028 = vmax.f32 %v4990, 0.0
        %v5029 = vmax.f32 %v4991, 0.0
        %v5030 = vmax.f32 %v4992, 0.0
        %v5031 = vmax.f32 %v4993, 0.0
        %v5032 = vmax.f32 %v4994, 0.0
        %v5033 = vld [vmem:[%s13] sm:$0x3]
        %v5035 = vlaneseq
        %v5036 = vshrl.u32 %v5035, 7
        %v5037 = vsub.s32 0, %v5036
        %v5038 = vrot.slane %v5033, %v5037
        %v5039 = vlaneseq
        %v5040 = vshrl.u32 %v5039, 7
        %v5041 = vsub.s32 1, %v5040
        %v5042 = vrot.slane %v5033, %v5041
        %v5045 = vmul.f32 %v4995, %v5038
        %v5046 = vmul.f32 %v4996, %v5042
        %v5047 = vmul.f32 %v4997, %v5038
        %v5048 = vmul.f32 %v4998, %v5042
        %v5049 = vmul.f32 %v4999, %v5038
        %v5050 = vmul.f32 %v5000, %v5042
        %v5051 = vmul.f32 %v5001, %v5038
        %v5052 = vmul.f32 %v5002, %v5042
        %v5053 = vmul.f32 %v5003, %v5038
        %v5054 = vmul.f32 %v5004, %v5042
        %v5055 = vmul.f32 %v5005, %v5038
        %v5056 = vmul.f32 %v5006, %v5042
        %v5057 = vmul.f32 %v5007, %v5038
        %v5058 = vmul.f32 %v5008, %v5042
        %v5059 = vmul.f32 %v5009, %v5038
        %v5060 = vmul.f32 %v5010, %v5042
        %v5061 = vmul.f32 %v5011, %v5038
        %v5062 = vmul.f32 %v5012, %v5042
        %v5063 = vmul.f32 %v5013, %v5038
        %v5064 = vmul.f32 %v5014, %v5042
        %v5065 = vmul.f32 %v5015, %v5038
        %v5066 = vmul.f32 %v5016, %v5042
        %v5067 = vmul.f32 %v5017, %v5038
        %v5068 = vmul.f32 %v5018, %v5042
        %v5069 = vmul.f32 %v5019, %v5038
        %v5070 = vmul.f32 %v5020, %v5042
        %v5071 = vmul.f32 %v5021, %v5038
        %v5072 = vmul.f32 %v5022, %v5042
        %v5073 = vmul.f32 %v5023, %v5038
        %v5074 = vmul.f32 %v5024, %v5042
        %v5075 = vmul.f32 %v5025, %v5038
        %v5076 = vmul.f32 %v5026, %v5042
        %v5077 = vmul.f32 %v5027, %v5038
        %v5078 = vmul.f32 %v5028, %v5042
        %v5079 = vmul.f32 %v5029, %v5038
        %v5080 = vmul.f32 %v5030, %v5042
        %v5081 = vmul.f32 %v5031, %v5038
        %v5082 = vmul.f32 %v5032, %v5042
        %v5083 = vadd.f32 %v5045, %v5046
        %5084 = vadd.xlane.f32.xlu0 %v5083
        %v5085 = vpop.xlane.xlu0 %5084
        %v5086 = vadd.f32 %v5047, %v5048
        %5087 = vadd.xlane.f32.xlu0 %v5086
        %v5088 = vpop.xlane.xlu0 %5087
        %v5089 = vadd.f32 %v5049, %v5050
        %5090 = vadd.xlane.f32.xlu0 %v5089
        %v5091 = vpop.xlane.xlu0 %5090
        %v5092 = vadd.f32 %v5051, %v5052
        %5093 = vadd.xlane.f32.xlu0 %v5092
        %v5094 = vpop.xlane.xlu0 %5093
        %v5095 = vadd.f32 %v5053, %v5054
        %5096 = vadd.xlane.f32.xlu0 %v5095
        %v5097 = vpop.xlane.xlu0 %5096
        %v5098 = vadd.f32 %v5055, %v5056
        %5099 = vadd.xlane.f32.xlu0 %v5098
        %v5100 = vpop.xlane.xlu0 %5099
        %v5101 = vadd.f32 %v5057, %v5058
        %5102 = vadd.xlane.f32.xlu0 %v5101
        %v5103 = vpop.xlane.xlu0 %5102
        %v5104 = vadd.f32 %v5059, %v5060
        %5105 = vadd.xlane.f32.xlu0 %v5104
        %v5106 = vpop.xlane.xlu0 %5105
        %v5107 = vadd.f32 %v5061, %v5062
        %5108 = vadd.xlane.f32.xlu0 %v5107
        %v5109 = vpop.xlane.xlu0 %5108
        %v5110 = vadd.f32 %v5063, %v5064
        %5111 = vadd.xlane.f32.xlu0 %v5110
        %v5112 = vpop.xlane.xlu0 %5111
        %v5113 = vadd.f32 %v5065, %v5066
        %5114 = vadd.xlane.f32.xlu0 %v5113
        %v5115 = vpop.xlane.xlu0 %5114
        %v5116 = vadd.f32 %v5067, %v5068
        %5117 = vadd.xlane.f32.xlu0 %v5116
        %v5118 = vpop.xlane.xlu0 %5117
        %v5119 = vadd.f32 %v5069, %v5070
        %5120 = vadd.xlane.f32.xlu0 %v5119
        %v5121 = vpop.xlane.xlu0 %5120
        %v5122 = vadd.f32 %v5071, %v5072
        %5123 = vadd.xlane.f32.xlu0 %v5122
        %v5124 = vpop.xlane.xlu0 %5123
        %v5125 = vadd.f32 %v5073, %v5074
        %5126 = vadd.xlane.f32.xlu0 %v5125
        %v5127 = vpop.xlane.xlu0 %5126
        %v5128 = vadd.f32 %v5075, %v5076
        %5129 = vadd.xlane.f32.xlu0 %v5128
        %v5130 = vpop.xlane.xlu0 %5129
        %v5131 = vadd.f32 %v5077, %v5078
        %5132 = vadd.xlane.f32.xlu0 %v5131
        %v5133 = vpop.xlane.xlu0 %5132
        %v5134 = vadd.f32 %v5079, %v5080
        %5135 = vadd.xlane.f32.xlu0 %v5134
        %v5136 = vpop.xlane.xlu0 %5135
        %v5137 = vadd.f32 %v5081, %v5082
        %5138 = vadd.xlane.f32.xlu0 %v5137
        %v5139 = vpop.xlane.xlu0 %5138
        %v5140 = vld [vmem:[#allocation2] sm:$0x1]
        %v5142 = vlaneseq
        %v5143 = vshrl.u32 %v5142, 7
        %v5144 = vsub.s32 0, %v5143
        %v5145 = vrot.slane %v5140, %v5144
        %v5147 = vadd.f32 %v5085, %v5145
        %v5148 = vadd.f32 %v5088, %v5145
        %v5149 = vadd.f32 %v5091, %v5145
        %v5150 = vadd.f32 %v5094, %v5145
        %v5151 = vadd.f32 %v5097, %v5145
        %v5152 = vadd.f32 %v5100, %v5145
        %v5153 = vadd.f32 %v5103, %v5145
        %v5154 = vadd.f32 %v5106, %v5145
        %v5155 = vadd.f32 %v5109, %v5145
        %v5156 = vadd.f32 %v5112, %v5145
        %v5157 = vadd.f32 %v5115, %v5145
        %v5158 = vadd.f32 %v5118, %v5145
        %v5159 = vadd.f32 %v5121, %v5145
        %v5160 = vadd.f32 %v5124, %v5145
        %v5161 = vadd.f32 %v5127, %v5145
        %v5162 = vadd.f32 %v5130, %v5145
        %v5163 = vadd.f32 %v5133, %v5145
        %v5164 = vadd.f32 %v5136, %v5145
        %v5165 = vadd.f32 %v5139, %v5145
        %vm5166 = vcmask 7168
        %5167 = vst.msk [vmem:[%s513] sm:$0xff] %vm5166, %v5147
        %5168 = vst.msk [vmem:[%s513 + $0x8] sm:$0xff] %vm5166, %v5148
        %5169 = vst.msk [vmem:[%s513 + $0x10] sm:$0xff] %vm5166, %v5149
        %5170 = vst.msk [vmem:[%s513 + $0x18] sm:$0xff] %vm5166, %v5150
        %5171 = vst.msk [vmem:[%s513 + $0x20] sm:$0xff] %vm5166, %v5151
        %5172 = vst.msk [vmem:[%s513 + $0x28] sm:$0xff] %vm5166, %v5152
        %5173 = vst.msk [vmem:[%s513 + $0x30] sm:$0xff] %vm5166, %v5153
        %5174 = vst.msk [vmem:[%s513 + $0x38] sm:$0xff] %vm5166, %v5154
        %5175 = vst.msk [vmem:[%s513 + $0x40] sm:$0xff] %vm5166, %v5155
        %5176 = vst.msk [vmem:[%s513 + $0x48] sm:$0xff] %vm5166, %v5156
        %5177 = vst.msk [vmem:[%s513 + $0x50] sm:$0xff] %vm5166, %v5157
        %5178 = vst.msk [vmem:[%s513 + $0x58] sm:$0xff] %vm5166, %v5158
        %5179 = vst.msk [vmem:[%s513 + $0x60] sm:$0xff] %vm5166, %v5159
        %5180 = vst.msk [vmem:[%s513 + $0x68] sm:$0xff] %vm5166, %v5160
        %5181 = vst.msk [vmem:[%s513 + $0x70] sm:$0xff] %vm5166, %v5161
        %5182 = vst.msk [vmem:[%s513 + $0x78] sm:$0xff] %vm5166, %v5162
        %5183 = vst.msk [vmem:[%s513 + $0x80] sm:$0xff] %vm5166, %v5163
        %5184 = vst.msk [vmem:[%s513 + $0x88] sm:$0xff] %vm5166, %v5164
        %5185 = vst.msk [vmem:[%s513 + $0x90] sm:$0xff] %vm5166, %v5165
        %s5186 = smul.u32 19, %s29
        %p5187 = scmp.lt.s32.totalorder %s5186, 37
        %s5188 = scalar_select %p5187, %s5186, 37
        %s5189 = smul.addr %s5188, 8
        %s5190 = scalar_lea.vmem %s15, %s5189
        // Predicated region
        $region85: #{_lambda_.1} parent=79 // pred_check
          %p5191 = pneg %p367
        $region86: #{_lambda_.1} parent=79 // pred_check_branch
          %5193 = sbr.rel (%p5191) target = $region88
        $region87: #{_lambda_.1} parent=79 // pred_region
          %s5194 = smul.u32 19, %s29
        $region88: #{_lambda_.1} parent=79 // pred_fallthru
          _
      $region80: #{_lambda_.1} parent=5 // pred_fallthru
        _
      %p5195 = scmp.le.s32.totalorder 2, %s24
      // Predicated region
      $region89: #{_lambda_.1} parent=5 // pred_check
        %p5196 = pneg %p5195
      $region90: #{_lambda_.1} parent=5 // pred_check_branch
        %5198 = sbr.rel (%p5196) target = $region92
      $region91: #{_lambda_.1} parent=5 // pred_region
        %s5199 = ssub.s32 %s24, 2
        // Predicated region
        $region93: #{_lambda_.1} parent=91 // pred_check
          %p5200 = pneg %p373
        $region94: #{_lambda_.1} parent=91 // pred_check_branch
          %5202 = sbr.rel (%p5200) target = $region96
        $region95: #{_lambda_.1} parent=91 // pred_region
          %s5203 = smul.u32 19, %s30
          %p5204 = scmp.lt.s32.totalorder %s5203, 37
          %s5205 = scalar_select %p5204, %s5203, 37
          %s5206 = smul.addr %s5205, 8
          %s5207 = scalar_lea.vmem %s15, %s5206
        $region96: #{_lambda_.1} parent=91 // pred_fallthru
          _
      $region92: #{_lambda_.1} parent=5 // pred_fallthru
        _
    $region6: #{_lambda_.1} parent=1 // loop_footer
      %s28 = sadd.s32 1, %s24
    $region7: #{_lambda_.1} parent=1 // loop_footer_branch
      %23 = sbr.rel target = $region3
    $region8: #{_lambda_.1} parent=1 // loop_exit
      _
    %5208 = vsyncpa [#allocation4], 1
    %s5209 = scalar_lea.sflag [#allocation4], 1
    %5210 = vsyncpa %s5209, 1

</llo_original>
